<compile_context>
chip_gen: v7x
topology: tpu7x:2x2x1
jax: 0.10.0
libtpu: 0.0.40
codegen_flags: <defaults>
</compile_context>

<pallas_src>
import jax
import jax.numpy as jnp
from jax.experimental import pallas as pl
from jax.experimental.pallas import tpu as pltpu

INPUT_DIM = 784
HIDDEN_DIM = 400
LATENT_DIM = 20

# Lane-padded (multiple-of-128) sizes used inside the kernel.
INPUT_PAD = 896    # 7 * 128
HIDDEN_PAD = 512   # 4 * 128
LATENT_PAD = 128   # 1 * 128

SUBLANE = 16       # bf16-safe sublane multiple for batch tiles
MAX_TILE_B = 512   # rows per grid step (amortizes per-step overhead on v7x)


def _round_up(x, m):
    return (x + m - 1) // m * m


def _choose_tiling(batch):
    """Pick (tile_b, b_pad): bounded overshoot, >=2 grid steps when batch allows."""
    n_steps = max(1, -(-batch // MAX_TILE_B))
    if batch >= 2 * SUBLANE:
        # Ensure at least 2 grid steps so the "parallel" batch axis can be sharded
        # across both v7x TensorCores (no-op on single-TC v5e/v6e).
        n_steps = max(n_steps, 2)
    tile_b = _round_up(-(-batch // n_steps), SUBLANE)
    b_pad = _round_up(batch, tile_b)
    return tile_b, b_pad


def _vae_kernel(x_ref, w1_ref, b1_ref, wmv_ref, bmv_ref, w3_ref, b3_ref,
                w4_ref, b4_ref, eps_ref,
                recon_ref, mv_ref):
    x = x_ref[...]                                                    # bf16 (TB, 896)

    # encode: h1 = relu(x @ W1 + b1)   (bf16 operands, f32 accumulate, f32 elementwise)
    h1 = jnp.dot(x, w1_ref[...], preferred_element_type=jnp.float32) + b1_ref[...]
    h1 = jnp.maximum(h1, 0.0).astype(jnp.bfloat16)

    # fused mu|log_var projection: one (512, 256) matmul, stored as a single output
    mv = jnp.dot(h1, wmv_ref[...], preferred_element_type=jnp.float32) + bmv_ref[...]
    mu = mv[:, :LATENT_PAD]
    log_var = mv[:, LATENT_PAD:]

    # reparameterize: z = mu + eps * exp(0.5 * log_var)   (f32 elementwise)
    std = jnp.exp(0.5 * log_var)
    z = (mu + eps_ref[...] * std).astype(jnp.bfloat16)

    # decode: sigmoid(relu(z @ W3 + b3) @ W4 + b4)
    h3 = jnp.dot(z, w3_ref[...], preferred_element_type=jnp.float32) + b3_ref[...]
    h3 = jnp.maximum(h3, 0.0).astype(jnp.bfloat16)
    logits = jnp.dot(h3, w4_ref[...], preferred_element_type=jnp.float32) + b4_ref[...]

    # Sigmoid computed in f32 (safe on v5e), stored bf16 (halves the biggest stream).
    recon_ref[...] = jax.nn.sigmoid(logits).astype(jnp.bfloat16)
    mv_ref[...] = mv


def init_params(key):
    """Deterministic init mimicking nn.Linear's U(-1/sqrt(fan_in), 1/sqrt(fan_in)).

    Weights are stored as (in_features, out_features); biases as (1, out_features).
    All f32 at the logical (unpadded) sizes.
    """
    def linear(k, fan_in, fan_out):
        kw, kb = jax.random.split(k)
        bound = 1.0 / jnp.sqrt(fan_in)
        w = jax.random.uniform(kw, (fan_in, fan_out), jnp.float32, -bound, bound)
        b = jax.random.uniform(kb, (1, fan_out), jnp.float32, -bound, bound)
        return w, b

    k1, k2, k3, k4, k5 = jax.random.split(key, 5)
    w1, b1 = linear(k1, INPUT_DIM, HIDDEN_DIM)
    wmu, bmu = linear(k2, HIDDEN_DIM, LATENT_DIM)
    wvar, bvar = linear(k3, HIDDEN_DIM, LATENT_DIM)
    w3, b3 = linear(k4, LATENT_DIM, HIDDEN_DIM)
    w4, b4 = linear(k5, HIDDEN_DIM, INPUT_DIM)
    return dict(w1=w1, b1=b1, wmu=wmu, bmu=bmu, wvar=wvar, bvar=bvar,
                w3=w3, b3=b3, w4=w4, b4=b4)


def prepare_params(params):
    """Zero-pad to lane multiples, fuse mu|var projection, cast weights to bf16.

    Zero padding guarantees that the padded contraction terms vanish, so sliced
    outputs equal the unpadded math exactly.
    """
    def pad2(a, rows, cols):
        return jnp.pad(a, ((0, rows - a.shape[0]), (0, cols - a.shape[1])))

    w1 = pad2(params["w1"], INPUT_PAD, HIDDEN_PAD).astype(jnp.bfloat16)
    b1 = pad2(params["b1"], 1, HIDDEN_PAD)

    wmu = pad2(params["wmu"], HIDDEN_PAD, LATENT_PAD)
    wvar = pad2(params["wvar"], HIDDEN_PAD, LATENT_PAD)
    wmv = jnp.concatenate([wmu, wvar], axis=1).astype(jnp.bfloat16)      # (512, 256)
    bmu = pad2(params["bmu"], 1, LATENT_PAD)
    bvar = pad2(params["bvar"], 1, LATENT_PAD)
    bmv = jnp.concatenate([bmu, bvar], axis=1)                           # (1, 256) f32

    w3 = pad2(params["w3"], LATENT_PAD, HIDDEN_PAD).astype(jnp.bfloat16)
    b3 = pad2(params["b3"], 1, HIDDEN_PAD)
    w4 = pad2(params["w4"], HIDDEN_PAD, INPUT_PAD).astype(jnp.bfloat16)
    b4 = pad2(params["b4"], 1, INPUT_PAD)
    return dict(w1=w1, b1=b1, wmv=wmv, bmv=bmv, w3=w3, b3=b3, w4=w4, b4=b4)


def vae_forward(x_nchw, packed, eps):
    """Runs the full VAE forward. Returns (recon, mu, log_var) at logical shapes."""
    B = x_nchw.shape[0]
    # Single cast to bf16 + a fusable pad (no zeros+scatter pass, no double cast).
    x = x_nchw.reshape(-1, INPUT_DIM).astype(jnp.bfloat16)   # == torch .view(-1, 784)

    tile_b, b_pad = _choose_tiling(B)
    x_p = jnp.pad(x, ((0, b_pad - B), (0, INPUT_PAD - INPUT_DIM)))
    eps_p = jnp.pad(eps.astype(jnp.float32),
                    ((0, b_pad - B), (0, LATENT_PAD - LATENT_DIM)))

    grid = (b_pad // tile_b,)

    def row_spec(cols):
        return pl.BlockSpec((tile_b, cols), lambda i: (i, 0))

    def const_spec(shape):
        # Weights/biases: same block every grid step -> stay VMEM-resident.
        return pl.BlockSpec(shape, lambda i: (0, 0))

    flops = 2 * B * (INPUT_DIM * HIDDEN_DIM + HIDDEN_DIM * 2 * LATENT_DIM
                     + LATENT_DIM * HIDDEN_DIM + HIDDEN_DIM * INPUT_DIM)
    weight_bytes = 2 * (INPUT_PAD * HIDDEN_PAD + HIDDEN_PAD * 2 * LATENT_PAD
                        + LATENT_PAD * HIDDEN_PAD + HIDDEN_PAD * INPUT_PAD)
    bytes_accessed = (weight_bytes
                      + x_p.size * 2 + eps_p.size * 4
                      + b_pad * INPUT_PAD * 2            # bf16 recon
                      + b_pad * 2 * LATENT_PAD * 4)      # fused mu|log_var (f32)
    cost = pl.CostEstimate(flops=flops,
                           transcendentals=B * (LATENT_DIM + INPUT_DIM),
                           bytes_accessed=bytes_accessed)

    recon_p, mv_p = pl.pallas_call(
        _vae_kernel,
        grid=grid,
        in_specs=[
            row_spec(INPUT_PAD),                          # x
            const_spec((INPUT_PAD, HIDDEN_PAD)),          # w1
            const_spec((1, HIDDEN_PAD)),                  # b1
            const_spec((HIDDEN_PAD, 2 * LATENT_PAD)),     # wmv (fused mu|var)
            const_spec((1, 2 * LATENT_PAD)),              # bmv
            const_spec((LATENT_PAD, HIDDEN_PAD)),         # w3
            const_spec((1, HIDDEN_PAD)),                  # b3
            const_spec((HIDDEN_PAD, INPUT_PAD)),          # w4
            const_spec((1, INPUT_PAD)),                   # b4
            row_spec(LATENT_PAD),                         # eps
        ],
        out_specs=(row_spec(INPUT_PAD), row_spec(2 * LATENT_PAD)),
        out_shape=(
            jax.ShapeDtypeStruct((b_pad, INPUT_PAD), jnp.bfloat16),       # recon
            jax.ShapeDtypeStruct((b_pad, 2 * LATENT_PAD), jnp.float32),   # mu|log_var
        ),
        compiler_params=pltpu.CompilerParams(
            dimension_semantics=("parallel",),
            vmem_limit_bytes=32 * 1024 * 1024),
        cost_estimate=cost,
    )(x_p, packed["w1"], packed["b1"], packed["wmv"], packed["bmv"],
      packed["w3"], packed["b3"], packed["w4"], packed["b4"], eps_p)

    recon = recon_p[:B, :INPUT_DIM].astype(jnp.float32)
    mu = mv_p[:B, :LATENT_DIM]
    log_var = mv_p[:B, LATENT_PAD:LATENT_PAD + LATENT_DIM]
    return recon, mu, log_var


if __name__ == "__main__":
    key = jax.random.PRNGKey(0)
    k_params, k_x, k_eps = jax.random.split(key, 3)

    B = 8
    params = init_params(k_params)
    packed = prepare_params(params)
    x = jax.random.uniform(k_x, (B, 1, 28, 28), jnp.float32)   # NCHW like MNIST
    # eps sampled in plain JAX (torch.randn_like equivalent) and passed in; the
    # reparameterization arithmetic itself happens inside the kernel.
    eps = jax.random.normal(k_eps, (B, LATENT_DIM), jnp.float32)

    fwd = jax.jit(vae_forward)   # jit so the pad fuses with the cast (no extra HBM pass)
    recon, mu, log_var = jax.block_until_ready(fwd(x, packed, eps))

    # Pure-JAX reference of the same math with the same bf16 rounding of matmul
    # operands and f32 accumulation (precision=HIGHEST forces true f32 matmul).
    hi = jax.lax.Precision.HIGHEST
    bf = lambda a: a.astype(jnp.bfloat16).astype(jnp.float32)
    xf = bf(x.reshape(-1, INPUT_DIM))
    w1r, wmur, wvarr = bf(params["w1"]), bf(params["wmu"]), bf(params["wvar"])
    w3r, w4r = bf(params["w3"]), bf(params["w4"])
    h1 = bf(jnp.maximum(jnp.dot(xf, w1r, precision=hi) + params["b1"], 0.0))
    mu_r = jnp.dot(h1, wmur, precision=hi) + params["bmu"]
    lv_r = jnp.dot(h1, wvarr, precision=hi) + params["bvar"]
    z_r = bf(mu_r + eps * jnp.exp(0.5 * lv_r))
    h3 = bf(jnp.maximum(jnp.dot(z_r, w3r, precision=hi) + params["b3"], 0.0))
    recon_r = jax.nn.sigmoid(jnp.dot(h3, w4r, precision=hi) + params["b4"])

    assert recon.shape == (B, INPUT_DIM)
    assert mu.shape == (B, LATENT_DIM) and log_var.shape == (B, LATENT_DIM)
    assert jnp.allclose(recon, recon_r, atol=1e-2, rtol=1e-2)
    assert jnp.allclose(mu, mu_r, atol=1e-2, rtol=1e-2)
    assert jnp.allclose(log_var, lv_r, atol=1e-2, rtol=1e-2)

    print("KERNEL_OK")
</pallas_src>

<mosaic_0001>
module attributes {stable_mosaic.version = 11 : i64} {
  func.func @_vae_kernel(%arg0: i32, %arg1: memref<16x896xbf16, #tpu.memory_space<vmem>>, %arg2: memref<896x512xbf16, #tpu.memory_space<vmem>>, %arg3: memref<1x512xf32, #tpu.memory_space<vmem>>, %arg4: memref<512x256xbf16, #tpu.memory_space<vmem>>, %arg5: memref<1x256xf32, #tpu.memory_space<vmem>>, %arg6: memref<128x512xbf16, #tpu.memory_space<vmem>>, %arg7: memref<1x512xf32, #tpu.memory_space<vmem>>, %arg8: memref<512x896xbf16, #tpu.memory_space<vmem>>, %arg9: memref<1x896xf32, #tpu.memory_space<vmem>>, %arg10: memref<16x128xf32, #tpu.memory_space<vmem>>, %arg11: memref<16x896xbf16, #tpu.memory_space<vmem>>, %arg12: memref<16x256xf32, #tpu.memory_space<vmem>>) attributes {dimension_semantics = [#tpu.dimension_semantics<parallel>], iteration_bounds = array<i64: 1>, scalar_prefetch = 0 : i64, scratch_operands = 0 : i64, tpu.core_type = #tpu.core_type<tc>, window_params = [{transform_indices = @transform_0, window_bounds = array<i64: 16, 896>}, {pipeline_mode = #tpu.pipeline_mode<synchronous>, transform_indices = @transform_1, window_bounds = array<i64: 896, 512>}, {pipeline_mode = #tpu.pipeline_mode<synchronous>, transform_indices = @transform_2, window_bounds = array<i64: 1, 512>}, {pipeline_mode = #tpu.pipeline_mode<synchronous>, transform_indices = @transform_3, window_bounds = array<i64: 512, 256>}, {pipeline_mode = #tpu.pipeline_mode<synchronous>, transform_indices = @transform_4, window_bounds = array<i64: 1, 256>}, {pipeline_mode = #tpu.pipeline_mode<synchronous>, transform_indices = @transform_5, window_bounds = array<i64: 128, 512>}, {pipeline_mode = #tpu.pipeline_mode<synchronous>, transform_indices = @transform_6, window_bounds = array<i64: 1, 512>}, {pipeline_mode = #tpu.pipeline_mode<synchronous>, transform_indices = @transform_7, window_bounds = array<i64: 512, 896>}, {pipeline_mode = #tpu.pipeline_mode<synchronous>, transform_indices = @transform_8, window_bounds = array<i64: 1, 896>}, {transform_indices = @transform_9, window_bounds = array<i64: 16, 128>}, {transform_indices = @transform_10, window_bounds = array<i64: 16, 896>}, {transform_indices = @transform_11, window_bounds = array<i64: 16, 256>}]} {
    %c0 = arith.constant 0 : index
    %c0_0 = arith.constant 0 : index
    %0 = vector.load %arg1[%c0, %c0_0] : memref<16x896xbf16, #tpu.memory_space<vmem>>, vector<16x896xbf16>
    %c0_1 = arith.constant 0 : index
    %c0_2 = arith.constant 0 : index
    %1 = vector.load %arg2[%c0_1, %c0_2] : memref<896x512xbf16, #tpu.memory_space<vmem>>, vector<896x512xbf16>
    %cst = arith.constant dense<0.000000e+00> : vector<16x512xf32>
    %2 = tpu.matmul %0, %1, %cst {dimension_numbers = #tpu.dot_dimension_numbers<[1], [0], [0], [1], [0, 0, 1, 1], [], []>} : vector<16x896xbf16>, vector<896x512xbf16>, vector<16x512xf32> -> vector<16x512xf32>
    %c0_3 = arith.constant 0 : index
    %c0_4 = arith.constant 0 : index
    %3 = vector.load %arg3[%c0_3, %c0_4] : memref<1x512xf32, #tpu.memory_space<vmem>>, vector<1x512xf32>
    %4 = vector.broadcast %3 : vector<1x512xf32> to vector<16x512xf32>
    %5 = arith.addf %2, %4 : vector<16x512xf32>
    %cst_5 = arith.constant 0.000000e+00 : f32
    %6 = vector.broadcast %cst_5 : f32 to vector<16x512xf32>
    %7 = arith.maximumf %5, %6 : vector<16x512xf32>
    %8 = arith.truncf %7 : vector<16x512xf32> to vector<16x512xbf16>
    %c0_6 = arith.constant 0 : index
    %c0_7 = arith.constant 0 : index
    %9 = vector.load %arg4[%c0_6, %c0_7] : memref<512x256xbf16, #tpu.memory_space<vmem>>, vector<512x256xbf16>
    %cst_8 = arith.constant dense<0.000000e+00> : vector<16x256xf32>
    %10 = tpu.matmul %8, %9, %cst_8 {dimension_numbers = #tpu.dot_dimension_numbers<[1], [0], [0], [1], [0, 0, 1, 1], [], []>} : vector<16x512xbf16>, vector<512x256xbf16>, vector<16x256xf32> -> vector<16x256xf32>
    %c0_9 = arith.constant 0 : index
    %c0_10 = arith.constant 0 : index
    %11 = vector.load %arg5[%c0_9, %c0_10] : memref<1x256xf32, #tpu.memory_space<vmem>>, vector<1x256xf32>
    %12 = vector.broadcast %11 : vector<1x256xf32> to vector<16x256xf32>
    %13 = arith.addf %10, %12 : vector<16x256xf32>
    %14 = vector.extract_strided_slice %13 {offsets = [0, 0], sizes = [16, 128], strides = [1, 1]} : vector<16x256xf32> to vector<16x128xf32>
    %15 = vector.extract_strided_slice %13 {offsets = [0, 128], sizes = [16, 128], strides = [1, 1]} : vector<16x256xf32> to vector<16x128xf32>
    %cst_11 = arith.constant 5.000000e-01 : f32
    %16 = vector.broadcast %cst_11 : f32 to vector<16x128xf32>
    %17 = arith.mulf %16, %15 : vector<16x128xf32>
    %18 = math.exp %17 : vector<16x128xf32>
    %c0_12 = arith.constant 0 : index
    %c0_13 = arith.constant 0 : index
    %19 = vector.load %arg10[%c0_12, %c0_13] : memref<16x128xf32, #tpu.memory_space<vmem>>, vector<16x128xf32>
    %20 = arith.mulf %19, %18 : vector<16x128xf32>
    %21 = arith.addf %14, %20 : vector<16x128xf32>
    %22 = arith.truncf %21 : vector<16x128xf32> to vector<16x128xbf16>
    %c0_14 = arith.constant 0 : index
    %c0_15 = arith.constant 0 : index
    %23 = vector.load %arg6[%c0_14, %c0_15] : memref<128x512xbf16, #tpu.memory_space<vmem>>, vector<128x512xbf16>
    %cst_16 = arith.constant dense<0.000000e+00> : vector<16x512xf32>
    %24 = tpu.matmul %22, %23, %cst_16 {dimension_numbers = #tpu.dot_dimension_numbers<[1], [0], [0], [1], [0, 0, 1, 1], [], []>} : vector<16x128xbf16>, vector<128x512xbf16>, vector<16x512xf32> -> vector<16x512xf32>
    %c0_17 = arith.constant 0 : index
    %c0_18 = arith.constant 0 : index
    %25 = vector.load %arg7[%c0_17, %c0_18] : memref<1x512xf32, #tpu.memory_space<vmem>>, vector<1x512xf32>
    %26 = vector.broadcast %25 : vector<1x512xf32> to vector<16x512xf32>
    %27 = arith.addf %24, %26 : vector<16x512xf32>
    %cst_19 = arith.constant 0.000000e+00 : f32
    %28 = vector.broadcast %cst_19 : f32 to vector<16x512xf32>
    %29 = arith.maximumf %27, %28 : vector<16x512xf32>
    %30 = arith.truncf %29 : vector<16x512xf32> to vector<16x512xbf16>
    %c0_20 = arith.constant 0 : index
    %c0_21 = arith.constant 0 : index
    %31 = vector.load %arg8[%c0_20, %c0_21] : memref<512x896xbf16, #tpu.memory_space<vmem>>, vector<512x896xbf16>
    %cst_22 = arith.constant dense<0.000000e+00> : vector<16x896xf32>
    %32 = tpu.matmul %30, %31, %cst_22 {dimension_numbers = #tpu.dot_dimension_numbers<[1], [0], [0], [1], [0, 0, 1, 1], [], []>} : vector<16x512xbf16>, vector<512x896xbf16>, vector<16x896xf32> -> vector<16x896xf32>
    %c0_23 = arith.constant 0 : index
    %c0_24 = arith.constant 0 : index
    %33 = vector.load %arg9[%c0_23, %c0_24] : memref<1x896xf32, #tpu.memory_space<vmem>>, vector<1x896xf32>
    %34 = vector.broadcast %33 : vector<1x896xf32> to vector<16x896xf32>
    %35 = arith.addf %32, %34 : vector<16x896xf32>
    %36 = arith.negf %35 : vector<16x896xf32>
    %37 = math.exp %36 : vector<16x896xf32>
    %cst_25 = arith.constant 1.000000e+00 : f32
    %38 = vector.broadcast %cst_25 : f32 to vector<16x896xf32>
    %39 = arith.addf %38, %37 : vector<16x896xf32>
    %40 = arith.divf %38, %39 : vector<16x896xf32>
    %41 = arith.truncf %40 : vector<16x896xf32> to vector<16x896xbf16>
    %c0_26 = arith.constant 0 : index
    %c0_27 = arith.constant 0 : index
    %42 = vector.load %arg11[%c0_26, %c0_27] : memref<16x896xbf16, #tpu.memory_space<vmem>>, vector<16x896xbf16>
    tpu.vector_store %arg11[%c0_26, %c0_27], %41 {strides = array<i32>} : memref<16x896xbf16, #tpu.memory_space<vmem>>, vector<16x896xbf16>,
    %c0_28 = arith.constant 0 : index
    %c0_29 = arith.constant 0 : index
    %43 = vector.load %arg12[%c0_28, %c0_29] : memref<16x256xf32, #tpu.memory_space<vmem>>, vector<16x256xf32>
    tpu.vector_store %arg12[%c0_28, %c0_29], %13 {strides = array<i32>} : memref<16x256xf32, #tpu.memory_space<vmem>>, vector<16x256xf32>,
    return
  }
  func.func @transform_0(%arg0: i32) -> (i32, i32) {
    %c0_i32 = arith.constant 0 : i32
    %c0_i32_0 = arith.constant 0 : i32
    return %arg0, %c0_i32 : i32, i32
  }
  func.func @transform_1(%arg0: i32) -> (i32, i32) {
    %c0_i32 = arith.constant 0 : i32
    %c0_i32_0 = arith.constant 0 : i32
    %c0_i32_1 = arith.constant 0 : i32
    return %c0_i32, %c0_i32_0 : i32, i32
  }
  func.func @transform_2(%arg0: i32) -> (i32, i32) {
    %c0_i32 = arith.constant 0 : i32
    %c0_i32_0 = arith.constant 0 : i32
    %c0_i32_1 = arith.constant 0 : i32
    return %c0_i32, %c0_i32_0 : i32, i32
  }
  func.func @transform_3(%arg0: i32) -> (i32, i32) {
    %c0_i32 = arith.constant 0 : i32
    %c0_i32_0 = arith.constant 0 : i32
    %c0_i32_1 = arith.constant 0 : i32
    return %c0_i32, %c0_i32_0 : i32, i32
  }
  func.func @transform_4(%arg0: i32) -> (i32, i32) {
    %c0_i32 = arith.constant 0 : i32
    %c0_i32_0 = arith.constant 0 : i32
    %c0_i32_1 = arith.constant 0 : i32
    return %c0_i32, %c0_i32_0 : i32, i32
  }
  func.func @transform_5(%arg0: i32) -> (i32, i32) {
    %c0_i32 = arith.constant 0 : i32
    %c0_i32_0 = arith.constant 0 : i32
    %c0_i32_1 = arith.constant 0 : i32
    return %c0_i32, %c0_i32_0 : i32, i32
  }
  func.func @transform_6(%arg0: i32) -> (i32, i32) {
    %c0_i32 = arith.constant 0 : i32
    %c0_i32_0 = arith.constant 0 : i32
    %c0_i32_1 = arith.constant 0 : i32
    return %c0_i32, %c0_i32_0 : i32, i32
  }
  func.func @transform_7(%arg0: i32) -> (i32, i32) {
    %c0_i32 = arith.constant 0 : i32
    %c0_i32_0 = arith.constant 0 : i32
    %c0_i32_1 = arith.constant 0 : i32
    return %c0_i32, %c0_i32_0 : i32, i32
  }
  func.func @transform_8(%arg0: i32) -> (i32, i32) {
    %c0_i32 = arith.constant 0 : i32
    %c0_i32_0 = arith.constant 0 : i32
    %c0_i32_1 = arith.constant 0 : i32
    return %c0_i32, %c0_i32_0 : i32, i32
  }
  func.func @transform_9(%arg0: i32) -> (i32, i32) {
    %c0_i32 = arith.constant 0 : i32
    %c0_i32_0 = arith.constant 0 : i32
    return %arg0, %c0_i32 : i32, i32
  }
  func.func @transform_10(%arg0: i32) -> (i32, i32) {
    %c0_i32 = arith.constant 0 : i32
    %c0_i32_0 = arith.constant 0 : i32
    return %arg0, %c0_i32 : i32, i32
  }
  func.func @transform_11(%arg0: i32) -> (i32, i32) {
    %c0_i32 = arith.constant 0 : i32
    %c0_i32_0 = arith.constant 0 : i32
    return %arg0, %c0_i32 : i32, i32
  }
}

</mosaic_0001>

<llo_original>
// kernel: vae_forward.1
$region0: #{vae_forward.1}
  #allocation0 [shape = 'u32[]', space=smem, size = 0x4, offset = 0x4, fixed_abs, tag = 'smem constant byte address 0x4 - core index']
  #allocation1 [shape = 'u32[144,128]{1,0:T(1,128)}', space=vmem, size = 0x12000, scoped, tag = 'internal scratch']
  %s0 = inlined_call_operand.vmem [shape: bf16[16,896], index: 0, kind: input, shape index: {}]
  %s1 = inlined_call_operand.hbm [shape: bf16[896,512], index: 1, kind: input, shape index: {}]
  %s2 = inlined_call_operand.vmem [shape: f32[1,512], index: 2, kind: input, shape index: {}]
  %s3 = inlined_call_operand.vmem [shape: bf16[512,256], index: 3, kind: input, shape index: {}]
  %s4 = inlined_call_operand.vmem [shape: f32[1,256], index: 4, kind: input, shape index: {}]
  %s5 = inlined_call_operand.hbm [shape: bf16[128,512], index: 5, kind: input, shape index: {}]
  %s6 = inlined_call_operand.vmem [shape: f32[1,512], index: 6, kind: input, shape index: {}]
  %s7 = inlined_call_operand.hbm [shape: bf16[512,896], index: 7, kind: input, shape index: {}]
  %s8 = inlined_call_operand.vmem [shape: f32[1,896], index: 8, kind: input, shape index: {}]
  %s9 = inlined_call_operand.vmem [shape: f32[16,128], index: 9, kind: input, shape index: {}]
  %s10 = inlined_call_operand.vmem [shape: bf16[16,896], index: 10, kind: output, shape index: {0}]
  %s11 = inlined_call_operand.vmem [shape: f32[16,256], index: 11, kind: output, shape index: {1}]
  %12 = xla_tuple %s10, %s11
  %s13 = sld [smem:[#allocation0]]
  $region70: #{vae_forward.1} parent=0
    _
  %s15 = ssub.s32 1, %s13
  %s16 = scalar_select 0, %s15, %s13
  $region1: #{vae_forward.1} parent=0
    #allocation2 [shape = 'u8[917504]{0}', space=vmem, size = 0xe0000, scoped, tag = 'input window, operand 1, single buffered']
    #allocation3 [shape = 's32[1]{0}', space=sflag, size = 0x4, scoped, tag = 'scoped memory for vae_forward.1']
    #allocation4 [shape = 'u8[131072]{0}', space=vmem, size = 0x20000, scoped, tag = 'input window, operand 5, single buffered']
    #allocation5 [shape = 's32[1]{0}', space=sflag, size = 0x4, scoped, tag = 'scoped memory for vae_forward.1']
    #allocation6 [shape = 'u8[917504]{0}', space=vmem, size = 0xe0000, scoped, tag = 'input window, operand 7, single buffered']
    %17 = vsyncpa [#allocation3], 0
    %18 = vsyncpa [#allocation5], 0
    // Predicated region
    $region2: #{vae_forward.1} parent=1 // pred_check
      _
    $region3: #{vae_forward.1} parent=1 // pred_check_branch
      %20 = sbr.rel (0) target = $region5
    $region4: #{vae_forward.1} parent=1 // pred_region
      _
    $region5: #{vae_forward.1} parent=1 // pred_fallthru
      _
    // Predicated region
    $region6: #{vae_forward.1} parent=1 // pred_check
      _
    $region7: #{vae_forward.1} parent=1 // pred_check_branch
      %22 = sbr.rel (0) target = $region9
    $region8: #{vae_forward.1} parent=1 // pred_region
      %s24 = ssub.s32 28672, 28672
      %25 = vsyncadd [#allocation3], %s24
      %s26 = sshll.u32 [#allocation2], 4
      %s27 = int_to_ptr.vmem [resolvable:$true] %s26
      %32 = dma.hbm_to_vmem [thread:$0]  %s1, 28672, %s27, [#allocation3], 256, 256, 16
    $region9: #{vae_forward.1} parent=1 // pred_fallthru
      _
    // Predicated region
    $region10: #{vae_forward.1} parent=1 // pred_check
      _
    $region11: #{vae_forward.1} parent=1 // pred_check_branch
      %34 = sbr.rel (0) target = $region13
    $region12: #{vae_forward.1} parent=1 // pred_region
      _
    $region13: #{vae_forward.1} parent=1 // pred_fallthru
      _
    // Predicated region
    $region14: #{vae_forward.1} parent=1 // pred_check
      _
    $region15: #{vae_forward.1} parent=1 // pred_check_branch
      %36 = sbr.rel (0) target = $region17
    $region16: #{vae_forward.1} parent=1 // pred_region
      _
    $region17: #{vae_forward.1} parent=1 // pred_fallthru
      _
    // Predicated region
    $region18: #{vae_forward.1} parent=1 // pred_check
      _
    $region19: #{vae_forward.1} parent=1 // pred_check_branch
      %38 = sbr.rel (0) target = $region21
    $region20: #{vae_forward.1} parent=1 // pred_region
      _
    $region21: #{vae_forward.1} parent=1 // pred_fallthru
      _
    // Predicated region
    $region22: #{vae_forward.1} parent=1 // pred_check
      _
    $region23: #{vae_forward.1} parent=1 // pred_check_branch
      %40 = sbr.rel (0) target = $region25
    $region24: #{vae_forward.1} parent=1 // pred_region
      %s42 = ssub.s32 4096, 4096
      %43 = vsyncadd [#allocation5], %s42
      %s44 = sshll.u32 [#allocation4], 4
      %s45 = int_to_ptr.vmem [resolvable:$true] %s44
      %50 = dma.hbm_to_vmem [thread:$0]  %s5, 4096, %s45, [#allocation5], 256, 256, 16
    $region25: #{vae_forward.1} parent=1 // pred_fallthru
      _
    // Predicated region
    $region26: #{vae_forward.1} parent=1 // pred_check
      _
    $region27: #{vae_forward.1} parent=1 // pred_check_branch
      %52 = sbr.rel (0) target = $region29
    $region28: #{vae_forward.1} parent=1 // pred_region
      _
    $region29: #{vae_forward.1} parent=1 // pred_fallthru
      _
    // Predicated region
    $region30: #{vae_forward.1} parent=1 // pred_check
      _
    $region31: #{vae_forward.1} parent=1 // pred_check_branch
      %54 = sbr.rel (0) target = $region33
    $region32: #{vae_forward.1} parent=1 // pred_region
      %s56 = ssub.s32 28672, 28672
      %57 = vsyncadd [#allocation5], %s56
      %s58 = sshll.u32 [#allocation6], 4
      %s59 = int_to_ptr.vmem [resolvable:$true] %s58
      %64 = dma.hbm_to_vmem [thread:$0]  %s7, 28672, %s59, [#allocation5], 448, 448, 28
    $region33: #{vae_forward.1} parent=1 // pred_fallthru
      _
    // Predicated region
    $region34: #{vae_forward.1} parent=1 // pred_check
      _
    $region35: #{vae_forward.1} parent=1 // pred_check_branch
      %66 = sbr.rel (0) target = $region37
    $region36: #{vae_forward.1} parent=1 // pred_region
      _
    $region37: #{vae_forward.1} parent=1 // pred_fallthru
      _
    // Predicated region
    $region38: #{vae_forward.1} parent=1 // pred_check
      _
    $region39: #{vae_forward.1} parent=1 // pred_check_branch
      %68 = sbr.rel (0) target = $region41
    $region40: #{vae_forward.1} parent=1 // pred_region
      _
    $region41: #{vae_forward.1} parent=1 // pred_fallthru
      _
    // Predicated region
    $region42: #{vae_forward.1} parent=1 // pred_check
      _
    $region43: #{vae_forward.1} parent=1 // pred_check_branch
      %70 = sbr.rel (0) target = $region45
    $region44: #{vae_forward.1} parent=1 // pred_region
      %71 = dma.done [#allocation3], 28672
    $region45: #{vae_forward.1} parent=1 // pred_fallthru
      _
    // Predicated region
    $region46: #{vae_forward.1} parent=1 // pred_check
      _
    $region47: #{vae_forward.1} parent=1 // pred_check_branch
      %73 = sbr.rel (0) target = $region49
    $region48: #{vae_forward.1} parent=1 // pred_region
      %74 = dma.done [#allocation5], 4096
    $region49: #{vae_forward.1} parent=1 // pred_fallthru
      _
    // Predicated region
    $region50: #{vae_forward.1} parent=1 // pred_check
      _
    $region51: #{vae_forward.1} parent=1 // pred_check_branch
      %76 = sbr.rel (0) target = $region53
    $region52: #{vae_forward.1} parent=1 // pred_region
      %77 = dma.done [#allocation5], 28672
    $region53: #{vae_forward.1} parent=1 // pred_fallthru
      _
    %v79 = vld [vmem:[%s0] sm:$0xff]
    %v80 = vld [vmem:[%s0 + $0x8] sm:$0xff]
    %v81 = vld [vmem:[%s0 + $0x10] sm:$0xff]
    %v82 = vld [vmem:[%s0 + $0x18] sm:$0xf]
    %v83 = vld [vmem:[%s0 + $0x1c] sm:$0xff]
    %v84 = vld [vmem:[%s0 + $0x24] sm:$0xff]
    %v85 = vld [vmem:[%s0 + $0x2c] sm:$0xff]
    %v86 = vld [vmem:[%s0 + $0x34] sm:$0xf]
    %v87 = vld [vmem:[#allocation2] sm:$0xff]
    %v88 = vld [vmem:[#allocation2 + $0x8] sm:$0xff]
    %v89 = vld [vmem:[#allocation2 + $0x10] sm:$0xff]
    %v90 = vld [vmem:[#allocation2 + $0x18] sm:$0xff]
    %v91 = vld [vmem:[#allocation2 + $0x20] sm:$0xff]
    %v92 = vld [vmem:[#allocation2 + $0x28] sm:$0xff]
    %v93 = vld [vmem:[#allocation2 + $0x30] sm:$0xff]
    %v94 = vld [vmem:[#allocation2 + $0x38] sm:$0xff]
    %v95 = vld [vmem:[#allocation2 + $0x40] sm:$0xff]
    %v96 = vld [vmem:[#allocation2 + $0x48] sm:$0xff]
    %v97 = vld [vmem:[#allocation2 + $0x50] sm:$0xff]
    %v98 = vld [vmem:[#allocation2 + $0x58] sm:$0xff]
    %v99 = vld [vmem:[#allocation2 + $0x60] sm:$0xff]
    %v100 = vld [vmem:[#allocation2 + $0x68] sm:$0xff]
    %v101 = vld [vmem:[#allocation2 + $0x70] sm:$0xff]
    %v102 = vld [vmem:[#allocation2 + $0x78] sm:$0xff]
    %v103 = vld [vmem:[#allocation2 + $0x80] sm:$0xff]
    %v104 = vld [vmem:[#allocation2 + $0x88] sm:$0xff]
    %v105 = vld [vmem:[#allocation2 + $0x90] sm:$0xff]
    %v106 = vld [vmem:[#allocation2 + $0x98] sm:$0xff]
    %v107 = vld [vmem:[#allocation2 + $0xa0] sm:$0xff]
    %v108 = vld [vmem:[#allocation2 + $0xa8] sm:$0xff]
    %v109 = vld [vmem:[#allocation2 + $0xb0] sm:$0xff]
    %v110 = vld [vmem:[#allocation2 + $0xb8] sm:$0xff]
    %v111 = vld [vmem:[#allocation2 + $0xc0] sm:$0xff]
    %v112 = vld [vmem:[#allocation2 + $0xc8] sm:$0xff]
    %v113 = vld [vmem:[#allocation2 + $0xd0] sm:$0xff]
    %v114 = vld [vmem:[#allocation2 + $0xd8] sm:$0xff]
    %v115 = vld [vmem:[#allocation2 + $0xe0] sm:$0xff]
    %v116 = vld [vmem:[#allocation2 + $0xe8] sm:$0xff]
    %v117 = vld [vmem:[#allocation2 + $0xf0] sm:$0xff]
    %v118 = vld [vmem:[#allocation2 + $0xf8] sm:$0xff]
    %v119 = vld [vmem:[#allocation2 + $0x100] sm:$0xff]
    %v120 = vld [vmem:[#allocation2 + $0x108] sm:$0xff]
    %v121 = vld [vmem:[#allocation2 + $0x110] sm:$0xff]
    %v122 = vld [vmem:[#allocation2 + $0x118] sm:$0xff]
    %v123 = vld [vmem:[#allocation2 + $0x120] sm:$0xff]
    %v124 = vld [vmem:[#allocation2 + $0x128] sm:$0xff]
    %v125 = vld [vmem:[#allocation2 + $0x130] sm:$0xff]
    %v126 = vld [vmem:[#allocation2 + $0x138] sm:$0xff]
    %v127 = vld [vmem:[#allocation2 + $0x140] sm:$0xff]
    %v128 = vld [vmem:[#allocation2 + $0x148] sm:$0xff]
    %v129 = vld [vmem:[#allocation2 + $0x150] sm:$0xff]
    %v130 = vld [vmem:[#allocation2 + $0x158] sm:$0xff]
    %v131 = vld [vmem:[#allocation2 + $0x160] sm:$0xff]
    %v132 = vld [vmem:[#allocation2 + $0x168] sm:$0xff]
    %v133 = vld [vmem:[#allocation2 + $0x170] sm:$0xff]
    %v134 = vld [vmem:[#allocation2 + $0x178] sm:$0xff]
    %v135 = vld [vmem:[#allocation2 + $0x180] sm:$0xff]
    %v136 = vld [vmem:[#allocation2 + $0x188] sm:$0xff]
    %v137 = vld [vmem:[#allocation2 + $0x190] sm:$0xff]
    %v138 = vld [vmem:[#allocation2 + $0x198] sm:$0xff]
    %v139 = vld [vmem:[#allocation2 + $0x1a0] sm:$0xff]
    %v140 = vld [vmem:[#allocation2 + $0x1a8] sm:$0xff]
    %v141 = vld [vmem:[#allocation2 + $0x1b0] sm:$0xff]
    %v142 = vld [vmem:[#allocation2 + $0x1b8] sm:$0xff]
    %v143 = vld [vmem:[#allocation2 + $0x1c0] sm:$0xff]
    %v144 = vld [vmem:[#allocation2 + $0x1c8] sm:$0xff]
    %v145 = vld [vmem:[#allocation2 + $0x1d0] sm:$0xff]
    %v146 = vld [vmem:[#allocation2 + $0x1d8] sm:$0xff]
    %v147 = vld [vmem:[#allocation2 + $0x1e0] sm:$0xff]
    %v148 = vld [vmem:[#allocation2 + $0x1e8] sm:$0xff]
    %v149 = vld [vmem:[#allocation2 + $0x1f0] sm:$0xff]
    %v150 = vld [vmem:[#allocation2 + $0x1f8] sm:$0xff]
    %v151 = vld [vmem:[#allocation2 + $0x200] sm:$0xff]
    %v152 = vld [vmem:[#allocation2 + $0x208] sm:$0xff]
    %v153 = vld [vmem:[#allocation2 + $0x210] sm:$0xff]
    %v154 = vld [vmem:[#allocation2 + $0x218] sm:$0xff]
    %v155 = vld [vmem:[#allocation2 + $0x220] sm:$0xff]
    %v156 = vld [vmem:[#allocation2 + $0x228] sm:$0xff]
    %v157 = vld [vmem:[#allocation2 + $0x230] sm:$0xff]
    %v158 = vld [vmem:[#allocation2 + $0x238] sm:$0xff]
    %v159 = vld [vmem:[#allocation2 + $0x240] sm:$0xff]
    %v160 = vld [vmem:[#allocation2 + $0x248] sm:$0xff]
    %v161 = vld [vmem:[#allocation2 + $0x250] sm:$0xff]
    %v162 = vld [vmem:[#allocation2 + $0x258] sm:$0xff]
    %v163 = vld [vmem:[#allocation2 + $0x260] sm:$0xff]
    %v164 = vld [vmem:[#allocation2 + $0x268] sm:$0xff]
    %v165 = vld [vmem:[#allocation2 + $0x270] sm:$0xff]
    %v166 = vld [vmem:[#allocation2 + $0x278] sm:$0xff]
    %v167 = vld [vmem:[#allocation2 + $0x280] sm:$0xff]
    %v168 = vld [vmem:[#allocation2 + $0x288] sm:$0xff]
    %v169 = vld [vmem:[#allocation2 + $0x290] sm:$0xff]
    %v170 = vld [vmem:[#allocation2 + $0x298] sm:$0xff]
    %v171 = vld [vmem:[#allocation2 + $0x2a0] sm:$0xff]
    %v172 = vld [vmem:[#allocation2 + $0x2a8] sm:$0xff]
    %v173 = vld [vmem:[#allocation2 + $0x2b0] sm:$0xff]
    %v174 = vld [vmem:[#allocation2 + $0x2b8] sm:$0xff]
    %v175 = vld [vmem:[#allocation2 + $0x2c0] sm:$0xff]
    %v176 = vld [vmem:[#allocation2 + $0x2c8] sm:$0xff]
    %v177 = vld [vmem:[#allocation2 + $0x2d0] sm:$0xff]
    %v178 = vld [vmem:[#allocation2 + $0x2d8] sm:$0xff]
    %v179 = vld [vmem:[#allocation2 + $0x2e0] sm:$0xff]
    %v180 = vld [vmem:[#allocation2 + $0x2e8] sm:$0xff]
    %v181 = vld [vmem:[#allocation2 + $0x2f0] sm:$0xff]
    %v182 = vld [vmem:[#allocation2 + $0x2f8] sm:$0xff]
    %v183 = vld [vmem:[#allocation2 + $0x300] sm:$0xff]
    %v184 = vld [vmem:[#allocation2 + $0x308] sm:$0xff]
    %v185 = vld [vmem:[#allocation2 + $0x310] sm:$0xff]
    %v186 = vld [vmem:[#allocation2 + $0x318] sm:$0xff]
    %v187 = vld [vmem:[#allocation2 + $0x320] sm:$0xff]
    %v188 = vld [vmem:[#allocation2 + $0x328] sm:$0xff]
    %v189 = vld [vmem:[#allocation2 + $0x330] sm:$0xff]
    %v190 = vld [vmem:[#allocation2 + $0x338] sm:$0xff]
    %v191 = vld [vmem:[#allocation2 + $0x340] sm:$0xff]
    %v192 = vld [vmem:[#allocation2 + $0x348] sm:$0xff]
    %v193 = vld [vmem:[#allocation2 + $0x350] sm:$0xff]
    %v194 = vld [vmem:[#allocation2 + $0x358] sm:$0xff]
    %v195 = vld [vmem:[#allocation2 + $0x360] sm:$0xff]
    %v196 = vld [vmem:[#allocation2 + $0x368] sm:$0xff]
    %v197 = vld [vmem:[#allocation2 + $0x370] sm:$0xff]
    %v198 = vld [vmem:[#allocation2 + $0x378] sm:$0xff]
    %v199 = vld [vmem:[#allocation2 + $0x380] sm:$0xff]
    %v200 = vld [vmem:[#allocation2 + $0x388] sm:$0xff]
    %v201 = vld [vmem:[#allocation2 + $0x390] sm:$0xff]
    %v202 = vld [vmem:[#allocation2 + $0x398] sm:$0xff]
    %v203 = vld [vmem:[#allocation2 + $0x3a0] sm:$0xff]
    %v204 = vld [vmem:[#allocation2 + $0x3a8] sm:$0xff]
    %v205 = vld [vmem:[#allocation2 + $0x3b0] sm:$0xff]
    %v206 = vld [vmem:[#allocation2 + $0x3b8] sm:$0xff]
    %v207 = vld [vmem:[#allocation2 + $0x3c0] sm:$0xff]
    %v208 = vld [vmem:[#allocation2 + $0x3c8] sm:$0xff]
    %v209 = vld [vmem:[#allocation2 + $0x3d0] sm:$0xff]
    %v210 = vld [vmem:[#allocation2 + $0x3d8] sm:$0xff]
    %v211 = vld [vmem:[#allocation2 + $0x3e0] sm:$0xff]
    %v212 = vld [vmem:[#allocation2 + $0x3e8] sm:$0xff]
    %v213 = vld [vmem:[#allocation2 + $0x3f0] sm:$0xff]
    %v214 = vld [vmem:[#allocation2 + $0x3f8] sm:$0xff]
    %v215 = vld [vmem:[#allocation2 + $0x400] sm:$0xff]
    %v216 = vld [vmem:[#allocation2 + $0x408] sm:$0xff]
    %v217 = vld [vmem:[#allocation2 + $0x410] sm:$0xff]
    %v218 = vld [vmem:[#allocation2 + $0x418] sm:$0xff]
    %v219 = vld [vmem:[#allocation2 + $0x420] sm:$0xff]
    %v220 = vld [vmem:[#allocation2 + $0x428] sm:$0xff]
    %v221 = vld [vmem:[#allocation2 + $0x430] sm:$0xff]
    %v222 = vld [vmem:[#allocation2 + $0x438] sm:$0xff]
    %v223 = vld [vmem:[#allocation2 + $0x440] sm:$0xff]
    %v224 = vld [vmem:[#allocation2 + $0x448] sm:$0xff]
    %v225 = vld [vmem:[#allocation2 + $0x450] sm:$0xff]
    %v226 = vld [vmem:[#allocation2 + $0x458] sm:$0xff]
    %v227 = vld [vmem:[#allocation2 + $0x460] sm:$0xff]
    %v228 = vld [vmem:[#allocation2 + $0x468] sm:$0xff]
    %v229 = vld [vmem:[#allocation2 + $0x470] sm:$0xff]
    %v230 = vld [vmem:[#allocation2 + $0x478] sm:$0xff]
    %v231 = vld [vmem:[#allocation2 + $0x480] sm:$0xff]
    %v232 = vld [vmem:[#allocation2 + $0x488] sm:$0xff]
    %v233 = vld [vmem:[#allocation2 + $0x490] sm:$0xff]
    %v234 = vld [vmem:[#allocation2 + $0x498] sm:$0xff]
    %v235 = vld [vmem:[#allocation2 + $0x4a0] sm:$0xff]
    %v236 = vld [vmem:[#allocation2 + $0x4a8] sm:$0xff]
    %v237 = vld [vmem:[#allocation2 + $0x4b0] sm:$0xff]
    %v238 = vld [vmem:[#allocation2 + $0x4b8] sm:$0xff]
    %v239 = vld [vmem:[#allocation2 + $0x4c0] sm:$0xff]
    %v240 = vld [vmem:[#allocation2 + $0x4c8] sm:$0xff]
    %v241 = vld [vmem:[#allocation2 + $0x4d0] sm:$0xff]
    %v242 = vld [vmem:[#allocation2 + $0x4d8] sm:$0xff]
    %v243 = vld [vmem:[#allocation2 + $0x4e0] sm:$0xff]
    %v244 = vld [vmem:[#allocation2 + $0x4e8] sm:$0xff]
    %v245 = vld [vmem:[#allocation2 + $0x4f0] sm:$0xff]
    %v246 = vld [vmem:[#allocation2 + $0x4f8] sm:$0xff]
    %v247 = vld [vmem:[#allocation2 + $0x500] sm:$0xff]
    %v248 = vld [vmem:[#allocation2 + $0x508] sm:$0xff]
    %v249 = vld [vmem:[#allocation2 + $0x510] sm:$0xff]
    %v250 = vld [vmem:[#allocation2 + $0x518] sm:$0xff]
    %v251 = vld [vmem:[#allocation2 + $0x520] sm:$0xff]
    %v252 = vld [vmem:[#allocation2 + $0x528] sm:$0xff]
    %v253 = vld [vmem:[#allocation2 + $0x530] sm:$0xff]
    %v254 = vld [vmem:[#allocation2 + $0x538] sm:$0xff]
    %v255 = vld [vmem:[#allocation2 + $0x540] sm:$0xff]
    %v256 = vld [vmem:[#allocation2 + $0x548] sm:$0xff]
    %v257 = vld [vmem:[#allocation2 + $0x550] sm:$0xff]
    %v258 = vld [vmem:[#allocation2 + $0x558] sm:$0xff]
    %v259 = vld [vmem:[#allocation2 + $0x560] sm:$0xff]
    %v260 = vld [vmem:[#allocation2 + $0x568] sm:$0xff]
    %v261 = vld [vmem:[#allocation2 + $0x570] sm:$0xff]
    %v262 = vld [vmem:[#allocation2 + $0x578] sm:$0xff]
    %v263 = vld [vmem:[#allocation2 + $0x580] sm:$0xff]
    %v264 = vld [vmem:[#allocation2 + $0x588] sm:$0xff]
    %v265 = vld [vmem:[#allocation2 + $0x590] sm:$0xff]
    %v266 = vld [vmem:[#allocation2 + $0x598] sm:$0xff]
    %v267 = vld [vmem:[#allocation2 + $0x5a0] sm:$0xff]
    %v268 = vld [vmem:[#allocation2 + $0x5a8] sm:$0xff]
    %v269 = vld [vmem:[#allocation2 + $0x5b0] sm:$0xff]
    %v270 = vld [vmem:[#allocation2 + $0x5b8] sm:$0xff]
    %v271 = vld [vmem:[#allocation2 + $0x5c0] sm:$0xff]
    %v272 = vld [vmem:[#allocation2 + $0x5c8] sm:$0xff]
    %v273 = vld [vmem:[#allocation2 + $0x5d0] sm:$0xff]
    %v274 = vld [vmem:[#allocation2 + $0x5d8] sm:$0xff]
    %v275 = vld [vmem:[#allocation2 + $0x5e0] sm:$0xff]
    %v276 = vld [vmem:[#allocation2 + $0x5e8] sm:$0xff]
    %v277 = vld [vmem:[#allocation2 + $0x5f0] sm:$0xff]
    %v278 = vld [vmem:[#allocation2 + $0x5f8] sm:$0xff]
    %v279 = vld [vmem:[#allocation2 + $0x600] sm:$0xff]
    %v280 = vld [vmem:[#allocation2 + $0x608] sm:$0xff]
    %v281 = vld [vmem:[#allocation2 + $0x610] sm:$0xff]
    %v282 = vld [vmem:[#allocation2 + $0x618] sm:$0xff]
    %v283 = vld [vmem:[#allocation2 + $0x620] sm:$0xff]
    %v284 = vld [vmem:[#allocation2 + $0x628] sm:$0xff]
    %v285 = vld [vmem:[#allocation2 + $0x630] sm:$0xff]
    %v286 = vld [vmem:[#allocation2 + $0x638] sm:$0xff]
    %v287 = vld [vmem:[#allocation2 + $0x640] sm:$0xff]
    %v288 = vld [vmem:[#allocation2 + $0x648] sm:$0xff]
    %v289 = vld [vmem:[#allocation2 + $0x650] sm:$0xff]
    %v290 = vld [vmem:[#allocation2 + $0x658] sm:$0xff]
    %v291 = vld [vmem:[#allocation2 + $0x660] sm:$0xff]
    %v292 = vld [vmem:[#allocation2 + $0x668] sm:$0xff]
    %v293 = vld [vmem:[#allocation2 + $0x670] sm:$0xff]
    %v294 = vld [vmem:[#allocation2 + $0x678] sm:$0xff]
    %v295 = vld [vmem:[#allocation2 + $0x680] sm:$0xff]
    %v296 = vld [vmem:[#allocation2 + $0x688] sm:$0xff]
    %v297 = vld [vmem:[#allocation2 + $0x690] sm:$0xff]
    %v298 = vld [vmem:[#allocation2 + $0x698] sm:$0xff]
    %v299 = vld [vmem:[#allocation2 + $0x6a0] sm:$0xff]
    %v300 = vld [vmem:[#allocation2 + $0x6a8] sm:$0xff]
    %v301 = vld [vmem:[#allocation2 + $0x6b0] sm:$0xff]
    %v302 = vld [vmem:[#allocation2 + $0x6b8] sm:$0xff]
    %v303 = vld [vmem:[#allocation2 + $0x6c0] sm:$0xff]
    %v304 = vld [vmem:[#allocation2 + $0x6c8] sm:$0xff]
    %v305 = vld [vmem:[#allocation2 + $0x6d0] sm:$0xff]
    %v306 = vld [vmem:[#allocation2 + $0x6d8] sm:$0xff]
    %v307 = vld [vmem:[#allocation2 + $0x6e0] sm:$0xff]
    %v308 = vld [vmem:[#allocation2 + $0x6e8] sm:$0xff]
    %v309 = vld [vmem:[#allocation2 + $0x6f0] sm:$0xff]
    %v310 = vld [vmem:[#allocation2 + $0x6f8] sm:$0xff]
    %v311 = vld [vmem:[%s2] sm:$0xf]
    %v313 = vlaneseq
    %v314 = vshrl.u32 %v313, 7
    %v315 = vsub.s32 0, %v314
    %v316 = vrot.slane %v311, %v315
    %v317 = vlaneseq
    %v318 = vshrl.u32 %v317, 7
    %v319 = vsub.s32 1, %v318
    %v320 = vrot.slane %v311, %v319
    %v321 = vlaneseq
    %v322 = vshrl.u32 %v321, 7
    %v323 = vsub.s32 2, %v322
    %v324 = vrot.slane %v311, %v323
    %v325 = vlaneseq
    %v326 = vshrl.u32 %v325, 7
    %v327 = vsub.s32 3, %v326
    %v328 = vrot.slane %v311, %v327
    %v341 = vunpack.c.l.b16 %v79
    %v342 = vunpack.c.h.b16 %v79
    %v343 = vunpack.c.l.b16 %v80
    %v344 = vunpack.c.h.b16 %v80
    %v345 = vunpack.c.l.b16 %v81
    %v346 = vunpack.c.h.b16 %v81
    %v347 = vunpack.c.l.b16 %v82
    %v348 = vunpack.c.l.b16 %v83
    %v349 = vunpack.c.h.b16 %v83
    %v350 = vunpack.c.l.b16 %v84
    %v351 = vunpack.c.h.b16 %v84
    %v352 = vunpack.c.l.b16 %v85
    %v353 = vunpack.c.h.b16 %v85
    %v354 = vunpack.c.l.b16 %v86
    %v355 = vpack.c.b16 %v348, %v341
    %v356 = vpack.c.b16 %v349, %v342
    %v357 = vpack.c.b16 %v350, %v343
    %v358 = vpack.c.b16 %v351, %v344
    %v359 = vpack.c.b16 %v352, %v345
    %v360 = vpack.c.b16 %v353, %v346
    %v361 = vpack.c.b16 %v354, %v347
    %v593 = vunpack.c.l.b16 %v87
    %v594 = vunpack.c.h.b16 %v87
    %v595 = vunpack.c.l.b16 %v88
    %v596 = vunpack.c.h.b16 %v88
    %v597 = vunpack.c.l.b16 %v89
    %v598 = vunpack.c.h.b16 %v89
    %v599 = vunpack.c.l.b16 %v90
    %v600 = vunpack.c.h.b16 %v90
    %v601 = vunpack.c.l.b16 %v91
    %v602 = vunpack.c.h.b16 %v91
    %v603 = vunpack.c.l.b16 %v92
    %v604 = vunpack.c.h.b16 %v92
    %v605 = vunpack.c.l.b16 %v93
    %v606 = vunpack.c.h.b16 %v93
    %v607 = vunpack.c.l.b16 %v94
    %v608 = vunpack.c.h.b16 %v94
    %v609 = vunpack.c.l.b16 %v95
    %v610 = vunpack.c.h.b16 %v95
    %v611 = vunpack.c.l.b16 %v96
    %v612 = vunpack.c.h.b16 %v96
    %v613 = vunpack.c.l.b16 %v97
    %v614 = vunpack.c.h.b16 %v97
    %v615 = vunpack.c.l.b16 %v98
    %v616 = vunpack.c.h.b16 %v98
    %v617 = vunpack.c.l.b16 %v99
    %v618 = vunpack.c.h.b16 %v99
    %v619 = vunpack.c.l.b16 %v100
    %v620 = vunpack.c.h.b16 %v100
    %v621 = vunpack.c.l.b16 %v101
    %v622 = vunpack.c.h.b16 %v101
    %v623 = vunpack.c.l.b16 %v102
    %v624 = vunpack.c.h.b16 %v102
    %v625 = vunpack.c.l.b16 %v103
    %v626 = vunpack.c.h.b16 %v103
    %v627 = vunpack.c.l.b16 %v104
    %v628 = vunpack.c.h.b16 %v104
    %v629 = vunpack.c.l.b16 %v105
    %v630 = vunpack.c.h.b16 %v105
    %v631 = vunpack.c.l.b16 %v106
    %v632 = vunpack.c.h.b16 %v106
    %v633 = vunpack.c.l.b16 %v107
    %v634 = vunpack.c.h.b16 %v107
    %v635 = vunpack.c.l.b16 %v108
    %v636 = vunpack.c.h.b16 %v108
    %v637 = vunpack.c.l.b16 %v109
    %v638 = vunpack.c.h.b16 %v109
    %v639 = vunpack.c.l.b16 %v110
    %v640 = vunpack.c.h.b16 %v110
    %v641 = vunpack.c.l.b16 %v111
    %v642 = vunpack.c.h.b16 %v111
    %v643 = vunpack.c.l.b16 %v112
    %v644 = vunpack.c.h.b16 %v112
    %v645 = vunpack.c.l.b16 %v113
    %v646 = vunpack.c.h.b16 %v113
    %v647 = vunpack.c.l.b16 %v114
    %v648 = vunpack.c.h.b16 %v114
    %v649 = vunpack.c.l.b16 %v115
    %v650 = vunpack.c.h.b16 %v115
    %v651 = vunpack.c.l.b16 %v116
    %v652 = vunpack.c.h.b16 %v116
    %v653 = vunpack.c.l.b16 %v117
    %v654 = vunpack.c.h.b16 %v117
    %v655 = vunpack.c.l.b16 %v118
    %v656 = vunpack.c.h.b16 %v118
    %v657 = vunpack.c.l.b16 %v119
    %v658 = vunpack.c.h.b16 %v119
    %v659 = vunpack.c.l.b16 %v120
    %v660 = vunpack.c.h.b16 %v120
    %v661 = vunpack.c.l.b16 %v121
    %v662 = vunpack.c.h.b16 %v121
    %v663 = vunpack.c.l.b16 %v122
    %v664 = vunpack.c.h.b16 %v122
    %v665 = vunpack.c.l.b16 %v123
    %v666 = vunpack.c.h.b16 %v123
    %v667 = vunpack.c.l.b16 %v124
    %v668 = vunpack.c.h.b16 %v124
    %v669 = vunpack.c.l.b16 %v125
    %v670 = vunpack.c.h.b16 %v125
    %v671 = vunpack.c.l.b16 %v126
    %v672 = vunpack.c.h.b16 %v126
    %v673 = vunpack.c.l.b16 %v127
    %v674 = vunpack.c.h.b16 %v127
    %v675 = vunpack.c.l.b16 %v128
    %v676 = vunpack.c.h.b16 %v128
    %v677 = vunpack.c.l.b16 %v129
    %v678 = vunpack.c.h.b16 %v129
    %v679 = vunpack.c.l.b16 %v130
    %v680 = vunpack.c.h.b16 %v130
    %v681 = vunpack.c.l.b16 %v131
    %v682 = vunpack.c.h.b16 %v131
    %v683 = vunpack.c.l.b16 %v132
    %v684 = vunpack.c.h.b16 %v132
    %v685 = vunpack.c.l.b16 %v133
    %v686 = vunpack.c.h.b16 %v133
    %v687 = vunpack.c.l.b16 %v134
    %v688 = vunpack.c.h.b16 %v134
    %v689 = vunpack.c.l.b16 %v135
    %v690 = vunpack.c.h.b16 %v135
    %v691 = vunpack.c.l.b16 %v136
    %v692 = vunpack.c.h.b16 %v136
    %v693 = vunpack.c.l.b16 %v137
    %v694 = vunpack.c.h.b16 %v137
    %v695 = vunpack.c.l.b16 %v138
    %v696 = vunpack.c.h.b16 %v138
    %v697 = vunpack.c.l.b16 %v139
    %v698 = vunpack.c.h.b16 %v139
    %v699 = vunpack.c.l.b16 %v140
    %v700 = vunpack.c.h.b16 %v140
    %v701 = vunpack.c.l.b16 %v141
    %v702 = vunpack.c.h.b16 %v141
    %v703 = vunpack.c.l.b16 %v142
    %v704 = vunpack.c.h.b16 %v142
    %v705 = vunpack.c.l.b16 %v143
    %v706 = vunpack.c.h.b16 %v143
    %v707 = vunpack.c.l.b16 %v144
    %v708 = vunpack.c.h.b16 %v144
    %v709 = vunpack.c.l.b16 %v145
    %v710 = vunpack.c.h.b16 %v145
    %v711 = vunpack.c.l.b16 %v146
    %v712 = vunpack.c.h.b16 %v146
    %v713 = vunpack.c.l.b16 %v147
    %v714 = vunpack.c.h.b16 %v147
    %v715 = vunpack.c.l.b16 %v148
    %v716 = vunpack.c.h.b16 %v148
    %v717 = vunpack.c.l.b16 %v149
    %v718 = vunpack.c.h.b16 %v149
    %v719 = vunpack.c.l.b16 %v150
    %v720 = vunpack.c.h.b16 %v150
    %v721 = vunpack.c.l.b16 %v151
    %v722 = vunpack.c.h.b16 %v151
    %v723 = vunpack.c.l.b16 %v152
    %v724 = vunpack.c.h.b16 %v152
    %v725 = vunpack.c.l.b16 %v153
    %v726 = vunpack.c.h.b16 %v153
    %v727 = vunpack.c.l.b16 %v154
    %v728 = vunpack.c.h.b16 %v154
    %v729 = vunpack.c.l.b16 %v155
    %v730 = vunpack.c.h.b16 %v155
    %v731 = vunpack.c.l.b16 %v156
    %v732 = vunpack.c.h.b16 %v156
    %v733 = vunpack.c.l.b16 %v157
    %v734 = vunpack.c.h.b16 %v157
    %v735 = vunpack.c.l.b16 %v158
    %v736 = vunpack.c.h.b16 %v158
    %v737 = vunpack.c.l.b16 %v159
    %v738 = vunpack.c.h.b16 %v159
    %v739 = vunpack.c.l.b16 %v160
    %v740 = vunpack.c.h.b16 %v160
    %v741 = vunpack.c.l.b16 %v161
    %v742 = vunpack.c.h.b16 %v161
    %v743 = vunpack.c.l.b16 %v162
    %v744 = vunpack.c.h.b16 %v162
    %v745 = vunpack.c.l.b16 %v163
    %v746 = vunpack.c.h.b16 %v163
    %v747 = vunpack.c.l.b16 %v164
    %v748 = vunpack.c.h.b16 %v164
    %v749 = vunpack.c.l.b16 %v165
    %v750 = vunpack.c.h.b16 %v165
    %v751 = vunpack.c.l.b16 %v166
    %v752 = vunpack.c.h.b16 %v166
    %v753 = vunpack.c.l.b16 %v167
    %v754 = vunpack.c.h.b16 %v167
    %v755 = vunpack.c.l.b16 %v168
    %v756 = vunpack.c.h.b16 %v168
    %v757 = vunpack.c.l.b16 %v169
    %v758 = vunpack.c.h.b16 %v169
    %v759 = vunpack.c.l.b16 %v170
    %v760 = vunpack.c.h.b16 %v170
    %v761 = vunpack.c.l.b16 %v171
    %v762 = vunpack.c.h.b16 %v171
    %v763 = vunpack.c.l.b16 %v172
    %v764 = vunpack.c.h.b16 %v172
    %v765 = vunpack.c.l.b16 %v173
    %v766 = vunpack.c.h.b16 %v173
    %v767 = vunpack.c.l.b16 %v174
    %v768 = vunpack.c.h.b16 %v174
    %v769 = vunpack.c.l.b16 %v175
    %v770 = vunpack.c.h.b16 %v175
    %v771 = vunpack.c.l.b16 %v176
    %v772 = vunpack.c.h.b16 %v176
    %v773 = vunpack.c.l.b16 %v177
    %v774 = vunpack.c.h.b16 %v177
    %v775 = vunpack.c.l.b16 %v178
    %v776 = vunpack.c.h.b16 %v178
    %v777 = vunpack.c.l.b16 %v179
    %v778 = vunpack.c.h.b16 %v179
    %v779 = vunpack.c.l.b16 %v180
    %v780 = vunpack.c.h.b16 %v180
    %v781 = vunpack.c.l.b16 %v181
    %v782 = vunpack.c.h.b16 %v181
    %v783 = vunpack.c.l.b16 %v182
    %v784 = vunpack.c.h.b16 %v182
    %v785 = vunpack.c.l.b16 %v183
    %v786 = vunpack.c.h.b16 %v183
    %v787 = vunpack.c.l.b16 %v184
    %v788 = vunpack.c.h.b16 %v184
    %v789 = vunpack.c.l.b16 %v185
    %v790 = vunpack.c.h.b16 %v185
    %v791 = vunpack.c.l.b16 %v186
    %v792 = vunpack.c.h.b16 %v186
    %v793 = vunpack.c.l.b16 %v187
    %v794 = vunpack.c.h.b16 %v187
    %v795 = vunpack.c.l.b16 %v188
    %v796 = vunpack.c.h.b16 %v188
    %v797 = vunpack.c.l.b16 %v189
    %v798 = vunpack.c.h.b16 %v189
    %v799 = vunpack.c.l.b16 %v190
    %v800 = vunpack.c.h.b16 %v190
    %v801 = vunpack.c.l.b16 %v191
    %v802 = vunpack.c.h.b16 %v191
    %v803 = vunpack.c.l.b16 %v192
    %v804 = vunpack.c.h.b16 %v192
    %v805 = vunpack.c.l.b16 %v193
    %v806 = vunpack.c.h.b16 %v193
    %v807 = vunpack.c.l.b16 %v194
    %v808 = vunpack.c.h.b16 %v194
    %v809 = vunpack.c.l.b16 %v195
    %v810 = vunpack.c.h.b16 %v195
    %v811 = vunpack.c.l.b16 %v196
    %v812 = vunpack.c.h.b16 %v196
    %v813 = vunpack.c.l.b16 %v197
    %v814 = vunpack.c.h.b16 %v197
    %v815 = vunpack.c.l.b16 %v198
    %v816 = vunpack.c.h.b16 %v198
    %v817 = vunpack.c.l.b16 %v199
    %v818 = vunpack.c.h.b16 %v199
    %v819 = vunpack.c.l.b16 %v200
    %v820 = vunpack.c.h.b16 %v200
    %v821 = vunpack.c.l.b16 %v201
    %v822 = vunpack.c.h.b16 %v201
    %v823 = vunpack.c.l.b16 %v202
    %v824 = vunpack.c.h.b16 %v202
    %v825 = vunpack.c.l.b16 %v203
    %v826 = vunpack.c.h.b16 %v203
    %v827 = vunpack.c.l.b16 %v204
    %v828 = vunpack.c.h.b16 %v204
    %v829 = vunpack.c.l.b16 %v205
    %v830 = vunpack.c.h.b16 %v205
    %v831 = vunpack.c.l.b16 %v206
    %v832 = vunpack.c.h.b16 %v206
    %v833 = vunpack.c.l.b16 %v207
    %v834 = vunpack.c.h.b16 %v207
    %v835 = vunpack.c.l.b16 %v208
    %v836 = vunpack.c.h.b16 %v208
    %v837 = vunpack.c.l.b16 %v209
    %v838 = vunpack.c.h.b16 %v209
    %v839 = vunpack.c.l.b16 %v210
    %v840 = vunpack.c.h.b16 %v210
    %v841 = vunpack.c.l.b16 %v211
    %v842 = vunpack.c.h.b16 %v211
    %v843 = vunpack.c.l.b16 %v212
    %v844 = vunpack.c.h.b16 %v212
    %v845 = vunpack.c.l.b16 %v213
    %v846 = vunpack.c.h.b16 %v213
    %v847 = vunpack.c.l.b16 %v214
    %v848 = vunpack.c.h.b16 %v214
    %v849 = vunpack.c.l.b16 %v215
    %v850 = vunpack.c.h.b16 %v215
    %v851 = vunpack.c.l.b16 %v216
    %v852 = vunpack.c.h.b16 %v216
    %v853 = vunpack.c.l.b16 %v217
    %v854 = vunpack.c.h.b16 %v217
    %v855 = vunpack.c.l.b16 %v218
    %v856 = vunpack.c.h.b16 %v218
    %v857 = vunpack.c.l.b16 %v219
    %v858 = vunpack.c.h.b16 %v219
    %v859 = vunpack.c.l.b16 %v220
    %v860 = vunpack.c.h.b16 %v220
    %v861 = vunpack.c.l.b16 %v221
    %v862 = vunpack.c.h.b16 %v221
    %v863 = vunpack.c.l.b16 %v222
    %v864 = vunpack.c.h.b16 %v222
    %v865 = vunpack.c.l.b16 %v223
    %v866 = vunpack.c.h.b16 %v223
    %v867 = vunpack.c.l.b16 %v224
    %v868 = vunpack.c.h.b16 %v224
    %v869 = vunpack.c.l.b16 %v225
    %v870 = vunpack.c.h.b16 %v225
    %v871 = vunpack.c.l.b16 %v226
    %v872 = vunpack.c.h.b16 %v226
    %v873 = vunpack.c.l.b16 %v227
    %v874 = vunpack.c.h.b16 %v227
    %v875 = vunpack.c.l.b16 %v228
    %v876 = vunpack.c.h.b16 %v228
    %v877 = vunpack.c.l.b16 %v229
    %v878 = vunpack.c.h.b16 %v229
    %v879 = vunpack.c.l.b16 %v230
    %v880 = vunpack.c.h.b16 %v230
    %v881 = vunpack.c.l.b16 %v231
    %v882 = vunpack.c.h.b16 %v231
    %v883 = vunpack.c.l.b16 %v232
    %v884 = vunpack.c.h.b16 %v232
    %v885 = vunpack.c.l.b16 %v233
    %v886 = vunpack.c.h.b16 %v233
    %v887 = vunpack.c.l.b16 %v234
    %v888 = vunpack.c.h.b16 %v234
    %v889 = vunpack.c.l.b16 %v235
    %v890 = vunpack.c.h.b16 %v235
    %v891 = vunpack.c.l.b16 %v236
    %v892 = vunpack.c.h.b16 %v236
    %v893 = vunpack.c.l.b16 %v237
    %v894 = vunpack.c.h.b16 %v237
    %v895 = vunpack.c.l.b16 %v238
    %v896 = vunpack.c.h.b16 %v238
    %v897 = vunpack.c.l.b16 %v239
    %v898 = vunpack.c.h.b16 %v239
    %v899 = vunpack.c.l.b16 %v240
    %v900 = vunpack.c.h.b16 %v240
    %v901 = vunpack.c.l.b16 %v241
    %v902 = vunpack.c.h.b16 %v241
    %v903 = vunpack.c.l.b16 %v242
    %v904 = vunpack.c.h.b16 %v242
    %v905 = vunpack.c.l.b16 %v243
    %v906 = vunpack.c.h.b16 %v243
    %v907 = vunpack.c.l.b16 %v244
    %v908 = vunpack.c.h.b16 %v244
    %v909 = vunpack.c.l.b16 %v245
    %v910 = vunpack.c.h.b16 %v245
    %v911 = vunpack.c.l.b16 %v246
    %v912 = vunpack.c.h.b16 %v246
    %v913 = vunpack.c.l.b16 %v247
    %v914 = vunpack.c.h.b16 %v247
    %v915 = vunpack.c.l.b16 %v248
    %v916 = vunpack.c.h.b16 %v248
    %v917 = vunpack.c.l.b16 %v249
    %v918 = vunpack.c.h.b16 %v249
    %v919 = vunpack.c.l.b16 %v250
    %v920 = vunpack.c.h.b16 %v250
    %v921 = vunpack.c.l.b16 %v251
    %v922 = vunpack.c.h.b16 %v251
    %v923 = vunpack.c.l.b16 %v252
    %v924 = vunpack.c.h.b16 %v252
    %v925 = vunpack.c.l.b16 %v253
    %v926 = vunpack.c.h.b16 %v253
    %v927 = vunpack.c.l.b16 %v254
    %v928 = vunpack.c.h.b16 %v254
    %v929 = vunpack.c.l.b16 %v255
    %v930 = vunpack.c.h.b16 %v255
    %v931 = vunpack.c.l.b16 %v256
    %v932 = vunpack.c.h.b16 %v256
    %v933 = vunpack.c.l.b16 %v257
    %v934 = vunpack.c.h.b16 %v257
    %v935 = vunpack.c.l.b16 %v258
    %v936 = vunpack.c.h.b16 %v258
    %v937 = vunpack.c.l.b16 %v259
    %v938 = vunpack.c.h.b16 %v259
    %v939 = vunpack.c.l.b16 %v260
    %v940 = vunpack.c.h.b16 %v260
    %v941 = vunpack.c.l.b16 %v261
    %v942 = vunpack.c.h.b16 %v261
    %v943 = vunpack.c.l.b16 %v262
    %v944 = vunpack.c.h.b16 %v262
    %v945 = vunpack.c.l.b16 %v263
    %v946 = vunpack.c.h.b16 %v263
    %v947 = vunpack.c.l.b16 %v264
    %v948 = vunpack.c.h.b16 %v264
    %v949 = vunpack.c.l.b16 %v265
    %v950 = vunpack.c.h.b16 %v265
    %v951 = vunpack.c.l.b16 %v266
    %v952 = vunpack.c.h.b16 %v266
    %v953 = vunpack.c.l.b16 %v267
    %v954 = vunpack.c.h.b16 %v267
    %v955 = vunpack.c.l.b16 %v268
    %v956 = vunpack.c.h.b16 %v268
    %v957 = vunpack.c.l.b16 %v269
    %v958 = vunpack.c.h.b16 %v269
    %v959 = vunpack.c.l.b16 %v270
    %v960 = vunpack.c.h.b16 %v270
    %v961 = vunpack.c.l.b16 %v271
    %v962 = vunpack.c.h.b16 %v271
    %v963 = vunpack.c.l.b16 %v272
    %v964 = vunpack.c.h.b16 %v272
    %v965 = vunpack.c.l.b16 %v273
    %v966 = vunpack.c.h.b16 %v273
    %v967 = vunpack.c.l.b16 %v274
    %v968 = vunpack.c.h.b16 %v274
    %v969 = vunpack.c.l.b16 %v275
    %v970 = vunpack.c.h.b16 %v275
    %v971 = vunpack.c.l.b16 %v276
    %v972 = vunpack.c.h.b16 %v276
    %v973 = vunpack.c.l.b16 %v277
    %v974 = vunpack.c.h.b16 %v277
    %v975 = vunpack.c.l.b16 %v278
    %v976 = vunpack.c.h.b16 %v278
    %v977 = vunpack.c.l.b16 %v279
    %v978 = vunpack.c.h.b16 %v279
    %v979 = vunpack.c.l.b16 %v280
    %v980 = vunpack.c.h.b16 %v280
    %v981 = vunpack.c.l.b16 %v281
    %v982 = vunpack.c.h.b16 %v281
    %v983 = vunpack.c.l.b16 %v282
    %v984 = vunpack.c.h.b16 %v282
    %v985 = vunpack.c.l.b16 %v283
    %v986 = vunpack.c.h.b16 %v283
    %v987 = vunpack.c.l.b16 %v284
    %v988 = vunpack.c.h.b16 %v284
    %v989 = vunpack.c.l.b16 %v285
    %v990 = vunpack.c.h.b16 %v285
    %v991 = vunpack.c.l.b16 %v286
    %v992 = vunpack.c.h.b16 %v286
    %v993 = vunpack.c.l.b16 %v287
    %v994 = vunpack.c.h.b16 %v287
    %v995 = vunpack.c.l.b16 %v288
    %v996 = vunpack.c.h.b16 %v288
    %v997 = vunpack.c.l.b16 %v289
    %v998 = vunpack.c.h.b16 %v289
    %v999 = vunpack.c.l.b16 %v290
    %v1000 = vunpack.c.h.b16 %v290
    %v1001 = vunpack.c.l.b16 %v291
    %v1002 = vunpack.c.h.b16 %v291
    %v1003 = vunpack.c.l.b16 %v292
    %v1004 = vunpack.c.h.b16 %v292
    %v1005 = vunpack.c.l.b16 %v293
    %v1006 = vunpack.c.h.b16 %v293
    %v1007 = vunpack.c.l.b16 %v294
    %v1008 = vunpack.c.h.b16 %v294
    %v1009 = vunpack.c.l.b16 %v295
    %v1010 = vunpack.c.h.b16 %v295
    %v1011 = vunpack.c.l.b16 %v296
    %v1012 = vunpack.c.h.b16 %v296
    %v1013 = vunpack.c.l.b16 %v297
    %v1014 = vunpack.c.h.b16 %v297
    %v1015 = vunpack.c.l.b16 %v298
    %v1016 = vunpack.c.h.b16 %v298
    %v1017 = vunpack.c.l.b16 %v299
    %v1018 = vunpack.c.h.b16 %v299
    %v1019 = vunpack.c.l.b16 %v300
    %v1020 = vunpack.c.h.b16 %v300
    %v1021 = vunpack.c.l.b16 %v301
    %v1022 = vunpack.c.h.b16 %v301
    %v1023 = vunpack.c.l.b16 %v302
    %v1024 = vunpack.c.h.b16 %v302
    %v1025 = vunpack.c.l.b16 %v303
    %v1026 = vunpack.c.h.b16 %v303
    %v1027 = vunpack.c.l.b16 %v304
    %v1028 = vunpack.c.h.b16 %v304
    %v1029 = vunpack.c.l.b16 %v305
    %v1030 = vunpack.c.h.b16 %v305
    %v1031 = vunpack.c.l.b16 %v306
    %v1032 = vunpack.c.h.b16 %v306
    %v1033 = vunpack.c.l.b16 %v307
    %v1034 = vunpack.c.h.b16 %v307
    %v1035 = vunpack.c.l.b16 %v308
    %v1036 = vunpack.c.h.b16 %v308
    %v1037 = vunpack.c.l.b16 %v309
    %v1038 = vunpack.c.h.b16 %v309
    %v1039 = vunpack.c.l.b16 %v310
    %v1040 = vunpack.c.h.b16 %v310
    %v1041 = vpack.c.b16 %v597, %v593
    %v1042 = vpack.c.b16 %v598, %v594
    %v1043 = vpack.c.b16 %v599, %v595
    %v1044 = vpack.c.b16 %v600, %v596
    %v1045 = vpack.c.b16 %v605, %v601
    %v1046 = vpack.c.b16 %v606, %v602
    %v1047 = vpack.c.b16 %v607, %v603
    %v1048 = vpack.c.b16 %v608, %v604
    %v1049 = vpack.c.b16 %v613, %v609
    %v1050 = vpack.c.b16 %v614, %v610
    %v1051 = vpack.c.b16 %v615, %v611
    %v1052 = vpack.c.b16 %v616, %v612
    %v1053 = vpack.c.b16 %v621, %v617
    %v1054 = vpack.c.b16 %v622, %v618
    %v1055 = vpack.c.b16 %v623, %v619
    %v1056 = vpack.c.b16 %v624, %v620
    %v1057 = vpack.c.b16 %v629, %v625
    %v1058 = vpack.c.b16 %v630, %v626
    %v1059 = vpack.c.b16 %v631, %v627
    %v1060 = vpack.c.b16 %v632, %v628
    %v1061 = vpack.c.b16 %v637, %v633
    %v1062 = vpack.c.b16 %v638, %v634
    %v1063 = vpack.c.b16 %v639, %v635
    %v1064 = vpack.c.b16 %v640, %v636
    %v1065 = vpack.c.b16 %v645, %v641
    %v1066 = vpack.c.b16 %v646, %v642
    %v1067 = vpack.c.b16 %v647, %v643
    %v1068 = vpack.c.b16 %v648, %v644
    %v1069 = vpack.c.b16 %v653, %v649
    %v1070 = vpack.c.b16 %v654, %v650
    %v1071 = vpack.c.b16 %v655, %v651
    %v1072 = vpack.c.b16 %v656, %v652
    %v1073 = vpack.c.b16 %v661, %v657
    %v1074 = vpack.c.b16 %v662, %v658
    %v1075 = vpack.c.b16 %v663, %v659
    %v1076 = vpack.c.b16 %v664, %v660
    %v1077 = vpack.c.b16 %v669, %v665
    %v1078 = vpack.c.b16 %v670, %v666
    %v1079 = vpack.c.b16 %v671, %v667
    %v1080 = vpack.c.b16 %v672, %v668
    %v1081 = vpack.c.b16 %v677, %v673
    %v1082 = vpack.c.b16 %v678, %v674
    %v1083 = vpack.c.b16 %v679, %v675
    %v1084 = vpack.c.b16 %v680, %v676
    %v1085 = vpack.c.b16 %v685, %v681
    %v1086 = vpack.c.b16 %v686, %v682
    %v1087 = vpack.c.b16 %v687, %v683
    %v1088 = vpack.c.b16 %v688, %v684
    %v1089 = vpack.c.b16 %v693, %v689
    %v1090 = vpack.c.b16 %v694, %v690
    %v1091 = vpack.c.b16 %v695, %v691
    %v1092 = vpack.c.b16 %v696, %v692
    %v1093 = vpack.c.b16 %v701, %v697
    %v1094 = vpack.c.b16 %v702, %v698
    %v1095 = vpack.c.b16 %v703, %v699
    %v1096 = vpack.c.b16 %v704, %v700
    %v1097 = vpack.c.b16 %v709, %v705
    %v1098 = vpack.c.b16 %v710, %v706
    %v1099 = vpack.c.b16 %v711, %v707
    %v1100 = vpack.c.b16 %v712, %v708
    %v1101 = vpack.c.b16 %v717, %v713
    %v1102 = vpack.c.b16 %v718, %v714
    %v1103 = vpack.c.b16 %v719, %v715
    %v1104 = vpack.c.b16 %v720, %v716
    %v1105 = vpack.c.b16 %v725, %v721
    %v1106 = vpack.c.b16 %v726, %v722
    %v1107 = vpack.c.b16 %v727, %v723
    %v1108 = vpack.c.b16 %v728, %v724
    %v1109 = vpack.c.b16 %v733, %v729
    %v1110 = vpack.c.b16 %v734, %v730
    %v1111 = vpack.c.b16 %v735, %v731
    %v1112 = vpack.c.b16 %v736, %v732
    %v1113 = vpack.c.b16 %v741, %v737
    %v1114 = vpack.c.b16 %v742, %v738
    %v1115 = vpack.c.b16 %v743, %v739
    %v1116 = vpack.c.b16 %v744, %v740
    %v1117 = vpack.c.b16 %v749, %v745
    %v1118 = vpack.c.b16 %v750, %v746
    %v1119 = vpack.c.b16 %v751, %v747
    %v1120 = vpack.c.b16 %v752, %v748
    %v1121 = vpack.c.b16 %v757, %v753
    %v1122 = vpack.c.b16 %v758, %v754
    %v1123 = vpack.c.b16 %v759, %v755
    %v1124 = vpack.c.b16 %v760, %v756
    %v1125 = vpack.c.b16 %v765, %v761
    %v1126 = vpack.c.b16 %v766, %v762
    %v1127 = vpack.c.b16 %v767, %v763
    %v1128 = vpack.c.b16 %v768, %v764
    %v1129 = vpack.c.b16 %v773, %v769
    %v1130 = vpack.c.b16 %v774, %v770
    %v1131 = vpack.c.b16 %v775, %v771
    %v1132 = vpack.c.b16 %v776, %v772
    %v1133 = vpack.c.b16 %v781, %v777
    %v1134 = vpack.c.b16 %v782, %v778
    %v1135 = vpack.c.b16 %v783, %v779
    %v1136 = vpack.c.b16 %v784, %v780
    %v1137 = vpack.c.b16 %v789, %v785
    %v1138 = vpack.c.b16 %v790, %v786
    %v1139 = vpack.c.b16 %v791, %v787
    %v1140 = vpack.c.b16 %v792, %v788
    %v1141 = vpack.c.b16 %v797, %v793
    %v1142 = vpack.c.b16 %v798, %v794
    %v1143 = vpack.c.b16 %v799, %v795
    %v1144 = vpack.c.b16 %v800, %v796
    %v1145 = vpack.c.b16 %v805, %v801
    %v1146 = vpack.c.b16 %v806, %v802
    %v1147 = vpack.c.b16 %v807, %v803
    %v1148 = vpack.c.b16 %v808, %v804
    %v1149 = vpack.c.b16 %v813, %v809
    %v1150 = vpack.c.b16 %v814, %v810
    %v1151 = vpack.c.b16 %v815, %v811
    %v1152 = vpack.c.b16 %v816, %v812
    %v1153 = vpack.c.b16 %v821, %v817
    %v1154 = vpack.c.b16 %v822, %v818
    %v1155 = vpack.c.b16 %v823, %v819
    %v1156 = vpack.c.b16 %v824, %v820
    %v1157 = vpack.c.b16 %v829, %v825
    %v1158 = vpack.c.b16 %v830, %v826
    %v1159 = vpack.c.b16 %v831, %v827
    %v1160 = vpack.c.b16 %v832, %v828
    %v1161 = vpack.c.b16 %v837, %v833
    %v1162 = vpack.c.b16 %v838, %v834
    %v1163 = vpack.c.b16 %v839, %v835
    %v1164 = vpack.c.b16 %v840, %v836
    %v1165 = vpack.c.b16 %v845, %v841
    %v1166 = vpack.c.b16 %v846, %v842
    %v1167 = vpack.c.b16 %v847, %v843
    %v1168 = vpack.c.b16 %v848, %v844
    %v1169 = vpack.c.b16 %v853, %v849
    %v1170 = vpack.c.b16 %v854, %v850
    %v1171 = vpack.c.b16 %v855, %v851
    %v1172 = vpack.c.b16 %v856, %v852
    %v1173 = vpack.c.b16 %v861, %v857
    %v1174 = vpack.c.b16 %v862, %v858
    %v1175 = vpack.c.b16 %v863, %v859
    %v1176 = vpack.c.b16 %v864, %v860
    %v1177 = vpack.c.b16 %v869, %v865
    %v1178 = vpack.c.b16 %v870, %v866
    %v1179 = vpack.c.b16 %v871, %v867
    %v1180 = vpack.c.b16 %v872, %v868
    %v1181 = vpack.c.b16 %v877, %v873
    %v1182 = vpack.c.b16 %v878, %v874
    %v1183 = vpack.c.b16 %v879, %v875
    %v1184 = vpack.c.b16 %v880, %v876
    %v1185 = vpack.c.b16 %v885, %v881
    %v1186 = vpack.c.b16 %v886, %v882
    %v1187 = vpack.c.b16 %v887, %v883
    %v1188 = vpack.c.b16 %v888, %v884
    %v1189 = vpack.c.b16 %v893, %v889
    %v1190 = vpack.c.b16 %v894, %v890
    %v1191 = vpack.c.b16 %v895, %v891
    %v1192 = vpack.c.b16 %v896, %v892
    %v1193 = vpack.c.b16 %v901, %v897
    %v1194 = vpack.c.b16 %v902, %v898
    %v1195 = vpack.c.b16 %v903, %v899
    %v1196 = vpack.c.b16 %v904, %v900
    %v1197 = vpack.c.b16 %v909, %v905
    %v1198 = vpack.c.b16 %v910, %v906
    %v1199 = vpack.c.b16 %v911, %v907
    %v1200 = vpack.c.b16 %v912, %v908
    %v1201 = vpack.c.b16 %v917, %v913
    %v1202 = vpack.c.b16 %v918, %v914
    %v1203 = vpack.c.b16 %v919, %v915
    %v1204 = vpack.c.b16 %v920, %v916
    %v1205 = vpack.c.b16 %v925, %v921
    %v1206 = vpack.c.b16 %v926, %v922
    %v1207 = vpack.c.b16 %v927, %v923
    %v1208 = vpack.c.b16 %v928, %v924
    %v1209 = vpack.c.b16 %v933, %v929
    %v1210 = vpack.c.b16 %v934, %v930
    %v1211 = vpack.c.b16 %v935, %v931
    %v1212 = vpack.c.b16 %v936, %v932
    %v1213 = vpack.c.b16 %v941, %v937
    %v1214 = vpack.c.b16 %v942, %v938
    %v1215 = vpack.c.b16 %v943, %v939
    %v1216 = vpack.c.b16 %v944, %v940
    %v1217 = vpack.c.b16 %v949, %v945
    %v1218 = vpack.c.b16 %v950, %v946
    %v1219 = vpack.c.b16 %v951, %v947
    %v1220 = vpack.c.b16 %v952, %v948
    %v1221 = vpack.c.b16 %v957, %v953
    %v1222 = vpack.c.b16 %v958, %v954
    %v1223 = vpack.c.b16 %v959, %v955
    %v1224 = vpack.c.b16 %v960, %v956
    %v1225 = vpack.c.b16 %v965, %v961
    %v1226 = vpack.c.b16 %v966, %v962
    %v1227 = vpack.c.b16 %v967, %v963
    %v1228 = vpack.c.b16 %v968, %v964
    %v1229 = vpack.c.b16 %v973, %v969
    %v1230 = vpack.c.b16 %v974, %v970
    %v1231 = vpack.c.b16 %v975, %v971
    %v1232 = vpack.c.b16 %v976, %v972
    %v1233 = vpack.c.b16 %v981, %v977
    %v1234 = vpack.c.b16 %v982, %v978
    %v1235 = vpack.c.b16 %v983, %v979
    %v1236 = vpack.c.b16 %v984, %v980
    %v1237 = vpack.c.b16 %v989, %v985
    %v1238 = vpack.c.b16 %v990, %v986
    %v1239 = vpack.c.b16 %v991, %v987
    %v1240 = vpack.c.b16 %v992, %v988
    %v1241 = vpack.c.b16 %v997, %v993
    %v1242 = vpack.c.b16 %v998, %v994
    %v1243 = vpack.c.b16 %v999, %v995
    %v1244 = vpack.c.b16 %v1000, %v996
    %v1245 = vpack.c.b16 %v1005, %v1001
    %v1246 = vpack.c.b16 %v1006, %v1002
    %v1247 = vpack.c.b16 %v1007, %v1003
    %v1248 = vpack.c.b16 %v1008, %v1004
    %v1249 = vpack.c.b16 %v1013, %v1009
    %v1250 = vpack.c.b16 %v1014, %v1010
    %v1251 = vpack.c.b16 %v1015, %v1011
    %v1252 = vpack.c.b16 %v1016, %v1012
    %v1253 = vpack.c.b16 %v1021, %v1017
    %v1254 = vpack.c.b16 %v1022, %v1018
    %v1255 = vpack.c.b16 %v1023, %v1019
    %v1256 = vpack.c.b16 %v1024, %v1020
    %v1257 = vpack.c.b16 %v1029, %v1025
    %v1258 = vpack.c.b16 %v1030, %v1026
    %v1259 = vpack.c.b16 %v1031, %v1027
    %v1260 = vpack.c.b16 %v1032, %v1028
    %v1261 = vpack.c.b16 %v1037, %v1033
    %v1262 = vpack.c.b16 %v1038, %v1034
    %v1263 = vpack.c.b16 %v1039, %v1035
    %v1264 = vpack.c.b16 %v1040, %v1036
    %1489 = vmatprep.subr.bf16.mxu0 %v1042
    %1490 = vmatpush1.bf16.msra.mxu0 %v1041
    %1491 = vmatprep.subr.bf16.mxu0 %v1046
    %1492 = vmatpush1.bf16.msra.mxu0 %v1045
    %1493 = vmatprep.subr.bf16.mxu0 %v1050
    %1494 = vmatpush1.bf16.msra.mxu0 %v1049
    %1495 = vmatprep.subr.bf16.mxu0 %v1054
    %1496 = vmatpush1.bf16.msra.mxu0 %v1053
    %1497 = vmatprep.subr.bf16.mxu0 %v1058
    %1498 = vmatpush1.bf16.msra.mxu0 %v1057
    %1499 = vmatprep.subr.bf16.mxu0 %v1062
    %1500 = vmatpush1.bf16.msra.mxu0 %v1061
    %1501 = vmatprep.subr.bf16.mxu0 %v1066
    %1502 = vmatpush1.bf16.msra.mxu0 %v1065
    %1503 = vmatprep.subr.bf16.mxu0 %v1070
    %1504 = vmatpush1.bf16.msra.mxu0 %v1069
    %1505 = vmatprep.subr.bf16.mxu0 %v1074
    %1506 = vmatpush1.bf16.msra.mxu0 %v1073
    %1507 = vmatprep.subr.bf16.mxu0 %v1078
    %1508 = vmatpush1.bf16.msra.mxu0 %v1077
    %1509 = vmatprep.subr.bf16.mxu0 %v1082
    %1510 = vmatpush1.bf16.msra.mxu0 %v1081
    %1511 = vmatprep.subr.bf16.mxu0 %v1086
    %1512 = vmatpush1.bf16.msra.mxu0 %v1085
    %1513 = vmatprep.subr.bf16.mxu0 %v1090
    %1514 = vmatpush1.bf16.msra.mxu0 %v1089
    %1515 = vmatprep.subr.bf16.mxu0 %v1094
    %1516 = vmatpush1.bf16.msra.mxu0 %v1093
    %1517 = vmatprep.subr.bf16.mxu0 %v1098
    %1518 = vmatpush1.bf16.msra.mxu0 %v1097
    %1519 = vmatprep.subr.bf16.mxu0 %v1102
    %1520 = vmatpush1.bf16.msra.mxu0 %v1101
    %1521 = vmatprep.mubr.bf16.mxu0 %v356
    %1522 = vmatmul.mubr.bf16.gmra.mrb[0].mxu0 %v355
    %v1523 = vpop.f32.mrb[0].mxu0
    %v1524 = vadd.f32 %v316, %v1523
    %v1525 = vpop.f32.mrb[0].mxu0
    %v1526 = vadd.f32 %v320, %v1525
    %v1527 = vpop.f32.mrb[0].mxu0
    %v1528 = vadd.f32 %v316, %v1527
    %v1529 = vpop.f32.mrb[0].mxu0
    %v1530 = vadd.f32 %v320, %v1529
    %1531 = vdwg.mxu0
    %1532 = vmatprep.subr.bf16.mxu0 %v1106
    %1533 = vmatpush1.bf16.msra.mxu0 %v1105
    %1534 = vmatprep.subr.bf16.mxu0 %v1110
    %1535 = vmatpush1.bf16.msra.mxu0 %v1109
    %1536 = vmatprep.subr.bf16.mxu0 %v1114
    %1537 = vmatpush1.bf16.msra.mxu0 %v1113
    %1538 = vmatprep.subr.bf16.mxu0 %v1118
    %1539 = vmatpush1.bf16.msra.mxu0 %v1117
    %1540 = vmatprep.subr.bf16.mxu0 %v1122
    %1541 = vmatpush1.bf16.msra.mxu0 %v1121
    %1542 = vmatprep.subr.bf16.mxu0 %v1126
    %1543 = vmatpush1.bf16.msra.mxu0 %v1125
    %1544 = vmatprep.subr.bf16.mxu0 %v1130
    %1545 = vmatpush1.bf16.msra.mxu0 %v1129
    %1546 = vmatprep.subr.bf16.mxu0 %v1134
    %1547 = vmatpush1.bf16.msra.mxu0 %v1133
    %1548 = vmatprep.subr.bf16.mxu0 %v1138
    %1549 = vmatpush1.bf16.msra.mxu0 %v1137
    %1550 = vmatprep.subr.bf16.mxu0 %v1142
    %1551 = vmatpush1.bf16.msra.mxu0 %v1141
    %1552 = vmatprep.subr.bf16.mxu0 %v1146
    %1553 = vmatpush1.bf16.msra.mxu0 %v1145
    %1554 = vmatprep.subr.bf16.mxu0 %v1150
    %1555 = vmatpush1.bf16.msra.mxu0 %v1149
    %1556 = vmatprep.subr.bf16.mxu0 %v1154
    %1557 = vmatpush1.bf16.msra.mxu0 %v1153
    %1558 = vmatprep.subr.bf16.mxu0 %v1158
    %1559 = vmatpush1.bf16.msra.mxu0 %v1157
    %1560 = vmatprep.subr.bf16.mxu0 %v1162
    %1561 = vmatpush1.bf16.msra.mxu0 %v1161
    %1562 = vmatprep.subr.bf16.mxu0 %v1166
    %1563 = vmatpush1.bf16.msra.mxu0 %v1165
    %1564 = vmatprep.mubr.bf16.mxu0 %v358
    %1565 = vmatmul.mubr.bf16.gmra.mrb[0].mxu0 %v357
    %v1566 = vpop.f32.mrb[0].mxu0
    %v1567 = vadd.f32 %v1524, %v1566
    %v1568 = vpop.f32.mrb[0].mxu0
    %v1569 = vadd.f32 %v1526, %v1568
    %v1570 = vpop.f32.mrb[0].mxu0
    %v1571 = vadd.f32 %v1528, %v1570
    %v1572 = vpop.f32.mrb[0].mxu0
    %v1573 = vadd.f32 %v1530, %v1572
    %1574 = vdwg.mxu0
    %1575 = vmatprep.subr.bf16.mxu0 %v1170
    %1576 = vmatpush1.bf16.msra.mxu0 %v1169
    %1577 = vmatprep.subr.bf16.mxu0 %v1174
    %1578 = vmatpush1.bf16.msra.mxu0 %v1173
    %1579 = vmatprep.subr.bf16.mxu0 %v1178
    %1580 = vmatpush1.bf16.msra.mxu0 %v1177
    %1581 = vmatprep.subr.bf16.mxu0 %v1182
    %1582 = vmatpush1.bf16.msra.mxu0 %v1181
    %1583 = vmatprep.subr.bf16.mxu0 %v1186
    %1584 = vmatpush1.bf16.msra.mxu0 %v1185
    %1585 = vmatprep.subr.bf16.mxu0 %v1190
    %1586 = vmatpush1.bf16.msra.mxu0 %v1189
    %1587 = vmatprep.subr.bf16.mxu0 %v1194
    %1588 = vmatpush1.bf16.msra.mxu0 %v1193
    %1589 = vmatprep.subr.bf16.mxu0 %v1198
    %1590 = vmatpush1.bf16.msra.mxu0 %v1197
    %1591 = vmatprep.subr.bf16.mxu0 %v1202
    %1592 = vmatpush1.bf16.msra.mxu0 %v1201
    %1593 = vmatprep.subr.bf16.mxu0 %v1206
    %1594 = vmatpush1.bf16.msra.mxu0 %v1205
    %1595 = vmatprep.subr.bf16.mxu0 %v1210
    %1596 = vmatpush1.bf16.msra.mxu0 %v1209
    %1597 = vmatprep.subr.bf16.mxu0 %v1214
    %1598 = vmatpush1.bf16.msra.mxu0 %v1213
    %1599 = vmatprep.subr.bf16.mxu0 %v1218
    %1600 = vmatpush1.bf16.msra.mxu0 %v1217
    %1601 = vmatprep.subr.bf16.mxu0 %v1222
    %1602 = vmatpush1.bf16.msra.mxu0 %v1221
    %1603 = vmatprep.subr.bf16.mxu0 %v1226
    %1604 = vmatpush1.bf16.msra.mxu0 %v1225
    %1605 = vmatprep.subr.bf16.mxu0 %v1230
    %1606 = vmatpush1.bf16.msra.mxu0 %v1229
    %1607 = vmatprep.mubr.bf16.mxu0 %v360
    %1608 = vmatmul.mubr.bf16.gmra.mrb[0].mxu0 %v359
    %v1609 = vpop.f32.mrb[0].mxu0
    %v1610 = vadd.f32 %v1567, %v1609
    %v1611 = vpop.f32.mrb[0].mxu0
    %v1612 = vadd.f32 %v1569, %v1611
    %v1613 = vpop.f32.mrb[0].mxu0
    %v1614 = vadd.f32 %v1571, %v1613
    %v1615 = vpop.f32.mrb[0].mxu0
    %v1616 = vadd.f32 %v1573, %v1615
    %1617 = vdwg.mxu0
    %1618 = vmatprep.subr.bf16.mxu0 %v1234
    %1619 = vmatpush1.bf16.msra.mxu0 %v1233
    %1620 = vmatprep.subr.bf16.mxu0 %v1238
    %1621 = vmatpush1.bf16.msra.mxu0 %v1237
    %1622 = vmatprep.subr.bf16.mxu0 %v1242
    %1623 = vmatpush1.bf16.msra.mxu0 %v1241
    %1624 = vmatprep.subr.bf16.mxu0 %v1246
    %1625 = vmatpush1.bf16.msra.mxu0 %v1245
    %1626 = vmatprep.subr.bf16.mxu0 %v1250
    %1627 = vmatpush1.bf16.msra.mxu0 %v1249
    %1628 = vmatprep.subr.bf16.mxu0 %v1254
    %1629 = vmatpush1.bf16.msra.mxu0 %v1253
    %1630 = vmatprep.subr.bf16.mxu0 %v1258
    %1631 = vmatpush1.bf16.msra.mxu0 %v1257
    %1632 = vmatprep.subr.bf16.mxu0 %v1262
    %1633 = vmatpush1.bf16.msra.mxu0 %v1261
    %1634 = vmatprep.subr.bf16.mxu0 0
    %1635 = vmatpush1.bf16.msra.mxu0 0
    %1636 = vmatprep.subr.bf16.mxu0 0
    %1637 = vmatpush1.bf16.msra.mxu0 0
    %1638 = vmatprep.subr.bf16.mxu0 0
    %1639 = vmatpush1.bf16.msra.mxu0 0
    %1640 = vmatprep.subr.bf16.mxu0 0
    %1641 = vmatpush1.bf16.msra.mxu0 0
    %1642 = vmatprep.subr.bf16.mxu0 0
    %1643 = vmatpush1.bf16.msra.mxu0 0
    %1644 = vmatprep.subr.bf16.mxu0 0
    %1645 = vmatpush1.bf16.msra.mxu0 0
    %1646 = vmatprep.subr.bf16.mxu0 0
    %1647 = vmatpush1.bf16.msra.mxu0 0
    %1648 = vmatprep.subr.bf16.mxu0 0
    %1649 = vmatpush1.bf16.msra.mxu0 0
    %1650 = vmatprep.mubr.bf16.mxu0 0
    %1651 = vmatmul.mubr.bf16.gmra.mrb[0].mxu0 %v361
    %v1652 = vpop.f32.mrb[0].mxu0
    %v1653 = vadd.f32 %v1610, %v1652
    %v1654 = vpop.f32.mrb[0].mxu0
    %v1655 = vadd.f32 %v1612, %v1654
    %v1656 = vpop.f32.mrb[0].mxu0
    %v1657 = vadd.f32 %v1614, %v1656
    %v1658 = vpop.f32.mrb[0].mxu0
    %v1659 = vadd.f32 %v1616, %v1658
    %1660 = vdwg.mxu0
    %1661 = vmatprep.subr.bf16.mxu0 %v1044
    %1662 = vmatpush1.bf16.msra.mxu0 %v1043
    %1663 = vmatprep.subr.bf16.mxu0 %v1048
    %1664 = vmatpush1.bf16.msra.mxu0 %v1047
    %1665 = vmatprep.subr.bf16.mxu0 %v1052
    %1666 = vmatpush1.bf16.msra.mxu0 %v1051
    %1667 = vmatprep.subr.bf16.mxu0 %v1056
    %1668 = vmatpush1.bf16.msra.mxu0 %v1055
    %1669 = vmatprep.subr.bf16.mxu0 %v1060
    %1670 = vmatpush1.bf16.msra.mxu0 %v1059
    %1671 = vmatprep.subr.bf16.mxu0 %v1064
    %1672 = vmatpush1.bf16.msra.mxu0 %v1063
    %1673 = vmatprep.subr.bf16.mxu0 %v1068
    %1674 = vmatpush1.bf16.msra.mxu0 %v1067
    %1675 = vmatprep.subr.bf16.mxu0 %v1072
    %1676 = vmatpush1.bf16.msra.mxu0 %v1071
    %1677 = vmatprep.subr.bf16.mxu0 %v1076
    %1678 = vmatpush1.bf16.msra.mxu0 %v1075
    %1679 = vmatprep.subr.bf16.mxu0 %v1080
    %1680 = vmatpush1.bf16.msra.mxu0 %v1079
    %1681 = vmatprep.subr.bf16.mxu0 %v1084
    %1682 = vmatpush1.bf16.msra.mxu0 %v1083
    %1683 = vmatprep.subr.bf16.mxu0 %v1088
    %1684 = vmatpush1.bf16.msra.mxu0 %v1087
    %1685 = vmatprep.subr.bf16.mxu0 %v1092
    %1686 = vmatpush1.bf16.msra.mxu0 %v1091
    %1687 = vmatprep.subr.bf16.mxu0 %v1096
    %1688 = vmatpush1.bf16.msra.mxu0 %v1095
    %1689 = vmatprep.subr.bf16.mxu0 %v1100
    %1690 = vmatpush1.bf16.msra.mxu0 %v1099
    %1691 = vmatprep.subr.bf16.mxu0 %v1104
    %1692 = vmatpush1.bf16.msra.mxu0 %v1103
    %1693 = vmatprep.mubr.bf16.mxu0 %v356
    %1694 = vmatmul.mubr.bf16.gmra.mrb[0].mxu0 %v355
    %v1695 = vpop.f32.mrb[0].mxu0
    %v1696 = vadd.f32 %v324, %v1695
    %v1697 = vpop.f32.mrb[0].mxu0
    %v1698 = vadd.f32 %v328, %v1697
    %v1699 = vpop.f32.mrb[0].mxu0
    %v1700 = vadd.f32 %v324, %v1699
    %v1701 = vpop.f32.mrb[0].mxu0
    %v1702 = vadd.f32 %v328, %v1701
    %1703 = vdwg.mxu0
    %1704 = vmatprep.subr.bf16.mxu0 %v1108
    %1705 = vmatpush1.bf16.msra.mxu0 %v1107
    %1706 = vmatprep.subr.bf16.mxu0 %v1112
    %1707 = vmatpush1.bf16.msra.mxu0 %v1111
    %1708 = vmatprep.subr.bf16.mxu0 %v1116
    %1709 = vmatpush1.bf16.msra.mxu0 %v1115
    %1710 = vmatprep.subr.bf16.mxu0 %v1120
    %1711 = vmatpush1.bf16.msra.mxu0 %v1119
    %1712 = vmatprep.subr.bf16.mxu0 %v1124
    %1713 = vmatpush1.bf16.msra.mxu0 %v1123
    %1714 = vmatprep.subr.bf16.mxu0 %v1128
    %1715 = vmatpush1.bf16.msra.mxu0 %v1127
    %1716 = vmatprep.subr.bf16.mxu0 %v1132
    %1717 = vmatpush1.bf16.msra.mxu0 %v1131
    %1718 = vmatprep.subr.bf16.mxu0 %v1136
    %1719 = vmatpush1.bf16.msra.mxu0 %v1135
    %1720 = vmatprep.subr.bf16.mxu0 %v1140
    %1721 = vmatpush1.bf16.msra.mxu0 %v1139
    %1722 = vmatprep.subr.bf16.mxu0 %v1144
    %1723 = vmatpush1.bf16.msra.mxu0 %v1143
    %1724 = vmatprep.subr.bf16.mxu0 %v1148
    %1725 = vmatpush1.bf16.msra.mxu0 %v1147
    %1726 = vmatprep.subr.bf16.mxu0 %v1152
    %1727 = vmatpush1.bf16.msra.mxu0 %v1151
    %1728 = vmatprep.subr.bf16.mxu0 %v1156
    %1729 = vmatpush1.bf16.msra.mxu0 %v1155
    %1730 = vmatprep.subr.bf16.mxu0 %v1160
    %1731 = vmatpush1.bf16.msra.mxu0 %v1159
    %1732 = vmatprep.subr.bf16.mxu0 %v1164
    %1733 = vmatpush1.bf16.msra.mxu0 %v1163
    %1734 = vmatprep.subr.bf16.mxu0 %v1168
    %1735 = vmatpush1.bf16.msra.mxu0 %v1167
    %1736 = vmatprep.mubr.bf16.mxu0 %v358
    %1737 = vmatmul.mubr.bf16.gmra.mrb[0].mxu0 %v357
    %v1738 = vpop.f32.mrb[0].mxu0
    %v1739 = vadd.f32 %v1696, %v1738
    %v1740 = vpop.f32.mrb[0].mxu0
    %v1741 = vadd.f32 %v1698, %v1740
    %v1742 = vpop.f32.mrb[0].mxu0
    %v1743 = vadd.f32 %v1700, %v1742
    %v1744 = vpop.f32.mrb[0].mxu0
    %v1745 = vadd.f32 %v1702, %v1744
    %1746 = vdwg.mxu0
    %1747 = vmatprep.subr.bf16.mxu0 %v1172
    %1748 = vmatpush1.bf16.msra.mxu0 %v1171
    %1749 = vmatprep.subr.bf16.mxu0 %v1176
    %1750 = vmatpush1.bf16.msra.mxu0 %v1175
    %1751 = vmatprep.subr.bf16.mxu0 %v1180
    %1752 = vmatpush1.bf16.msra.mxu0 %v1179
    %1753 = vmatprep.subr.bf16.mxu0 %v1184
    %1754 = vmatpush1.bf16.msra.mxu0 %v1183
    %1755 = vmatprep.subr.bf16.mxu0 %v1188
    %1756 = vmatpush1.bf16.msra.mxu0 %v1187
    %1757 = vmatprep.subr.bf16.mxu0 %v1192
    %1758 = vmatpush1.bf16.msra.mxu0 %v1191
    %1759 = vmatprep.subr.bf16.mxu0 %v1196
    %1760 = vmatpush1.bf16.msra.mxu0 %v1195
    %1761 = vmatprep.subr.bf16.mxu0 %v1200
    %1762 = vmatpush1.bf16.msra.mxu0 %v1199
    %1763 = vmatprep.subr.bf16.mxu0 %v1204
    %1764 = vmatpush1.bf16.msra.mxu0 %v1203
    %1765 = vmatprep.subr.bf16.mxu0 %v1208
    %1766 = vmatpush1.bf16.msra.mxu0 %v1207
    %1767 = vmatprep.subr.bf16.mxu0 %v1212
    %1768 = vmatpush1.bf16.msra.mxu0 %v1211
    %1769 = vmatprep.subr.bf16.mxu0 %v1216
    %1770 = vmatpush1.bf16.msra.mxu0 %v1215
    %1771 = vmatprep.subr.bf16.mxu0 %v1220
    %1772 = vmatpush1.bf16.msra.mxu0 %v1219
    %1773 = vmatprep.subr.bf16.mxu0 %v1224
    %1774 = vmatpush1.bf16.msra.mxu0 %v1223
    %1775 = vmatprep.subr.bf16.mxu0 %v1228
    %1776 = vmatpush1.bf16.msra.mxu0 %v1227
    %1777 = vmatprep.subr.bf16.mxu0 %v1232
    %1778 = vmatpush1.bf16.msra.mxu0 %v1231
    %1779 = vmatprep.mubr.bf16.mxu0 %v360
    %1780 = vmatmul.mubr.bf16.gmra.mrb[0].mxu0 %v359
    %v1781 = vpop.f32.mrb[0].mxu0
    %v1782 = vadd.f32 %v1739, %v1781
    %v1783 = vpop.f32.mrb[0].mxu0
    %v1784 = vadd.f32 %v1741, %v1783
    %v1785 = vpop.f32.mrb[0].mxu0
    %v1786 = vadd.f32 %v1743, %v1785
    %v1787 = vpop.f32.mrb[0].mxu0
    %v1788 = vadd.f32 %v1745, %v1787
    %1789 = vdwg.mxu0
    %1790 = vmatprep.subr.bf16.mxu0 %v1236
    %1791 = vmatpush1.bf16.msra.mxu0 %v1235
    %1792 = vmatprep.subr.bf16.mxu0 %v1240
    %1793 = vmatpush1.bf16.msra.mxu0 %v1239
    %1794 = vmatprep.subr.bf16.mxu0 %v1244
    %1795 = vmatpush1.bf16.msra.mxu0 %v1243
    %1796 = vmatprep.subr.bf16.mxu0 %v1248
    %1797 = vmatpush1.bf16.msra.mxu0 %v1247
    %1798 = vmatprep.subr.bf16.mxu0 %v1252
    %1799 = vmatpush1.bf16.msra.mxu0 %v1251
    %1800 = vmatprep.subr.bf16.mxu0 %v1256
    %1801 = vmatpush1.bf16.msra.mxu0 %v1255
    %1802 = vmatprep.subr.bf16.mxu0 %v1260
    %1803 = vmatpush1.bf16.msra.mxu0 %v1259
    %1804 = vmatprep.subr.bf16.mxu0 %v1264
    %1805 = vmatpush1.bf16.msra.mxu0 %v1263
    %1806 = vmatprep.subr.bf16.mxu0 0
    %1807 = vmatpush1.bf16.msra.mxu0 0
    %1808 = vmatprep.subr.bf16.mxu0 0
    %1809 = vmatpush1.bf16.msra.mxu0 0
    %1810 = vmatprep.subr.bf16.mxu0 0
    %1811 = vmatpush1.bf16.msra.mxu0 0
    %1812 = vmatprep.subr.bf16.mxu0 0
    %1813 = vmatpush1.bf16.msra.mxu0 0
    %1814 = vmatprep.subr.bf16.mxu0 0
    %1815 = vmatpush1.bf16.msra.mxu0 0
    %1816 = vmatprep.subr.bf16.mxu0 0
    %1817 = vmatpush1.bf16.msra.mxu0 0
    %1818 = vmatprep.subr.bf16.mxu0 0
    %1819 = vmatpush1.bf16.msra.mxu0 0
    %1820 = vmatprep.subr.bf16.mxu0 0
    %1821 = vmatpush1.bf16.msra.mxu0 0
    %1822 = vmatprep.mubr.bf16.mxu0 0
    %1823 = vmatmul.mubr.bf16.gmra.mrb[0].mxu0 %v361
    %v1824 = vpop.f32.mrb[0].mxu0
    %v1825 = vadd.f32 %v1782, %v1824
    %v1826 = vpop.f32.mrb[0].mxu0
    %v1827 = vadd.f32 %v1784, %v1826
    %v1828 = vpop.f32.mrb[0].mxu0
    %v1829 = vadd.f32 %v1786, %v1828
    %v1830 = vpop.f32.mrb[0].mxu0
    %v1831 = vadd.f32 %v1788, %v1830
    %1832 = vdwg.mxu0
    %v1833 = vmax.f32 %v1653, 0.0
    %v1834 = vmax.f32 %v1655, 0.0
    %v1835 = vmax.f32 %v1825, 0.0
    %v1836 = vmax.f32 %v1827, 0.0
    %v1837 = vmax.f32 %v1657, 0.0
    %v1838 = vmax.f32 %v1659, 0.0
    %v1839 = vmax.f32 %v1829, 0.0
    %v1840 = vmax.f32 %v1831, 0.0
    %v1841 = vpack.c.bf16 %v1837, %v1833
    %v1842 = vpack.c.bf16 %v1838, %v1834
    %v1843 = vpack.c.bf16 %v1839, %v1835
    %v1844 = vpack.c.bf16 %v1840, %v1836
    %v1845 = vld [vmem:[%s3] sm:$0xff]
    %v1846 = vld [vmem:[%s3 + $0x8] sm:$0xff]
    %v1847 = vld [vmem:[%s3 + $0x10] sm:$0xff]
    %v1848 = vld [vmem:[%s3 + $0x18] sm:$0xff]
    %v1849 = vld [vmem:[%s3 + $0x20] sm:$0xff]
    %v1850 = vld [vmem:[%s3 + $0x28] sm:$0xff]
    %v1851 = vld [vmem:[%s3 + $0x30] sm:$0xff]
    %v1852 = vld [vmem:[%s3 + $0x38] sm:$0xff]
    %v1853 = vld [vmem:[%s3 + $0x40] sm:$0xff]
    %v1854 = vld [vmem:[%s3 + $0x48] sm:$0xff]
    %v1855 = vld [vmem:[%s3 + $0x50] sm:$0xff]
    %v1856 = vld [vmem:[%s3 + $0x58] sm:$0xff]
    %v1857 = vld [vmem:[%s3 + $0x60] sm:$0xff]
    %v1858 = vld [vmem:[%s3 + $0x68] sm:$0xff]
    %v1859 = vld [vmem:[%s3 + $0x70] sm:$0xff]
    %v1860 = vld [vmem:[%s3 + $0x78] sm:$0xff]
    %v1861 = vld [vmem:[%s3 + $0x80] sm:$0xff]
    %v1862 = vld [vmem:[%s3 + $0x88] sm:$0xff]
    %v1863 = vld [vmem:[%s3 + $0x90] sm:$0xff]
    %v1864 = vld [vmem:[%s3 + $0x98] sm:$0xff]
    %v1865 = vld [vmem:[%s3 + $0xa0] sm:$0xff]
    %v1866 = vld [vmem:[%s3 + $0xa8] sm:$0xff]
    %v1867 = vld [vmem:[%s3 + $0xb0] sm:$0xff]
    %v1868 = vld [vmem:[%s3 + $0xb8] sm:$0xff]
    %v1869 = vld [vmem:[%s3 + $0xc0] sm:$0xff]
    %v1870 = vld [vmem:[%s3 + $0xc8] sm:$0xff]
    %v1871 = vld [vmem:[%s3 + $0xd0] sm:$0xff]
    %v1872 = vld [vmem:[%s3 + $0xd8] sm:$0xff]
    %v1873 = vld [vmem:[%s3 + $0xe0] sm:$0xff]
    %v1874 = vld [vmem:[%s3 + $0xe8] sm:$0xff]
    %v1875 = vld [vmem:[%s3 + $0xf0] sm:$0xff]
    %v1876 = vld [vmem:[%s3 + $0xf8] sm:$0xff]
    %v1877 = vld [vmem:[%s3 + $0x100] sm:$0xff]
    %v1878 = vld [vmem:[%s3 + $0x108] sm:$0xff]
    %v1879 = vld [vmem:[%s3 + $0x110] sm:$0xff]
    %v1880 = vld [vmem:[%s3 + $0x118] sm:$0xff]
    %v1881 = vld [vmem:[%s3 + $0x120] sm:$0xff]
    %v1882 = vld [vmem:[%s3 + $0x128] sm:$0xff]
    %v1883 = vld [vmem:[%s3 + $0x130] sm:$0xff]
    %v1884 = vld [vmem:[%s3 + $0x138] sm:$0xff]
    %v1885 = vld [vmem:[%s3 + $0x140] sm:$0xff]
    %v1886 = vld [vmem:[%s3 + $0x148] sm:$0xff]
    %v1887 = vld [vmem:[%s3 + $0x150] sm:$0xff]
    %v1888 = vld [vmem:[%s3 + $0x158] sm:$0xff]
    %v1889 = vld [vmem:[%s3 + $0x160] sm:$0xff]
    %v1890 = vld [vmem:[%s3 + $0x168] sm:$0xff]
    %v1891 = vld [vmem:[%s3 + $0x170] sm:$0xff]
    %v1892 = vld [vmem:[%s3 + $0x178] sm:$0xff]
    %v1893 = vld [vmem:[%s3 + $0x180] sm:$0xff]
    %v1894 = vld [vmem:[%s3 + $0x188] sm:$0xff]
    %v1895 = vld [vmem:[%s3 + $0x190] sm:$0xff]
    %v1896 = vld [vmem:[%s3 + $0x198] sm:$0xff]
    %v1897 = vld [vmem:[%s3 + $0x1a0] sm:$0xff]
    %v1898 = vld [vmem:[%s3 + $0x1a8] sm:$0xff]
    %v1899 = vld [vmem:[%s3 + $0x1b0] sm:$0xff]
    %v1900 = vld [vmem:[%s3 + $0x1b8] sm:$0xff]
    %v1901 = vld [vmem:[%s3 + $0x1c0] sm:$0xff]
    %v1902 = vld [vmem:[%s3 + $0x1c8] sm:$0xff]
    %v1903 = vld [vmem:[%s3 + $0x1d0] sm:$0xff]
    %v1904 = vld [vmem:[%s3 + $0x1d8] sm:$0xff]
    %v1905 = vld [vmem:[%s3 + $0x1e0] sm:$0xff]
    %v1906 = vld [vmem:[%s3 + $0x1e8] sm:$0xff]
    %v1907 = vld [vmem:[%s3 + $0x1f0] sm:$0xff]
    %v1908 = vld [vmem:[%s3 + $0x1f8] sm:$0xff]
    %v1909 = vld [vmem:[%s4] sm:$0x3]
    %v1911 = vlaneseq
    %v1912 = vshrl.u32 %v1911, 7
    %v1913 = vsub.s32 0, %v1912
    %v1914 = vrot.slane %v1909, %v1913
    %v1915 = vlaneseq
    %v1916 = vshrl.u32 %v1915, 7
    %v1917 = vsub.s32 1, %v1916
    %v1918 = vrot.slane %v1909, %v1917
    %v1985 = vunpack.c.l.b16 %v1845
    %v1986 = vunpack.c.h.b16 %v1845
    %v1987 = vunpack.c.l.b16 %v1846
    %v1988 = vunpack.c.h.b16 %v1846
    %v1989 = vunpack.c.l.b16 %v1847
    %v1990 = vunpack.c.h.b16 %v1847
    %v1991 = vunpack.c.l.b16 %v1848
    %v1992 = vunpack.c.h.b16 %v1848
    %v1993 = vunpack.c.l.b16 %v1849
    %v1994 = vunpack.c.h.b16 %v1849
    %v1995 = vunpack.c.l.b16 %v1850
    %v1996 = vunpack.c.h.b16 %v1850
    %v1997 = vunpack.c.l.b16 %v1851
    %v1998 = vunpack.c.h.b16 %v1851
    %v1999 = vunpack.c.l.b16 %v1852
    %v2000 = vunpack.c.h.b16 %v1852
    %v2001 = vunpack.c.l.b16 %v1853
    %v2002 = vunpack.c.h.b16 %v1853
    %v2003 = vunpack.c.l.b16 %v1854
    %v2004 = vunpack.c.h.b16 %v1854
    %v2005 = vunpack.c.l.b16 %v1855
    %v2006 = vunpack.c.h.b16 %v1855
    %v2007 = vunpack.c.l.b16 %v1856
    %v2008 = vunpack.c.h.b16 %v1856
    %v2009 = vunpack.c.l.b16 %v1857
    %v2010 = vunpack.c.h.b16 %v1857
    %v2011 = vunpack.c.l.b16 %v1858
    %v2012 = vunpack.c.h.b16 %v1858
    %v2013 = vunpack.c.l.b16 %v1859
    %v2014 = vunpack.c.h.b16 %v1859
    %v2015 = vunpack.c.l.b16 %v1860
    %v2016 = vunpack.c.h.b16 %v1860
    %v2017 = vunpack.c.l.b16 %v1861
    %v2018 = vunpack.c.h.b16 %v1861
    %v2019 = vunpack.c.l.b16 %v1862
    %v2020 = vunpack.c.h.b16 %v1862
    %v2021 = vunpack.c.l.b16 %v1863
    %v2022 = vunpack.c.h.b16 %v1863
    %v2023 = vunpack.c.l.b16 %v1864
    %v2024 = vunpack.c.h.b16 %v1864
    %v2025 = vunpack.c.l.b16 %v1865
    %v2026 = vunpack.c.h.b16 %v1865
    %v2027 = vunpack.c.l.b16 %v1866
    %v2028 = vunpack.c.h.b16 %v1866
    %v2029 = vunpack.c.l.b16 %v1867
    %v2030 = vunpack.c.h.b16 %v1867
    %v2031 = vunpack.c.l.b16 %v1868
    %v2032 = vunpack.c.h.b16 %v1868
    %v2033 = vunpack.c.l.b16 %v1869
    %v2034 = vunpack.c.h.b16 %v1869
    %v2035 = vunpack.c.l.b16 %v1870
    %v2036 = vunpack.c.h.b16 %v1870
    %v2037 = vunpack.c.l.b16 %v1871
    %v2038 = vunpack.c.h.b16 %v1871
    %v2039 = vunpack.c.l.b16 %v1872
    %v2040 = vunpack.c.h.b16 %v1872
    %v2041 = vunpack.c.l.b16 %v1873
    %v2042 = vunpack.c.h.b16 %v1873
    %v2043 = vunpack.c.l.b16 %v1874
    %v2044 = vunpack.c.h.b16 %v1874
    %v2045 = vunpack.c.l.b16 %v1875
    %v2046 = vunpack.c.h.b16 %v1875
    %v2047 = vunpack.c.l.b16 %v1876
    %v2048 = vunpack.c.h.b16 %v1876
    %v2049 = vunpack.c.l.b16 %v1877
    %v2050 = vunpack.c.h.b16 %v1877
    %v2051 = vunpack.c.l.b16 %v1878
    %v2052 = vunpack.c.h.b16 %v1878
    %v2053 = vunpack.c.l.b16 %v1879
    %v2054 = vunpack.c.h.b16 %v1879
    %v2055 = vunpack.c.l.b16 %v1880
    %v2056 = vunpack.c.h.b16 %v1880
    %v2057 = vunpack.c.l.b16 %v1881
    %v2058 = vunpack.c.h.b16 %v1881
    %v2059 = vunpack.c.l.b16 %v1882
    %v2060 = vunpack.c.h.b16 %v1882
    %v2061 = vunpack.c.l.b16 %v1883
    %v2062 = vunpack.c.h.b16 %v1883
    %v2063 = vunpack.c.l.b16 %v1884
    %v2064 = vunpack.c.h.b16 %v1884
    %v2065 = vunpack.c.l.b16 %v1885
    %v2066 = vunpack.c.h.b16 %v1885
    %v2067 = vunpack.c.l.b16 %v1886
    %v2068 = vunpack.c.h.b16 %v1886
    %v2069 = vunpack.c.l.b16 %v1887
    %v2070 = vunpack.c.h.b16 %v1887
    %v2071 = vunpack.c.l.b16 %v1888
    %v2072 = vunpack.c.h.b16 %v1888
    %v2073 = vunpack.c.l.b16 %v1889
    %v2074 = vunpack.c.h.b16 %v1889
    %v2075 = vunpack.c.l.b16 %v1890
    %v2076 = vunpack.c.h.b16 %v1890
    %v2077 = vunpack.c.l.b16 %v1891
    %v2078 = vunpack.c.h.b16 %v1891
    %v2079 = vunpack.c.l.b16 %v1892
    %v2080 = vunpack.c.h.b16 %v1892
    %v2081 = vunpack.c.l.b16 %v1893
    %v2082 = vunpack.c.h.b16 %v1893
    %v2083 = vunpack.c.l.b16 %v1894
    %v2084 = vunpack.c.h.b16 %v1894
    %v2085 = vunpack.c.l.b16 %v1895
    %v2086 = vunpack.c.h.b16 %v1895
    %v2087 = vunpack.c.l.b16 %v1896
    %v2088 = vunpack.c.h.b16 %v1896
    %v2089 = vunpack.c.l.b16 %v1897
    %v2090 = vunpack.c.h.b16 %v1897
    %v2091 = vunpack.c.l.b16 %v1898
    %v2092 = vunpack.c.h.b16 %v1898
    %v2093 = vunpack.c.l.b16 %v1899
    %v2094 = vunpack.c.h.b16 %v1899
    %v2095 = vunpack.c.l.b16 %v1900
    %v2096 = vunpack.c.h.b16 %v1900
    %v2097 = vunpack.c.l.b16 %v1901
    %v2098 = vunpack.c.h.b16 %v1901
    %v2099 = vunpack.c.l.b16 %v1902
    %v2100 = vunpack.c.h.b16 %v1902
    %v2101 = vunpack.c.l.b16 %v1903
    %v2102 = vunpack.c.h.b16 %v1903
    %v2103 = vunpack.c.l.b16 %v1904
    %v2104 = vunpack.c.h.b16 %v1904
    %v2105 = vunpack.c.l.b16 %v1905
    %v2106 = vunpack.c.h.b16 %v1905
    %v2107 = vunpack.c.l.b16 %v1906
    %v2108 = vunpack.c.h.b16 %v1906
    %v2109 = vunpack.c.l.b16 %v1907
    %v2110 = vunpack.c.h.b16 %v1907
    %v2111 = vunpack.c.l.b16 %v1908
    %v2112 = vunpack.c.h.b16 %v1908
    %v2113 = vpack.c.b16 %v1987, %v1985
    %v2114 = vpack.c.b16 %v1988, %v1986
    %v2115 = vpack.c.b16 %v1991, %v1989
    %v2116 = vpack.c.b16 %v1992, %v1990
    %v2117 = vpack.c.b16 %v1995, %v1993
    %v2118 = vpack.c.b16 %v1996, %v1994
    %v2119 = vpack.c.b16 %v1999, %v1997
    %v2120 = vpack.c.b16 %v2000, %v1998
    %v2121 = vpack.c.b16 %v2003, %v2001
    %v2122 = vpack.c.b16 %v2004, %v2002
    %v2123 = vpack.c.b16 %v2007, %v2005
    %v2124 = vpack.c.b16 %v2008, %v2006
    %v2125 = vpack.c.b16 %v2011, %v2009
    %v2126 = vpack.c.b16 %v2012, %v2010
    %v2127 = vpack.c.b16 %v2015, %v2013
    %v2128 = vpack.c.b16 %v2016, %v2014
    %v2129 = vpack.c.b16 %v2019, %v2017
    %v2130 = vpack.c.b16 %v2020, %v2018
    %v2131 = vpack.c.b16 %v2023, %v2021
    %v2132 = vpack.c.b16 %v2024, %v2022
    %v2133 = vpack.c.b16 %v2027, %v2025
    %v2134 = vpack.c.b16 %v2028, %v2026
    %v2135 = vpack.c.b16 %v2031, %v2029
    %v2136 = vpack.c.b16 %v2032, %v2030
    %v2137 = vpack.c.b16 %v2035, %v2033
    %v2138 = vpack.c.b16 %v2036, %v2034
    %v2139 = vpack.c.b16 %v2039, %v2037
    %v2140 = vpack.c.b16 %v2040, %v2038
    %v2141 = vpack.c.b16 %v2043, %v2041
    %v2142 = vpack.c.b16 %v2044, %v2042
    %v2143 = vpack.c.b16 %v2047, %v2045
    %v2144 = vpack.c.b16 %v2048, %v2046
    %v2145 = vpack.c.b16 %v2051, %v2049
    %v2146 = vpack.c.b16 %v2052, %v2050
    %v2147 = vpack.c.b16 %v2055, %v2053
    %v2148 = vpack.c.b16 %v2056, %v2054
    %v2149 = vpack.c.b16 %v2059, %v2057
    %v2150 = vpack.c.b16 %v2060, %v2058
    %v2151 = vpack.c.b16 %v2063, %v2061
    %v2152 = vpack.c.b16 %v2064, %v2062
    %v2153 = vpack.c.b16 %v2067, %v2065
    %v2154 = vpack.c.b16 %v2068, %v2066
    %v2155 = vpack.c.b16 %v2071, %v2069
    %v2156 = vpack.c.b16 %v2072, %v2070
    %v2157 = vpack.c.b16 %v2075, %v2073
    %v2158 = vpack.c.b16 %v2076, %v2074
    %v2159 = vpack.c.b16 %v2079, %v2077
    %v2160 = vpack.c.b16 %v2080, %v2078
    %v2161 = vpack.c.b16 %v2083, %v2081
    %v2162 = vpack.c.b16 %v2084, %v2082
    %v2163 = vpack.c.b16 %v2087, %v2085
    %v2164 = vpack.c.b16 %v2088, %v2086
    %v2165 = vpack.c.b16 %v2091, %v2089
    %v2166 = vpack.c.b16 %v2092, %v2090
    %v2167 = vpack.c.b16 %v2095, %v2093
    %v2168 = vpack.c.b16 %v2096, %v2094
    %v2169 = vpack.c.b16 %v2099, %v2097
    %v2170 = vpack.c.b16 %v2100, %v2098
    %v2171 = vpack.c.b16 %v2103, %v2101
    %v2172 = vpack.c.b16 %v2104, %v2102
    %v2173 = vpack.c.b16 %v2107, %v2105
    %v2174 = vpack.c.b16 %v2108, %v2106
    %v2175 = vpack.c.b16 %v2111, %v2109
    %v2176 = vpack.c.b16 %v2112, %v2110
    %2241 = vmatprep.subr.bf16.mxu0 %v2114
    %2242 = vmatpush1.bf16.msra.mxu0 %v2113
    %2243 = vmatprep.subr.bf16.mxu0 %v2116
    %2244 = vmatpush1.bf16.msra.mxu0 %v2115
    %2245 = vmatprep.subr.bf16.mxu0 %v2118
    %2246 = vmatpush1.bf16.msra.mxu0 %v2117
    %2247 = vmatprep.subr.bf16.mxu0 %v2120
    %2248 = vmatpush1.bf16.msra.mxu0 %v2119
    %2249 = vmatprep.subr.bf16.mxu0 %v2122
    %2250 = vmatpush1.bf16.msra.mxu0 %v2121
    %2251 = vmatprep.subr.bf16.mxu0 %v2124
    %2252 = vmatpush1.bf16.msra.mxu0 %v2123
    %2253 = vmatprep.subr.bf16.mxu0 %v2126
    %2254 = vmatpush1.bf16.msra.mxu0 %v2125
    %2255 = vmatprep.subr.bf16.mxu0 %v2128
    %2256 = vmatpush1.bf16.msra.mxu0 %v2127
    %2257 = vmatprep.subr.bf16.mxu0 %v2130
    %2258 = vmatpush1.bf16.msra.mxu0 %v2129
    %2259 = vmatprep.subr.bf16.mxu0 %v2132
    %2260 = vmatpush1.bf16.msra.mxu0 %v2131
    %2261 = vmatprep.subr.bf16.mxu0 %v2134
    %2262 = vmatpush1.bf16.msra.mxu0 %v2133
    %2263 = vmatprep.subr.bf16.mxu0 %v2136
    %2264 = vmatpush1.bf16.msra.mxu0 %v2135
    %2265 = vmatprep.subr.bf16.mxu0 %v2138
    %2266 = vmatpush1.bf16.msra.mxu0 %v2137
    %2267 = vmatprep.subr.bf16.mxu0 %v2140
    %2268 = vmatpush1.bf16.msra.mxu0 %v2139
    %2269 = vmatprep.subr.bf16.mxu0 %v2142
    %2270 = vmatpush1.bf16.msra.mxu0 %v2141
    %2271 = vmatprep.subr.bf16.mxu0 %v2144
    %2272 = vmatpush1.bf16.msra.mxu0 %v2143
    %2273 = vmatprep.mubr.bf16.mxu0 %v1842
    %2274 = vmatmul.mubr.bf16.gmra.mrb[0].mxu0 %v1841
    %v2275 = vpop.f32.mrb[0].mxu0
    %v2276 = vadd.f32 %v1914, %v2275
    %v2277 = vpop.f32.mrb[0].mxu0
    %v2278 = vadd.f32 %v1918, %v2277
    %v2279 = vpop.f32.mrb[0].mxu0
    %v2280 = vadd.f32 %v1914, %v2279
    %v2281 = vpop.f32.mrb[0].mxu0
    %v2282 = vadd.f32 %v1918, %v2281
    %2283 = vdwg.mxu0
    %2284 = vmatprep.subr.bf16.mxu0 %v2146
    %2285 = vmatpush1.bf16.msra.mxu0 %v2145
    %2286 = vmatprep.subr.bf16.mxu0 %v2148
    %2287 = vmatpush1.bf16.msra.mxu0 %v2147
    %2288 = vmatprep.subr.bf16.mxu0 %v2150
    %2289 = vmatpush1.bf16.msra.mxu0 %v2149
    %2290 = vmatprep.subr.bf16.mxu0 %v2152
    %2291 = vmatpush1.bf16.msra.mxu0 %v2151
    %2292 = vmatprep.subr.bf16.mxu0 %v2154
    %2293 = vmatpush1.bf16.msra.mxu0 %v2153
    %2294 = vmatprep.subr.bf16.mxu0 %v2156
    %2295 = vmatpush1.bf16.msra.mxu0 %v2155
    %2296 = vmatprep.subr.bf16.mxu0 %v2158
    %2297 = vmatpush1.bf16.msra.mxu0 %v2157
    %2298 = vmatprep.subr.bf16.mxu0 %v2160
    %2299 = vmatpush1.bf16.msra.mxu0 %v2159
    %2300 = vmatprep.subr.bf16.mxu0 %v2162
    %2301 = vmatpush1.bf16.msra.mxu0 %v2161
    %2302 = vmatprep.subr.bf16.mxu0 %v2164
    %2303 = vmatpush1.bf16.msra.mxu0 %v2163
    %2304 = vmatprep.subr.bf16.mxu0 %v2166
    %2305 = vmatpush1.bf16.msra.mxu0 %v2165
    %2306 = vmatprep.subr.bf16.mxu0 %v2168
    %2307 = vmatpush1.bf16.msra.mxu0 %v2167
    %2308 = vmatprep.subr.bf16.mxu0 %v2170
    %2309 = vmatpush1.bf16.msra.mxu0 %v2169
    %2310 = vmatprep.subr.bf16.mxu0 %v2172
    %2311 = vmatpush1.bf16.msra.mxu0 %v2171
    %2312 = vmatprep.subr.bf16.mxu0 %v2174
    %2313 = vmatpush1.bf16.msra.mxu0 %v2173
    %2314 = vmatprep.subr.bf16.mxu0 %v2176
    %2315 = vmatpush1.bf16.msra.mxu0 %v2175
    %2316 = vmatprep.mubr.bf16.mxu0 %v1844
    %2317 = vmatmul.mubr.bf16.gmra.mrb[0].mxu0 %v1843
    %v2318 = vpop.f32.mrb[0].mxu0
    %v2319 = vadd.f32 %v2276, %v2318
    %v2320 = vpop.f32.mrb[0].mxu0
    %v2321 = vadd.f32 %v2278, %v2320
    %v2322 = vpop.f32.mrb[0].mxu0
    %v2323 = vadd.f32 %v2280, %v2322
    %v2324 = vpop.f32.mrb[0].mxu0
    %v2325 = vadd.f32 %v2282, %v2324
    %2326 = vdwg.mxu0
    %v2327 = vmul.f32 %v2321, 0.5
    %v2328 = vmul.f32 %v2325, 0.5
    %v2329 = vmul.f32 %v2327, 1.442695
    %v2330 = vpow.pop %v2329
    %v2331 = vmul.f32 %v2328, 1.442695
    %v2332 = vpow.pop %v2331
    %v2333 = vld [vmem:[%s9] sm:$0xff]
    %v2334 = vld [vmem:[%s9 + $0x8] sm:$0xff]
    %v2335 = vmul.f32 %v2333, %v2330
    %v2336 = vmul.f32 %v2334, %v2332
    %v2337 = vadd.f32 %v2319, %v2335
    %v2338 = vadd.f32 %v2323, %v2336
    %v2339 = vpack.c.bf16 %v2338, %v2337
    %v2340 = vld [vmem:[#allocation4] sm:$0xff]
    %v2341 = vld [vmem:[#allocation4 + $0x8] sm:$0xff]
    %v2342 = vld [vmem:[#allocation4 + $0x10] sm:$0xff]
    %v2343 = vld [vmem:[#allocation4 + $0x18] sm:$0xff]
    %v2344 = vld [vmem:[#allocation4 + $0x20] sm:$0xff]
    %v2345 = vld [vmem:[#allocation4 + $0x28] sm:$0xff]
    %v2346 = vld [vmem:[#allocation4 + $0x30] sm:$0xff]
    %v2347 = vld [vmem:[#allocation4 + $0x38] sm:$0xff]
    %v2348 = vld [vmem:[#allocation4 + $0x40] sm:$0xff]
    %v2349 = vld [vmem:[#allocation4 + $0x48] sm:$0xff]
    %v2350 = vld [vmem:[#allocation4 + $0x50] sm:$0xff]
    %v2351 = vld [vmem:[#allocation4 + $0x58] sm:$0xff]
    %v2352 = vld [vmem:[#allocation4 + $0x60] sm:$0xff]
    %v2353 = vld [vmem:[#allocation4 + $0x68] sm:$0xff]
    %v2354 = vld [vmem:[#allocation4 + $0x70] sm:$0xff]
    %v2355 = vld [vmem:[#allocation4 + $0x78] sm:$0xff]
    %v2356 = vld [vmem:[#allocation4 + $0x80] sm:$0xff]
    %v2357 = vld [vmem:[#allocation4 + $0x88] sm:$0xff]
    %v2358 = vld [vmem:[#allocation4 + $0x90] sm:$0xff]
    %v2359 = vld [vmem:[#allocation4 + $0x98] sm:$0xff]
    %v2360 = vld [vmem:[#allocation4 + $0xa0] sm:$0xff]
    %v2361 = vld [vmem:[#allocation4 + $0xa8] sm:$0xff]
    %v2362 = vld [vmem:[#allocation4 + $0xb0] sm:$0xff]
    %v2363 = vld [vmem:[#allocation4 + $0xb8] sm:$0xff]
    %v2364 = vld [vmem:[#allocation4 + $0xc0] sm:$0xff]
    %v2365 = vld [vmem:[#allocation4 + $0xc8] sm:$0xff]
    %v2366 = vld [vmem:[#allocation4 + $0xd0] sm:$0xff]
    %v2367 = vld [vmem:[#allocation4 + $0xd8] sm:$0xff]
    %v2368 = vld [vmem:[#allocation4 + $0xe0] sm:$0xff]
    %v2369 = vld [vmem:[#allocation4 + $0xe8] sm:$0xff]
    %v2370 = vld [vmem:[#allocation4 + $0xf0] sm:$0xff]
    %v2371 = vld [vmem:[#allocation4 + $0xf8] sm:$0xff]
    %v2372 = vld [vmem:[%s6] sm:$0xf]
    %v2374 = vlaneseq
    %v2375 = vshrl.u32 %v2374, 7
    %v2376 = vsub.s32 0, %v2375
    %v2377 = vrot.slane %v2372, %v2376
    %v2378 = vlaneseq
    %v2379 = vshrl.u32 %v2378, 7
    %v2380 = vsub.s32 1, %v2379
    %v2381 = vrot.slane %v2372, %v2380
    %v2382 = vlaneseq
    %v2383 = vshrl.u32 %v2382, 7
    %v2384 = vsub.s32 2, %v2383
    %v2385 = vrot.slane %v2372, %v2384
    %v2386 = vlaneseq
    %v2387 = vshrl.u32 %v2386, 7
    %v2388 = vsub.s32 3, %v2387
    %v2389 = vrot.slane %v2372, %v2388
    %v2426 = vunpack.c.l.b16 %v2340
    %v2427 = vunpack.c.h.b16 %v2340
    %v2428 = vunpack.c.l.b16 %v2341
    %v2429 = vunpack.c.h.b16 %v2341
    %v2430 = vunpack.c.l.b16 %v2342
    %v2431 = vunpack.c.h.b16 %v2342
    %v2432 = vunpack.c.l.b16 %v2343
    %v2433 = vunpack.c.h.b16 %v2343
    %v2434 = vunpack.c.l.b16 %v2344
    %v2435 = vunpack.c.h.b16 %v2344
    %v2436 = vunpack.c.l.b16 %v2345
    %v2437 = vunpack.c.h.b16 %v2345
    %v2438 = vunpack.c.l.b16 %v2346
    %v2439 = vunpack.c.h.b16 %v2346
    %v2440 = vunpack.c.l.b16 %v2347
    %v2441 = vunpack.c.h.b16 %v2347
    %v2442 = vunpack.c.l.b16 %v2348
    %v2443 = vunpack.c.h.b16 %v2348
    %v2444 = vunpack.c.l.b16 %v2349
    %v2445 = vunpack.c.h.b16 %v2349
    %v2446 = vunpack.c.l.b16 %v2350
    %v2447 = vunpack.c.h.b16 %v2350
    %v2448 = vunpack.c.l.b16 %v2351
    %v2449 = vunpack.c.h.b16 %v2351
    %v2450 = vunpack.c.l.b16 %v2352
    %v2451 = vunpack.c.h.b16 %v2352
    %v2452 = vunpack.c.l.b16 %v2353
    %v2453 = vunpack.c.h.b16 %v2353
    %v2454 = vunpack.c.l.b16 %v2354
    %v2455 = vunpack.c.h.b16 %v2354
    %v2456 = vunpack.c.l.b16 %v2355
    %v2457 = vunpack.c.h.b16 %v2355
    %v2458 = vunpack.c.l.b16 %v2356
    %v2459 = vunpack.c.h.b16 %v2356
    %v2460 = vunpack.c.l.b16 %v2357
    %v2461 = vunpack.c.h.b16 %v2357
    %v2462 = vunpack.c.l.b16 %v2358
    %v2463 = vunpack.c.h.b16 %v2358
    %v2464 = vunpack.c.l.b16 %v2359
    %v2465 = vunpack.c.h.b16 %v2359
    %v2466 = vunpack.c.l.b16 %v2360
    %v2467 = vunpack.c.h.b16 %v2360
    %v2468 = vunpack.c.l.b16 %v2361
    %v2469 = vunpack.c.h.b16 %v2361
    %v2470 = vunpack.c.l.b16 %v2362
    %v2471 = vunpack.c.h.b16 %v2362
    %v2472 = vunpack.c.l.b16 %v2363
    %v2473 = vunpack.c.h.b16 %v2363
    %v2474 = vunpack.c.l.b16 %v2364
    %v2475 = vunpack.c.h.b16 %v2364
    %v2476 = vunpack.c.l.b16 %v2365
    %v2477 = vunpack.c.h.b16 %v2365
    %v2478 = vunpack.c.l.b16 %v2366
    %v2479 = vunpack.c.h.b16 %v2366
    %v2480 = vunpack.c.l.b16 %v2367
    %v2481 = vunpack.c.h.b16 %v2367
    %v2482 = vunpack.c.l.b16 %v2368
    %v2483 = vunpack.c.h.b16 %v2368
    %v2484 = vunpack.c.l.b16 %v2369
    %v2485 = vunpack.c.h.b16 %v2369
    %v2486 = vunpack.c.l.b16 %v2370
    %v2487 = vunpack.c.h.b16 %v2370
    %v2488 = vunpack.c.l.b16 %v2371
    %v2489 = vunpack.c.h.b16 %v2371
    %v2490 = vpack.c.b16 %v2430, %v2426
    %v2491 = vpack.c.b16 %v2431, %v2427
    %v2492 = vpack.c.b16 %v2432, %v2428
    %v2493 = vpack.c.b16 %v2433, %v2429
    %v2494 = vpack.c.b16 %v2438, %v2434
    %v2495 = vpack.c.b16 %v2439, %v2435
    %v2496 = vpack.c.b16 %v2440, %v2436
    %v2497 = vpack.c.b16 %v2441, %v2437
    %v2498 = vpack.c.b16 %v2446, %v2442
    %v2499 = vpack.c.b16 %v2447, %v2443
    %v2500 = vpack.c.b16 %v2448, %v2444
    %v2501 = vpack.c.b16 %v2449, %v2445
    %v2502 = vpack.c.b16 %v2454, %v2450
    %v2503 = vpack.c.b16 %v2455, %v2451
    %v2504 = vpack.c.b16 %v2456, %v2452
    %v2505 = vpack.c.b16 %v2457, %v2453
    %v2506 = vpack.c.b16 %v2462, %v2458
    %v2507 = vpack.c.b16 %v2463, %v2459
    %v2508 = vpack.c.b16 %v2464, %v2460
    %v2509 = vpack.c.b16 %v2465, %v2461
    %v2510 = vpack.c.b16 %v2470, %v2466
    %v2511 = vpack.c.b16 %v2471, %v2467
    %v2512 = vpack.c.b16 %v2472, %v2468
    %v2513 = vpack.c.b16 %v2473, %v2469
    %v2514 = vpack.c.b16 %v2478, %v2474
    %v2515 = vpack.c.b16 %v2479, %v2475
    %v2516 = vpack.c.b16 %v2480, %v2476
    %v2517 = vpack.c.b16 %v2481, %v2477
    %v2518 = vpack.c.b16 %v2486, %v2482
    %v2519 = vpack.c.b16 %v2487, %v2483
    %v2520 = vpack.c.b16 %v2488, %v2484
    %v2521 = vpack.c.b16 %v2489, %v2485
    %2554 = vmatprep.subr.bf16.mxu0 %v2491
    %2555 = vmatpush1.bf16.msra.mxu0 %v2490
    %2556 = vmatprep.subr.bf16.mxu0 %v2495
    %2557 = vmatpush1.bf16.msra.mxu0 %v2494
    %2558 = vmatprep.subr.bf16.mxu0 %v2499
    %2559 = vmatpush1.bf16.msra.mxu0 %v2498
    %2560 = vmatprep.subr.bf16.mxu0 %v2503
    %2561 = vmatpush1.bf16.msra.mxu0 %v2502
    %2562 = vmatprep.subr.bf16.mxu0 %v2507
    %2563 = vmatpush1.bf16.msra.mxu0 %v2506
    %2564 = vmatprep.subr.bf16.mxu0 %v2511
    %2565 = vmatpush1.bf16.msra.mxu0 %v2510
    %2566 = vmatprep.subr.bf16.mxu0 %v2515
    %2567 = vmatpush1.bf16.msra.mxu0 %v2514
    %2568 = vmatprep.subr.bf16.mxu0 %v2519
    %2569 = vmatpush1.bf16.msra.mxu0 %v2518
    %2570 = vmatprep.subr.bf16.mxu0 0
    %2571 = vmatpush1.bf16.msra.mxu0 0
    %2572 = vmatprep.subr.bf16.mxu0 0
    %2573 = vmatpush1.bf16.msra.mxu0 0
    %2574 = vmatprep.subr.bf16.mxu0 0
    %2575 = vmatpush1.bf16.msra.mxu0 0
    %2576 = vmatprep.subr.bf16.mxu0 0
    %2577 = vmatpush1.bf16.msra.mxu0 0
    %2578 = vmatprep.subr.bf16.mxu0 0
    %2579 = vmatpush1.bf16.msra.mxu0 0
    %2580 = vmatprep.subr.bf16.mxu0 0
    %2581 = vmatpush1.bf16.msra.mxu0 0
    %2582 = vmatprep.subr.bf16.mxu0 0
    %2583 = vmatpush1.bf16.msra.mxu0 0
    %2584 = vmatprep.subr.bf16.mxu0 0
    %2585 = vmatpush1.bf16.msra.mxu0 0
    %2586 = vmatprep.mubr.bf16.mxu0 0
    %2587 = vmatmul.mubr.bf16.gmra.mrb[0].mxu0 %v2339
    %v2588 = vpop.f32.mrb[0].mxu0
    %v2589 = vadd.f32 %v2377, %v2588
    %v2590 = vpop.f32.mrb[0].mxu0
    %v2591 = vadd.f32 %v2381, %v2590
    %v2592 = vpop.f32.mrb[0].mxu0
    %v2593 = vadd.f32 %v2377, %v2592
    %v2594 = vpop.f32.mrb[0].mxu0
    %v2595 = vadd.f32 %v2381, %v2594
    %2596 = vdwg.mxu0
    %2597 = vmatprep.subr.bf16.mxu0 %v2493
    %2598 = vmatpush1.bf16.msra.mxu0 %v2492
    %2599 = vmatprep.subr.bf16.mxu0 %v2497
    %2600 = vmatpush1.bf16.msra.mxu0 %v2496
    %2601 = vmatprep.subr.bf16.mxu0 %v2501
    %2602 = vmatpush1.bf16.msra.mxu0 %v2500
    %2603 = vmatprep.subr.bf16.mxu0 %v2505
    %2604 = vmatpush1.bf16.msra.mxu0 %v2504
    %2605 = vmatprep.subr.bf16.mxu0 %v2509
    %2606 = vmatpush1.bf16.msra.mxu0 %v2508
    %2607 = vmatprep.subr.bf16.mxu0 %v2513
    %2608 = vmatpush1.bf16.msra.mxu0 %v2512
    %2609 = vmatprep.subr.bf16.mxu0 %v2517
    %2610 = vmatpush1.bf16.msra.mxu0 %v2516
    %2611 = vmatprep.subr.bf16.mxu0 %v2521
    %2612 = vmatpush1.bf16.msra.mxu0 %v2520
    %2613 = vmatprep.subr.bf16.mxu0 0
    %2614 = vmatpush1.bf16.msra.mxu0 0
    %2615 = vmatprep.subr.bf16.mxu0 0
    %2616 = vmatpush1.bf16.msra.mxu0 0
    %2617 = vmatprep.subr.bf16.mxu0 0
    %2618 = vmatpush1.bf16.msra.mxu0 0
    %2619 = vmatprep.subr.bf16.mxu0 0
    %2620 = vmatpush1.bf16.msra.mxu0 0
    %2621 = vmatprep.subr.bf16.mxu0 0
    %2622 = vmatpush1.bf16.msra.mxu0 0
    %2623 = vmatprep.subr.bf16.mxu0 0
    %2624 = vmatpush1.bf16.msra.mxu0 0
    %2625 = vmatprep.subr.bf16.mxu0 0
    %2626 = vmatpush1.bf16.msra.mxu0 0
    %2627 = vmatprep.subr.bf16.mxu0 0
    %2628 = vmatpush1.bf16.msra.mxu0 0
    %2629 = vmatprep.mubr.bf16.mxu0 0
    %2630 = vmatmul.mubr.bf16.gmra.mrb[0].mxu0 %v2339
    %v2631 = vpop.f32.mrb[0].mxu0
    %v2632 = vadd.f32 %v2385, %v2631
    %v2633 = vpop.f32.mrb[0].mxu0
    %v2634 = vadd.f32 %v2389, %v2633
    %v2635 = vpop.f32.mrb[0].mxu0
    %v2636 = vadd.f32 %v2385, %v2635
    %v2637 = vpop.f32.mrb[0].mxu0
    %v2638 = vadd.f32 %v2389, %v2637
    %2639 = vdwg.mxu0
    %v2640 = vmax.f32 %v2589, 0.0
    %v2641 = vmax.f32 %v2591, 0.0
    %v2642 = vmax.f32 %v2632, 0.0
    %v2643 = vmax.f32 %v2634, 0.0
    %v2644 = vmax.f32 %v2593, 0.0
    %v2645 = vmax.f32 %v2595, 0.0
    %v2646 = vmax.f32 %v2636, 0.0
    %v2647 = vmax.f32 %v2638, 0.0
    %v2648 = vpack.c.bf16 %v2644, %v2640
    %v2649 = vpack.c.bf16 %v2645, %v2641
    %v2650 = vpack.c.bf16 %v2646, %v2642
    %v2651 = vpack.c.bf16 %v2647, %v2643
    %v2652 = vld [vmem:[#allocation6] sm:$0xff]
    %v2653 = vld [vmem:[#allocation6 + $0x8] sm:$0xff]
    %v2654 = vld [vmem:[#allocation6 + $0x10] sm:$0xff]
    %v2655 = vld [vmem:[#allocation6 + $0x18] sm:$0xf]
    %v2656 = vld [vmem:[#allocation6 + $0x1c] sm:$0xff]
    %v2657 = vld [vmem:[#allocation6 + $0x24] sm:$0xff]
    %v2658 = vld [vmem:[#allocation6 + $0x2c] sm:$0xff]
    %v2659 = vld [vmem:[#allocation6 + $0x34] sm:$0xf]
    %v2660 = vld [vmem:[#allocation6 + $0x38] sm:$0xff]
    %v2661 = vld [vmem:[#allocation6 + $0x40] sm:$0xff]
    %v2662 = vld [vmem:[#allocation6 + $0x48] sm:$0xff]
    %v2663 = vld [vmem:[#allocation6 + $0x50] sm:$0xf]
    %v2664 = vld [vmem:[#allocation6 + $0x54] sm:$0xff]
    %v2665 = vld [vmem:[#allocation6 + $0x5c] sm:$0xff]
    %v2666 = vld [vmem:[#allocation6 + $0x64] sm:$0xff]
    %v2667 = vld [vmem:[#allocation6 + $0x6c] sm:$0xf]
    %v2668 = vld [vmem:[#allocation6 + $0x70] sm:$0xff]
    %v2669 = vld [vmem:[#allocation6 + $0x78] sm:$0xff]
    %v2670 = vld [vmem:[#allocation6 + $0x80] sm:$0xff]
    %v2671 = vld [vmem:[#allocation6 + $0x88] sm:$0xf]
    %v2672 = vld [vmem:[#allocation6 + $0x8c] sm:$0xff]
    %v2673 = vld [vmem:[#allocation6 + $0x94] sm:$0xff]
    %v2674 = vld [vmem:[#allocation6 + $0x9c] sm:$0xff]
    %v2675 = vld [vmem:[#allocation6 + $0xa4] sm:$0xf]
    %v2676 = vld [vmem:[#allocation6 + $0xa8] sm:$0xff]
    %v2677 = vld [vmem:[#allocation6 + $0xb0] sm:$0xff]
    %v2678 = vld [vmem:[#allocation6 + $0xb8] sm:$0xff]
    %v2679 = vld [vmem:[#allocation6 + $0xc0] sm:$0xf]
    %v2680 = vld [vmem:[#allocation6 + $0xc4] sm:$0xff]
    %v2681 = vld [vmem:[#allocation6 + $0xcc] sm:$0xff]
    %v2682 = vld [vmem:[#allocation6 + $0xd4] sm:$0xff]
    %v2683 = vld [vmem:[#allocation6 + $0xdc] sm:$0xf]
    %v2684 = vld [vmem:[#allocation6 + $0xe0] sm:$0xff]
    %v2685 = vld [vmem:[#allocation6 + $0xe8] sm:$0xff]
    %v2686 = vld [vmem:[#allocation6 + $0xf0] sm:$0xff]
    %v2687 = vld [vmem:[#allocation6 + $0xf8] sm:$0xf]
    %v2688 = vld [vmem:[#allocation6 + $0xfc] sm:$0xff]
    %v2689 = vld [vmem:[#allocation6 + $0x104] sm:$0xff]
    %v2690 = vld [vmem:[#allocation6 + $0x10c] sm:$0xff]
    %v2691 = vld [vmem:[#allocation6 + $0x114] sm:$0xf]
    %v2692 = vld [vmem:[#allocation6 + $0x118] sm:$0xff]
    %v2693 = vld [vmem:[#allocation6 + $0x120] sm:$0xff]
    %v2694 = vld [vmem:[#allocation6 + $0x128] sm:$0xff]
    %v2695 = vld [vmem:[#allocation6 + $0x130] sm:$0xf]
    %v2696 = vld [vmem:[#allocation6 + $0x134] sm:$0xff]
    %v2697 = vld [vmem:[#allocation6 + $0x13c] sm:$0xff]
    %v2698 = vld [vmem:[#allocation6 + $0x144] sm:$0xff]
    %v2699 = vld [vmem:[#allocation6 + $0x14c] sm:$0xf]
    %v2700 = vld [vmem:[#allocation6 + $0x150] sm:$0xff]
    %v2701 = vld [vmem:[#allocation6 + $0x158] sm:$0xff]
    %v2702 = vld [vmem:[#allocation6 + $0x160] sm:$0xff]
    %v2703 = vld [vmem:[#allocation6 + $0x168] sm:$0xf]
    %v2704 = vld [vmem:[#allocation6 + $0x16c] sm:$0xff]
    %v2705 = vld [vmem:[#allocation6 + $0x174] sm:$0xff]
    %v2706 = vld [vmem:[#allocation6 + $0x17c] sm:$0xff]
    %v2707 = vld [vmem:[#allocation6 + $0x184] sm:$0xf]
    %v2708 = vld [vmem:[#allocation6 + $0x188] sm:$0xff]
    %v2709 = vld [vmem:[#allocation6 + $0x190] sm:$0xff]
    %v2710 = vld [vmem:[#allocation6 + $0x198] sm:$0xff]
    %v2711 = vld [vmem:[#allocation6 + $0x1a0] sm:$0xf]
    %v2712 = vld [vmem:[#allocation6 + $0x1a4] sm:$0xff]
    %v2713 = vld [vmem:[#allocation6 + $0x1ac] sm:$0xff]
    %v2714 = vld [vmem:[#allocation6 + $0x1b4] sm:$0xff]
    %v2715 = vld [vmem:[#allocation6 + $0x1bc] sm:$0xf]
    %v2716 = vld [vmem:[#allocation6 + $0x1c0] sm:$0xff]
    %v2717 = vld [vmem:[#allocation6 + $0x1c8] sm:$0xff]
    %v2718 = vld [vmem:[#allocation6 + $0x1d0] sm:$0xff]
    %v2719 = vld [vmem:[#allocation6 + $0x1d8] sm:$0xf]
    %v2720 = vld [vmem:[#allocation6 + $0x1dc] sm:$0xff]
    %v2721 = vld [vmem:[#allocation6 + $0x1e4] sm:$0xff]
    %v2722 = vld [vmem:[#allocation6 + $0x1ec] sm:$0xff]
    %v2723 = vld [vmem:[#allocation6 + $0x1f4] sm:$0xf]
    %v2724 = vld [vmem:[#allocation6 + $0x1f8] sm:$0xff]
    %v2725 = vld [vmem:[#allocation6 + $0x200] sm:$0xff]
    %v2726 = vld [vmem:[#allocation6 + $0x208] sm:$0xff]
    %v2727 = vld [vmem:[#allocation6 + $0x210] sm:$0xf]
    %v2728 = vld [vmem:[#allocation6 + $0x214] sm:$0xff]
    %v2729 = vld [vmem:[#allocation6 + $0x21c] sm:$0xff]
    %v2730 = vld [vmem:[#allocation6 + $0x224] sm:$0xff]
    %v2731 = vld [vmem:[#allocation6 + $0x22c] sm:$0xf]
    %v2732 = vld [vmem:[#allocation6 + $0x230] sm:$0xff]
    %v2733 = vld [vmem:[#allocation6 + $0x238] sm:$0xff]
    %v2734 = vld [vmem:[#allocation6 + $0x240] sm:$0xff]
    %v2735 = vld [vmem:[#allocation6 + $0x248] sm:$0xf]
    %v2736 = vld [vmem:[#allocation6 + $0x24c] sm:$0xff]
    %v2737 = vld [vmem:[#allocation6 + $0x254] sm:$0xff]
    %v2738 = vld [vmem:[#allocation6 + $0x25c] sm:$0xff]
    %v2739 = vld [vmem:[#allocation6 + $0x264] sm:$0xf]
    %v2740 = vld [vmem:[#allocation6 + $0x268] sm:$0xff]
    %v2741 = vld [vmem:[#allocation6 + $0x270] sm:$0xff]
    %v2742 = vld [vmem:[#allocation6 + $0x278] sm:$0xff]
    %v2743 = vld [vmem:[#allocation6 + $0x280] sm:$0xf]
    %v2744 = vld [vmem:[#allocation6 + $0x284] sm:$0xff]
    %v2745 = vld [vmem:[#allocation6 + $0x28c] sm:$0xff]
    %v2746 = vld [vmem:[#allocation6 + $0x294] sm:$0xff]
    %v2747 = vld [vmem:[#allocation6 + $0x29c] sm:$0xf]
    %v2748 = vld [vmem:[#allocation6 + $0x2a0] sm:$0xff]
    %v2749 = vld [vmem:[#allocation6 + $0x2a8] sm:$0xff]
    %v2750 = vld [vmem:[#allocation6 + $0x2b0] sm:$0xff]
    %v2751 = vld [vmem:[#allocation6 + $0x2b8] sm:$0xf]
    %v2752 = vld [vmem:[#allocation6 + $0x2bc] sm:$0xff]
    %v2753 = vld [vmem:[#allocation6 + $0x2c4] sm:$0xff]
    %v2754 = vld [vmem:[#allocation6 + $0x2cc] sm:$0xff]
    %v2755 = vld [vmem:[#allocation6 + $0x2d4] sm:$0xf]
    %v2756 = vld [vmem:[#allocation6 + $0x2d8] sm:$0xff]
    %v2757 = vld [vmem:[#allocation6 + $0x2e0] sm:$0xff]
    %v2758 = vld [vmem:[#allocation6 + $0x2e8] sm:$0xff]
    %v2759 = vld [vmem:[#allocation6 + $0x2f0] sm:$0xf]
    %v2760 = vld [vmem:[#allocation6 + $0x2f4] sm:$0xff]
    %v2761 = vld [vmem:[#allocation6 + $0x2fc] sm:$0xff]
    %v2762 = vld [vmem:[#allocation6 + $0x304] sm:$0xff]
    %v2763 = vld [vmem:[#allocation6 + $0x30c] sm:$0xf]
    %v2764 = vld [vmem:[#allocation6 + $0x310] sm:$0xff]
    %v2765 = vld [vmem:[#allocation6 + $0x318] sm:$0xff]
    %v2766 = vld [vmem:[#allocation6 + $0x320] sm:$0xff]
    %v2767 = vld [vmem:[#allocation6 + $0x328] sm:$0xf]
    %v2768 = vld [vmem:[#allocation6 + $0x32c] sm:$0xff]
    %v2769 = vld [vmem:[#allocation6 + $0x334] sm:$0xff]
    %v2770 = vld [vmem:[#allocation6 + $0x33c] sm:$0xff]
    %v2771 = vld [vmem:[#allocation6 + $0x344] sm:$0xf]
    %v2772 = vld [vmem:[#allocation6 + $0x348] sm:$0xff]
    %v2773 = vld [vmem:[#allocation6 + $0x350] sm:$0xff]
    %v2774 = vld [vmem:[#allocation6 + $0x358] sm:$0xff]
    %v2775 = vld [vmem:[#allocation6 + $0x360] sm:$0xf]
    %v2776 = vld [vmem:[#allocation6 + $0x364] sm:$0xff]
    %v2777 = vld [vmem:[#allocation6 + $0x36c] sm:$0xff]
    %v2778 = vld [vmem:[#allocation6 + $0x374] sm:$0xff]
    %v2779 = vld [vmem:[#allocation6 + $0x37c] sm:$0xf]
    %v2780 = vld [vmem:[#allocation6 + $0x380] sm:$0xff]
    %v2781 = vld [vmem:[#allocation6 + $0x388] sm:$0xff]
    %v2782 = vld [vmem:[#allocation6 + $0x390] sm:$0xff]
    %v2783 = vld [vmem:[#allocation6 + $0x398] sm:$0xf]
    %v2784 = vld [vmem:[#allocation6 + $0x39c] sm:$0xff]
    %v2785 = vld [vmem:[#allocation6 + $0x3a4] sm:$0xff]
    %v2786 = vld [vmem:[#allocation6 + $0x3ac] sm:$0xff]
    %v2787 = vld [vmem:[#allocation6 + $0x3b4] sm:$0xf]
    %v2788 = vld [vmem:[#allocation6 + $0x3b8] sm:$0xff]
    %v2789 = vld [vmem:[#allocation6 + $0x3c0] sm:$0xff]
    %v2790 = vld [vmem:[#allocation6 + $0x3c8] sm:$0xff]
    %v2791 = vld [vmem:[#allocation6 + $0x3d0] sm:$0xf]
    %v2792 = vld [vmem:[#allocation6 + $0x3d4] sm:$0xff]
    %v2793 = vld [vmem:[#allocation6 + $0x3dc] sm:$0xff]
    %v2794 = vld [vmem:[#allocation6 + $0x3e4] sm:$0xff]
    %v2795 = vld [vmem:[#allocation6 + $0x3ec] sm:$0xf]
    %v2796 = vld [vmem:[#allocation6 + $0x3f0] sm:$0xff]
    %v2797 = vld [vmem:[#allocation6 + $0x3f8] sm:$0xff]
    %v2798 = vld [vmem:[#allocation6 + $0x400] sm:$0xff]
    %v2799 = vld [vmem:[#allocation6 + $0x408] sm:$0xf]
    %v2800 = vld [vmem:[#allocation6 + $0x40c] sm:$0xff]
    %v2801 = vld [vmem:[#allocation6 + $0x414] sm:$0xff]
    %v2802 = vld [vmem:[#allocation6 + $0x41c] sm:$0xff]
    %v2803 = vld [vmem:[#allocation6 + $0x424] sm:$0xf]
    %v2804 = vld [vmem:[#allocation6 + $0x428] sm:$0xff]
    %v2805 = vld [vmem:[#allocation6 + $0x430] sm:$0xff]
    %v2806 = vld [vmem:[#allocation6 + $0x438] sm:$0xff]
    %v2807 = vld [vmem:[#allocation6 + $0x440] sm:$0xf]
    %v2808 = vld [vmem:[#allocation6 + $0x444] sm:$0xff]
    %v2809 = vld [vmem:[#allocation6 + $0x44c] sm:$0xff]
    %v2810 = vld [vmem:[#allocation6 + $0x454] sm:$0xff]
    %v2811 = vld [vmem:[#allocation6 + $0x45c] sm:$0xf]
    %v2812 = vld [vmem:[#allocation6 + $0x460] sm:$0xff]
    %v2813 = vld [vmem:[#allocation6 + $0x468] sm:$0xff]
    %v2814 = vld [vmem:[#allocation6 + $0x470] sm:$0xff]
    %v2815 = vld [vmem:[#allocation6 + $0x478] sm:$0xf]
    %v2816 = vld [vmem:[#allocation6 + $0x47c] sm:$0xff]
    %v2817 = vld [vmem:[#allocation6 + $0x484] sm:$0xff]
    %v2818 = vld [vmem:[#allocation6 + $0x48c] sm:$0xff]
    %v2819 = vld [vmem:[#allocation6 + $0x494] sm:$0xf]
    %v2820 = vld [vmem:[#allocation6 + $0x498] sm:$0xff]
    %v2821 = vld [vmem:[#allocation6 + $0x4a0] sm:$0xff]
    %v2822 = vld [vmem:[#allocation6 + $0x4a8] sm:$0xff]
    %v2823 = vld [vmem:[#allocation6 + $0x4b0] sm:$0xf]
    %v2824 = vld [vmem:[#allocation6 + $0x4b4] sm:$0xff]
    %v2825 = vld [vmem:[#allocation6 + $0x4bc] sm:$0xff]
    %v2826 = vld [vmem:[#allocation6 + $0x4c4] sm:$0xff]
    %v2827 = vld [vmem:[#allocation6 + $0x4cc] sm:$0xf]
    %v2828 = vld [vmem:[#allocation6 + $0x4d0] sm:$0xff]
    %v2829 = vld [vmem:[#allocation6 + $0x4d8] sm:$0xff]
    %v2830 = vld [vmem:[#allocation6 + $0x4e0] sm:$0xff]
    %v2831 = vld [vmem:[#allocation6 + $0x4e8] sm:$0xf]
    %v2832 = vld [vmem:[#allocation6 + $0x4ec] sm:$0xff]
    %v2833 = vld [vmem:[#allocation6 + $0x4f4] sm:$0xff]
    %v2834 = vld [vmem:[#allocation6 + $0x4fc] sm:$0xff]
    %v2835 = vld [vmem:[#allocation6 + $0x504] sm:$0xf]
    %v2836 = vld [vmem:[#allocation6 + $0x508] sm:$0xff]
    %v2837 = vld [vmem:[#allocation6 + $0x510] sm:$0xff]
    %v2838 = vld [vmem:[#allocation6 + $0x518] sm:$0xff]
    %v2839 = vld [vmem:[#allocation6 + $0x520] sm:$0xf]
    %v2840 = vld [vmem:[#allocation6 + $0x524] sm:$0xff]
    %v2841 = vld [vmem:[#allocation6 + $0x52c] sm:$0xff]
    %v2842 = vld [vmem:[#allocation6 + $0x534] sm:$0xff]
    %v2843 = vld [vmem:[#allocation6 + $0x53c] sm:$0xf]
    %v2844 = vld [vmem:[#allocation6 + $0x540] sm:$0xff]
    %v2845 = vld [vmem:[#allocation6 + $0x548] sm:$0xff]
    %v2846 = vld [vmem:[#allocation6 + $0x550] sm:$0xff]
    %v2847 = vld [vmem:[#allocation6 + $0x558] sm:$0xf]
    %v2848 = vld [vmem:[#allocation6 + $0x55c] sm:$0xff]
    %v2849 = vld [vmem:[#allocation6 + $0x564] sm:$0xff]
    %v2850 = vld [vmem:[#allocation6 + $0x56c] sm:$0xff]
    %v2851 = vld [vmem:[#allocation6 + $0x574] sm:$0xf]
    %v2852 = vld [vmem:[#allocation6 + $0x578] sm:$0xff]
    %v2853 = vld [vmem:[#allocation6 + $0x580] sm:$0xff]
    %v2854 = vld [vmem:[#allocation6 + $0x588] sm:$0xff]
    %v2855 = vld [vmem:[#allocation6 + $0x590] sm:$0xf]
    %v2856 = vld [vmem:[#allocation6 + $0x594] sm:$0xff]
    %v2857 = vld [vmem:[#allocation6 + $0x59c] sm:$0xff]
    %v2858 = vld [vmem:[#allocation6 + $0x5a4] sm:$0xff]
    %v2859 = vld [vmem:[#allocation6 + $0x5ac] sm:$0xf]
    %v2860 = vld [vmem:[#allocation6 + $0x5b0] sm:$0xff]
    %v2861 = vld [vmem:[#allocation6 + $0x5b8] sm:$0xff]
    %v2862 = vld [vmem:[#allocation6 + $0x5c0] sm:$0xff]
    %v2863 = vld [vmem:[#allocation6 + $0x5c8] sm:$0xf]
    %v2864 = vld [vmem:[#allocation6 + $0x5cc] sm:$0xff]
    %v2865 = vld [vmem:[#allocation6 + $0x5d4] sm:$0xff]
    %v2866 = vld [vmem:[#allocation6 + $0x5dc] sm:$0xff]
    %v2867 = vld [vmem:[#allocation6 + $0x5e4] sm:$0xf]
    %v2868 = vld [vmem:[#allocation6 + $0x5e8] sm:$0xff]
    %v2869 = vld [vmem:[#allocation6 + $0x5f0] sm:$0xff]
    %v2870 = vld [vmem:[#allocation6 + $0x5f8] sm:$0xff]
    %v2871 = vld [vmem:[#allocation6 + $0x600] sm:$0xf]
    %v2872 = vld [vmem:[#allocation6 + $0x604] sm:$0xff]
    %v2873 = vld [vmem:[#allocation6 + $0x60c] sm:$0xff]
    %v2874 = vld [vmem:[#allocation6 + $0x614] sm:$0xff]
    %v2875 = vld [vmem:[#allocation6 + $0x61c] sm:$0xf]
    %v2876 = vld [vmem:[#allocation6 + $0x620] sm:$0xff]
    %v2877 = vld [vmem:[#allocation6 + $0x628] sm:$0xff]
    %v2878 = vld [vmem:[#allocation6 + $0x630] sm:$0xff]
    %v2879 = vld [vmem:[#allocation6 + $0x638] sm:$0xf]
    %v2880 = vld [vmem:[#allocation6 + $0x63c] sm:$0xff]
    %v2881 = vld [vmem:[#allocation6 + $0x644] sm:$0xff]
    %v2882 = vld [vmem:[#allocation6 + $0x64c] sm:$0xff]
    %v2883 = vld [vmem:[#allocation6 + $0x654] sm:$0xf]
    %v2884 = vld [vmem:[#allocation6 + $0x658] sm:$0xff]
    %v2885 = vld [vmem:[#allocation6 + $0x660] sm:$0xff]
    %v2886 = vld [vmem:[#allocation6 + $0x668] sm:$0xff]
    %v2887 = vld [vmem:[#allocation6 + $0x670] sm:$0xf]
    %v2888 = vld [vmem:[#allocation6 + $0x674] sm:$0xff]
    %v2889 = vld [vmem:[#allocation6 + $0x67c] sm:$0xff]
    %v2890 = vld [vmem:[#allocation6 + $0x684] sm:$0xff]
    %v2891 = vld [vmem:[#allocation6 + $0x68c] sm:$0xf]
    %v2892 = vld [vmem:[#allocation6 + $0x690] sm:$0xff]
    %v2893 = vld [vmem:[#allocation6 + $0x698] sm:$0xff]
    %v2894 = vld [vmem:[#allocation6 + $0x6a0] sm:$0xff]
    %v2895 = vld [vmem:[#allocation6 + $0x6a8] sm:$0xf]
    %v2896 = vld [vmem:[#allocation6 + $0x6ac] sm:$0xff]
    %v2897 = vld [vmem:[#allocation6 + $0x6b4] sm:$0xff]
    %v2898 = vld [vmem:[#allocation6 + $0x6bc] sm:$0xff]
    %v2899 = vld [vmem:[#allocation6 + $0x6c4] sm:$0xf]
    %v2900 = vld [vmem:[#allocation6 + $0x6c8] sm:$0xff]
    %v2901 = vld [vmem:[#allocation6 + $0x6d0] sm:$0xff]
    %v2902 = vld [vmem:[#allocation6 + $0x6d8] sm:$0xff]
    %v2903 = vld [vmem:[#allocation6 + $0x6e0] sm:$0xf]
    %v2904 = vld [vmem:[#allocation6 + $0x6e4] sm:$0xff]
    %v2905 = vld [vmem:[#allocation6 + $0x6ec] sm:$0xff]
    %v2906 = vld [vmem:[#allocation6 + $0x6f4] sm:$0xff]
    %v2907 = vld [vmem:[#allocation6 + $0x6fc] sm:$0xf]
    %v2908 = vld [vmem:[%s8] sm:$0xff]
    %v2910 = vlaneseq
    %v2911 = vshrl.u32 %v2910, 7
    %v2912 = vsub.s32 0, %v2911
    %v2913 = vrot.slane %v2908, %v2912
    %v2914 = vlaneseq
    %v2915 = vshrl.u32 %v2914, 7
    %v2916 = vsub.s32 1, %v2915
    %v2917 = vrot.slane %v2908, %v2916
    %v2918 = vlaneseq
    %v2919 = vshrl.u32 %v2918, 7
    %v2920 = vsub.s32 2, %v2919
    %v2921 = vrot.slane %v2908, %v2920
    %v2922 = vlaneseq
    %v2923 = vshrl.u32 %v2922, 7
    %v2924 = vsub.s32 3, %v2923
    %v2925 = vrot.slane %v2908, %v2924
    %v2926 = vlaneseq
    %v2927 = vshrl.u32 %v2926, 7
    %v2928 = vsub.s32 4, %v2927
    %v2929 = vrot.slane %v2908, %v2928
    %v2930 = vlaneseq
    %v2931 = vshrl.u32 %v2930, 7
    %v2932 = vsub.s32 5, %v2931
    %v2933 = vrot.slane %v2908, %v2932
    %v2934 = vlaneseq
    %v2935 = vshrl.u32 %v2934, 7
    %v2936 = vsub.s32 6, %v2935
    %v2937 = vrot.slane %v2908, %v2936
    %v3201 = vunpack.c.l.b16 %v2652
    %v3202 = vunpack.c.h.b16 %v2652
    %v3203 = vunpack.c.l.b16 %v2653
    %v3204 = vunpack.c.h.b16 %v2653
    %v3205 = vunpack.c.l.b16 %v2654
    %v3206 = vunpack.c.h.b16 %v2654
    %v3207 = vunpack.c.l.b16 %v2655
    %v3208 = vunpack.c.l.b16 %v2656
    %v3209 = vunpack.c.h.b16 %v2656
    %v3210 = vunpack.c.l.b16 %v2657
    %v3211 = vunpack.c.h.b16 %v2657
    %v3212 = vunpack.c.l.b16 %v2658
    %v3213 = vunpack.c.h.b16 %v2658
    %v3214 = vunpack.c.l.b16 %v2659
    %v3215 = vunpack.c.l.b16 %v2660
    %v3216 = vunpack.c.h.b16 %v2660
    %v3217 = vunpack.c.l.b16 %v2661
    %v3218 = vunpack.c.h.b16 %v2661
    %v3219 = vunpack.c.l.b16 %v2662
    %v3220 = vunpack.c.h.b16 %v2662
    %v3221 = vunpack.c.l.b16 %v2663
    %v3222 = vunpack.c.l.b16 %v2664
    %v3223 = vunpack.c.h.b16 %v2664
    %v3224 = vunpack.c.l.b16 %v2665
    %v3225 = vunpack.c.h.b16 %v2665
    %v3226 = vunpack.c.l.b16 %v2666
    %v3227 = vunpack.c.h.b16 %v2666
    %v3228 = vunpack.c.l.b16 %v2667
    %v3229 = vunpack.c.l.b16 %v2668
    %v3230 = vunpack.c.h.b16 %v2668
    %v3231 = vunpack.c.l.b16 %v2669
    %v3232 = vunpack.c.h.b16 %v2669
    %v3233 = vunpack.c.l.b16 %v2670
    %v3234 = vunpack.c.h.b16 %v2670
    %v3235 = vunpack.c.l.b16 %v2671
    %v3236 = vunpack.c.l.b16 %v2672
    %v3237 = vunpack.c.h.b16 %v2672
    %v3238 = vunpack.c.l.b16 %v2673
    %v3239 = vunpack.c.h.b16 %v2673
    %v3240 = vunpack.c.l.b16 %v2674
    %v3241 = vunpack.c.h.b16 %v2674
    %v3242 = vunpack.c.l.b16 %v2675
    %v3243 = vunpack.c.l.b16 %v2676
    %v3244 = vunpack.c.h.b16 %v2676
    %v3245 = vunpack.c.l.b16 %v2677
    %v3246 = vunpack.c.h.b16 %v2677
    %v3247 = vunpack.c.l.b16 %v2678
    %v3248 = vunpack.c.h.b16 %v2678
    %v3249 = vunpack.c.l.b16 %v2679
    %v3250 = vunpack.c.l.b16 %v2680
    %v3251 = vunpack.c.h.b16 %v2680
    %v3252 = vunpack.c.l.b16 %v2681
    %v3253 = vunpack.c.h.b16 %v2681
    %v3254 = vunpack.c.l.b16 %v2682
    %v3255 = vunpack.c.h.b16 %v2682
    %v3256 = vunpack.c.l.b16 %v2683
    %v3257 = vunpack.c.l.b16 %v2684
    %v3258 = vunpack.c.h.b16 %v2684
    %v3259 = vunpack.c.l.b16 %v2685
    %v3260 = vunpack.c.h.b16 %v2685
    %v3261 = vunpack.c.l.b16 %v2686
    %v3262 = vunpack.c.h.b16 %v2686
    %v3263 = vunpack.c.l.b16 %v2687
    %v3264 = vunpack.c.l.b16 %v2688
    %v3265 = vunpack.c.h.b16 %v2688
    %v3266 = vunpack.c.l.b16 %v2689
    %v3267 = vunpack.c.h.b16 %v2689
    %v3268 = vunpack.c.l.b16 %v2690
    %v3269 = vunpack.c.h.b16 %v2690
    %v3270 = vunpack.c.l.b16 %v2691
    %v3271 = vunpack.c.l.b16 %v2692
    %v3272 = vunpack.c.h.b16 %v2692
    %v3273 = vunpack.c.l.b16 %v2693
    %v3274 = vunpack.c.h.b16 %v2693
    %v3275 = vunpack.c.l.b16 %v2694
    %v3276 = vunpack.c.h.b16 %v2694
    %v3277 = vunpack.c.l.b16 %v2695
    %v3278 = vunpack.c.l.b16 %v2696
    %v3279 = vunpack.c.h.b16 %v2696
    %v3280 = vunpack.c.l.b16 %v2697
    %v3281 = vunpack.c.h.b16 %v2697
    %v3282 = vunpack.c.l.b16 %v2698
    %v3283 = vunpack.c.h.b16 %v2698
    %v3284 = vunpack.c.l.b16 %v2699
    %v3285 = vunpack.c.l.b16 %v2700
    %v3286 = vunpack.c.h.b16 %v2700
    %v3287 = vunpack.c.l.b16 %v2701
    %v3288 = vunpack.c.h.b16 %v2701
    %v3289 = vunpack.c.l.b16 %v2702
    %v3290 = vunpack.c.h.b16 %v2702
    %v3291 = vunpack.c.l.b16 %v2703
    %v3292 = vunpack.c.l.b16 %v2704
    %v3293 = vunpack.c.h.b16 %v2704
    %v3294 = vunpack.c.l.b16 %v2705
    %v3295 = vunpack.c.h.b16 %v2705
    %v3296 = vunpack.c.l.b16 %v2706
    %v3297 = vunpack.c.h.b16 %v2706
    %v3298 = vunpack.c.l.b16 %v2707
    %v3299 = vunpack.c.l.b16 %v2708
    %v3300 = vunpack.c.h.b16 %v2708
    %v3301 = vunpack.c.l.b16 %v2709
    %v3302 = vunpack.c.h.b16 %v2709
    %v3303 = vunpack.c.l.b16 %v2710
    %v3304 = vunpack.c.h.b16 %v2710
    %v3305 = vunpack.c.l.b16 %v2711
    %v3306 = vunpack.c.l.b16 %v2712
    %v3307 = vunpack.c.h.b16 %v2712
    %v3308 = vunpack.c.l.b16 %v2713
    %v3309 = vunpack.c.h.b16 %v2713
    %v3310 = vunpack.c.l.b16 %v2714
    %v3311 = vunpack.c.h.b16 %v2714
    %v3312 = vunpack.c.l.b16 %v2715
    %v3313 = vunpack.c.l.b16 %v2716
    %v3314 = vunpack.c.h.b16 %v2716
    %v3315 = vunpack.c.l.b16 %v2717
    %v3316 = vunpack.c.h.b16 %v2717
    %v3317 = vunpack.c.l.b16 %v2718
    %v3318 = vunpack.c.h.b16 %v2718
    %v3319 = vunpack.c.l.b16 %v2719
    %v3320 = vunpack.c.l.b16 %v2720
    %v3321 = vunpack.c.h.b16 %v2720
    %v3322 = vunpack.c.l.b16 %v2721
    %v3323 = vunpack.c.h.b16 %v2721
    %v3324 = vunpack.c.l.b16 %v2722
    %v3325 = vunpack.c.h.b16 %v2722
    %v3326 = vunpack.c.l.b16 %v2723
    %v3327 = vunpack.c.l.b16 %v2724
    %v3328 = vunpack.c.h.b16 %v2724
    %v3329 = vunpack.c.l.b16 %v2725
    %v3330 = vunpack.c.h.b16 %v2725
    %v3331 = vunpack.c.l.b16 %v2726
    %v3332 = vunpack.c.h.b16 %v2726
    %v3333 = vunpack.c.l.b16 %v2727
    %v3334 = vunpack.c.l.b16 %v2728
    %v3335 = vunpack.c.h.b16 %v2728
    %v3336 = vunpack.c.l.b16 %v2729
    %v3337 = vunpack.c.h.b16 %v2729
    %v3338 = vunpack.c.l.b16 %v2730
    %v3339 = vunpack.c.h.b16 %v2730
    %v3340 = vunpack.c.l.b16 %v2731
    %v3341 = vunpack.c.l.b16 %v2732
    %v3342 = vunpack.c.h.b16 %v2732
    %v3343 = vunpack.c.l.b16 %v2733
    %v3344 = vunpack.c.h.b16 %v2733
    %v3345 = vunpack.c.l.b16 %v2734
    %v3346 = vunpack.c.h.b16 %v2734
    %v3347 = vunpack.c.l.b16 %v2735
    %v3348 = vunpack.c.l.b16 %v2736
    %v3349 = vunpack.c.h.b16 %v2736
    %v3350 = vunpack.c.l.b16 %v2737
    %v3351 = vunpack.c.h.b16 %v2737
    %v3352 = vunpack.c.l.b16 %v2738
    %v3353 = vunpack.c.h.b16 %v2738
    %v3354 = vunpack.c.l.b16 %v2739
    %v3355 = vunpack.c.l.b16 %v2740
    %v3356 = vunpack.c.h.b16 %v2740
    %v3357 = vunpack.c.l.b16 %v2741
    %v3358 = vunpack.c.h.b16 %v2741
    %v3359 = vunpack.c.l.b16 %v2742
    %v3360 = vunpack.c.h.b16 %v2742
    %v3361 = vunpack.c.l.b16 %v2743
    %v3362 = vunpack.c.l.b16 %v2744
    %v3363 = vunpack.c.h.b16 %v2744
    %v3364 = vunpack.c.l.b16 %v2745
    %v3365 = vunpack.c.h.b16 %v2745
    %v3366 = vunpack.c.l.b16 %v2746
    %v3367 = vunpack.c.h.b16 %v2746
    %v3368 = vunpack.c.l.b16 %v2747
    %v3369 = vunpack.c.l.b16 %v2748
    %v3370 = vunpack.c.h.b16 %v2748
    %v3371 = vunpack.c.l.b16 %v2749
    %v3372 = vunpack.c.h.b16 %v2749
    %v3373 = vunpack.c.l.b16 %v2750
    %v3374 = vunpack.c.h.b16 %v2750
    %v3375 = vunpack.c.l.b16 %v2751
    %v3376 = vunpack.c.l.b16 %v2752
    %v3377 = vunpack.c.h.b16 %v2752
    %v3378 = vunpack.c.l.b16 %v2753
    %v3379 = vunpack.c.h.b16 %v2753
    %v3380 = vunpack.c.l.b16 %v2754
    %v3381 = vunpack.c.h.b16 %v2754
    %v3382 = vunpack.c.l.b16 %v2755
    %v3383 = vunpack.c.l.b16 %v2756
    %v3384 = vunpack.c.h.b16 %v2756
    %v3385 = vunpack.c.l.b16 %v2757
    %v3386 = vunpack.c.h.b16 %v2757
    %v3387 = vunpack.c.l.b16 %v2758
    %v3388 = vunpack.c.h.b16 %v2758
    %v3389 = vunpack.c.l.b16 %v2759
    %v3390 = vunpack.c.l.b16 %v2760
    %v3391 = vunpack.c.h.b16 %v2760
    %v3392 = vunpack.c.l.b16 %v2761
    %v3393 = vunpack.c.h.b16 %v2761
    %v3394 = vunpack.c.l.b16 %v2762
    %v3395 = vunpack.c.h.b16 %v2762
    %v3396 = vunpack.c.l.b16 %v2763
    %v3397 = vunpack.c.l.b16 %v2764
    %v3398 = vunpack.c.h.b16 %v2764
    %v3399 = vunpack.c.l.b16 %v2765
    %v3400 = vunpack.c.h.b16 %v2765
    %v3401 = vunpack.c.l.b16 %v2766
    %v3402 = vunpack.c.h.b16 %v2766
    %v3403 = vunpack.c.l.b16 %v2767
    %v3404 = vunpack.c.l.b16 %v2768
    %v3405 = vunpack.c.h.b16 %v2768
    %v3406 = vunpack.c.l.b16 %v2769
    %v3407 = vunpack.c.h.b16 %v2769
    %v3408 = vunpack.c.l.b16 %v2770
    %v3409 = vunpack.c.h.b16 %v2770
    %v3410 = vunpack.c.l.b16 %v2771
    %v3411 = vunpack.c.l.b16 %v2772
    %v3412 = vunpack.c.h.b16 %v2772
    %v3413 = vunpack.c.l.b16 %v2773
    %v3414 = vunpack.c.h.b16 %v2773
    %v3415 = vunpack.c.l.b16 %v2774
    %v3416 = vunpack.c.h.b16 %v2774
    %v3417 = vunpack.c.l.b16 %v2775
    %v3418 = vunpack.c.l.b16 %v2776
    %v3419 = vunpack.c.h.b16 %v2776
    %v3420 = vunpack.c.l.b16 %v2777
    %v3421 = vunpack.c.h.b16 %v2777
    %v3422 = vunpack.c.l.b16 %v2778
    %v3423 = vunpack.c.h.b16 %v2778
    %v3424 = vunpack.c.l.b16 %v2779
    %v3425 = vunpack.c.l.b16 %v2780
    %v3426 = vunpack.c.h.b16 %v2780
    %v3427 = vunpack.c.l.b16 %v2781
    %v3428 = vunpack.c.h.b16 %v2781
    %v3429 = vunpack.c.l.b16 %v2782
    %v3430 = vunpack.c.h.b16 %v2782
    %v3431 = vunpack.c.l.b16 %v2783
    %v3432 = vunpack.c.l.b16 %v2784
    %v3433 = vunpack.c.h.b16 %v2784
    %v3434 = vunpack.c.l.b16 %v2785
    %v3435 = vunpack.c.h.b16 %v2785
    %v3436 = vunpack.c.l.b16 %v2786
    %v3437 = vunpack.c.h.b16 %v2786
    %v3438 = vunpack.c.l.b16 %v2787
    %v3439 = vunpack.c.l.b16 %v2788
    %v3440 = vunpack.c.h.b16 %v2788
    %v3441 = vunpack.c.l.b16 %v2789
    %v3442 = vunpack.c.h.b16 %v2789
    %v3443 = vunpack.c.l.b16 %v2790
    %v3444 = vunpack.c.h.b16 %v2790
    %v3445 = vunpack.c.l.b16 %v2791
    %v3446 = vunpack.c.l.b16 %v2792
    %v3447 = vunpack.c.h.b16 %v2792
    %v3448 = vunpack.c.l.b16 %v2793
    %v3449 = vunpack.c.h.b16 %v2793
    %v3450 = vunpack.c.l.b16 %v2794
    %v3451 = vunpack.c.h.b16 %v2794
    %v3452 = vunpack.c.l.b16 %v2795
    %v3453 = vunpack.c.l.b16 %v2796
    %v3454 = vunpack.c.h.b16 %v2796
    %v3455 = vunpack.c.l.b16 %v2797
    %v3456 = vunpack.c.h.b16 %v2797
    %v3457 = vunpack.c.l.b16 %v2798
    %v3458 = vunpack.c.h.b16 %v2798
    %v3459 = vunpack.c.l.b16 %v2799
    %v3460 = vunpack.c.l.b16 %v2800
    %v3461 = vunpack.c.h.b16 %v2800
    %v3462 = vunpack.c.l.b16 %v2801
    %v3463 = vunpack.c.h.b16 %v2801
    %v3464 = vunpack.c.l.b16 %v2802
    %v3465 = vunpack.c.h.b16 %v2802
    %v3466 = vunpack.c.l.b16 %v2803
    %v3467 = vunpack.c.l.b16 %v2804
    %v3468 = vunpack.c.h.b16 %v2804
    %v3469 = vunpack.c.l.b16 %v2805
    %v3470 = vunpack.c.h.b16 %v2805
    %v3471 = vunpack.c.l.b16 %v2806
    %v3472 = vunpack.c.h.b16 %v2806
    %v3473 = vunpack.c.l.b16 %v2807
    %v3474 = vunpack.c.l.b16 %v2808
    %v3475 = vunpack.c.h.b16 %v2808
    %v3476 = vunpack.c.l.b16 %v2809
    %v3477 = vunpack.c.h.b16 %v2809
    %v3478 = vunpack.c.l.b16 %v2810
    %v3479 = vunpack.c.h.b16 %v2810
    %v3480 = vunpack.c.l.b16 %v2811
    %v3481 = vunpack.c.l.b16 %v2812
    %v3482 = vunpack.c.h.b16 %v2812
    %v3483 = vunpack.c.l.b16 %v2813
    %v3484 = vunpack.c.h.b16 %v2813
    %v3485 = vunpack.c.l.b16 %v2814
    %v3486 = vunpack.c.h.b16 %v2814
    %v3487 = vunpack.c.l.b16 %v2815
    %v3488 = vunpack.c.l.b16 %v2816
    %v3489 = vunpack.c.h.b16 %v2816
    %v3490 = vunpack.c.l.b16 %v2817
    %v3491 = vunpack.c.h.b16 %v2817
    %v3492 = vunpack.c.l.b16 %v2818
    %v3493 = vunpack.c.h.b16 %v2818
    %v3494 = vunpack.c.l.b16 %v2819
    %v3495 = vunpack.c.l.b16 %v2820
    %v3496 = vunpack.c.h.b16 %v2820
    %v3497 = vunpack.c.l.b16 %v2821
    %v3498 = vunpack.c.h.b16 %v2821
    %v3499 = vunpack.c.l.b16 %v2822
    %v3500 = vunpack.c.h.b16 %v2822
    %v3501 = vunpack.c.l.b16 %v2823
    %v3502 = vunpack.c.l.b16 %v2824
    %v3503 = vunpack.c.h.b16 %v2824
    %v3504 = vunpack.c.l.b16 %v2825
    %v3505 = vunpack.c.h.b16 %v2825
    %v3506 = vunpack.c.l.b16 %v2826
    %v3507 = vunpack.c.h.b16 %v2826
    %v3508 = vunpack.c.l.b16 %v2827
    %v3509 = vunpack.c.l.b16 %v2828
    %v3510 = vunpack.c.h.b16 %v2828
    %v3511 = vunpack.c.l.b16 %v2829
    %v3512 = vunpack.c.h.b16 %v2829
    %v3513 = vunpack.c.l.b16 %v2830
    %v3514 = vunpack.c.h.b16 %v2830
    %v3515 = vunpack.c.l.b16 %v2831
    %v3516 = vunpack.c.l.b16 %v2832
    %v3517 = vunpack.c.h.b16 %v2832
    %v3518 = vunpack.c.l.b16 %v2833
    %v3519 = vunpack.c.h.b16 %v2833
    %v3520 = vunpack.c.l.b16 %v2834
    %v3521 = vunpack.c.h.b16 %v2834
    %v3522 = vunpack.c.l.b16 %v2835
    %v3523 = vunpack.c.l.b16 %v2836
    %v3524 = vunpack.c.h.b16 %v2836
    %v3525 = vunpack.c.l.b16 %v2837
    %v3526 = vunpack.c.h.b16 %v2837
    %v3527 = vunpack.c.l.b16 %v2838
    %v3528 = vunpack.c.h.b16 %v2838
    %v3529 = vunpack.c.l.b16 %v2839
    %v3530 = vunpack.c.l.b16 %v2840
    %v3531 = vunpack.c.h.b16 %v2840
    %v3532 = vunpack.c.l.b16 %v2841
    %v3533 = vunpack.c.h.b16 %v2841
    %v3534 = vunpack.c.l.b16 %v2842
    %v3535 = vunpack.c.h.b16 %v2842
    %v3536 = vunpack.c.l.b16 %v2843
    %v3537 = vunpack.c.l.b16 %v2844
    %v3538 = vunpack.c.h.b16 %v2844
    %v3539 = vunpack.c.l.b16 %v2845
    %v3540 = vunpack.c.h.b16 %v2845
    %v3541 = vunpack.c.l.b16 %v2846
    %v3542 = vunpack.c.h.b16 %v2846
    %v3543 = vunpack.c.l.b16 %v2847
    %v3544 = vunpack.c.l.b16 %v2848
    %v3545 = vunpack.c.h.b16 %v2848
    %v3546 = vunpack.c.l.b16 %v2849
    %v3547 = vunpack.c.h.b16 %v2849
    %v3548 = vunpack.c.l.b16 %v2850
    %v3549 = vunpack.c.h.b16 %v2850
    %v3550 = vunpack.c.l.b16 %v2851
    %v3551 = vunpack.c.l.b16 %v2852
    %v3552 = vunpack.c.h.b16 %v2852
    %v3553 = vunpack.c.l.b16 %v2853
    %v3554 = vunpack.c.h.b16 %v2853
    %v3555 = vunpack.c.l.b16 %v2854
    %v3556 = vunpack.c.h.b16 %v2854
    %v3557 = vunpack.c.l.b16 %v2855
    %v3558 = vunpack.c.l.b16 %v2856
    %v3559 = vunpack.c.h.b16 %v2856
    %v3560 = vunpack.c.l.b16 %v2857
    %v3561 = vunpack.c.h.b16 %v2857
    %v3562 = vunpack.c.l.b16 %v2858
    %v3563 = vunpack.c.h.b16 %v2858
    %v3564 = vunpack.c.l.b16 %v2859
    %v3565 = vunpack.c.l.b16 %v2860
    %v3566 = vunpack.c.h.b16 %v2860
    %v3567 = vunpack.c.l.b16 %v2861
    %v3568 = vunpack.c.h.b16 %v2861
    %v3569 = vunpack.c.l.b16 %v2862
    %v3570 = vunpack.c.h.b16 %v2862
    %v3571 = vunpack.c.l.b16 %v2863
    %v3572 = vunpack.c.l.b16 %v2864
    %v3573 = vunpack.c.h.b16 %v2864
    %v3574 = vunpack.c.l.b16 %v2865
    %v3575 = vunpack.c.h.b16 %v2865
    %v3576 = vunpack.c.l.b16 %v2866
    %v3577 = vunpack.c.h.b16 %v2866
    %v3578 = vunpack.c.l.b16 %v2867
    %v3579 = vunpack.c.l.b16 %v2868
    %v3580 = vunpack.c.h.b16 %v2868
    %v3581 = vunpack.c.l.b16 %v2869
    %v3582 = vunpack.c.h.b16 %v2869
    %v3583 = vunpack.c.l.b16 %v2870
    %v3584 = vunpack.c.h.b16 %v2870
    %v3585 = vunpack.c.l.b16 %v2871
    %v3586 = vunpack.c.l.b16 %v2872
    %v3587 = vunpack.c.h.b16 %v2872
    %v3588 = vunpack.c.l.b16 %v2873
    %v3589 = vunpack.c.h.b16 %v2873
    %v3590 = vunpack.c.l.b16 %v2874
    %v3591 = vunpack.c.h.b16 %v2874
    %v3592 = vunpack.c.l.b16 %v2875
    %v3593 = vunpack.c.l.b16 %v2876
    %v3594 = vunpack.c.h.b16 %v2876
    %v3595 = vunpack.c.l.b16 %v2877
    %v3596 = vunpack.c.h.b16 %v2877
    %v3597 = vunpack.c.l.b16 %v2878
    %v3598 = vunpack.c.h.b16 %v2878
    %v3599 = vunpack.c.l.b16 %v2879
    %v3600 = vunpack.c.l.b16 %v2880
    %v3601 = vunpack.c.h.b16 %v2880
    %v3602 = vunpack.c.l.b16 %v2881
    %v3603 = vunpack.c.h.b16 %v2881
    %v3604 = vunpack.c.l.b16 %v2882
    %v3605 = vunpack.c.h.b16 %v2882
    %v3606 = vunpack.c.l.b16 %v2883
    %v3607 = vunpack.c.l.b16 %v2884
    %v3608 = vunpack.c.h.b16 %v2884
    %v3609 = vunpack.c.l.b16 %v2885
    %v3610 = vunpack.c.h.b16 %v2885
    %v3611 = vunpack.c.l.b16 %v2886
    %v3612 = vunpack.c.h.b16 %v2886
    %v3613 = vunpack.c.l.b16 %v2887
    %v3614 = vunpack.c.l.b16 %v2888
    %v3615 = vunpack.c.h.b16 %v2888
    %v3616 = vunpack.c.l.b16 %v2889
    %v3617 = vunpack.c.h.b16 %v2889
    %v3618 = vunpack.c.l.b16 %v2890
    %v3619 = vunpack.c.h.b16 %v2890
    %v3620 = vunpack.c.l.b16 %v2891
    %v3621 = vunpack.c.l.b16 %v2892
    %v3622 = vunpack.c.h.b16 %v2892
    %v3623 = vunpack.c.l.b16 %v2893
    %v3624 = vunpack.c.h.b16 %v2893
    %v3625 = vunpack.c.l.b16 %v2894
    %v3626 = vunpack.c.h.b16 %v2894
    %v3627 = vunpack.c.l.b16 %v2895
    %v3628 = vunpack.c.l.b16 %v2896
    %v3629 = vunpack.c.h.b16 %v2896
    %v3630 = vunpack.c.l.b16 %v2897
    %v3631 = vunpack.c.h.b16 %v2897
    %v3632 = vunpack.c.l.b16 %v2898
    %v3633 = vunpack.c.h.b16 %v2898
    %v3634 = vunpack.c.l.b16 %v2899
    %v3635 = vunpack.c.l.b16 %v2900
    %v3636 = vunpack.c.h.b16 %v2900
    %v3637 = vunpack.c.l.b16 %v2901
    %v3638 = vunpack.c.h.b16 %v2901
    %v3639 = vunpack.c.l.b16 %v2902
    %v3640 = vunpack.c.h.b16 %v2902
    %v3641 = vunpack.c.l.b16 %v2903
    %v3642 = vunpack.c.l.b16 %v2904
    %v3643 = vunpack.c.h.b16 %v2904
    %v3644 = vunpack.c.l.b16 %v2905
    %v3645 = vunpack.c.h.b16 %v2905
    %v3646 = vunpack.c.l.b16 %v2906
    %v3647 = vunpack.c.h.b16 %v2906
    %v3648 = vunpack.c.l.b16 %v2907
    %v3649 = vpack.c.b16 %v3208, %v3201
    %v3650 = vpack.c.b16 %v3209, %v3202
    %v3651 = vpack.c.b16 %v3210, %v3203
    %v3652 = vpack.c.b16 %v3211, %v3204
    %v3653 = vpack.c.b16 %v3212, %v3205
    %v3654 = vpack.c.b16 %v3213, %v3206
    %v3655 = vpack.c.b16 %v3214, %v3207
    %v3656 = vpack.c.b16 %v3222, %v3215
    %v3657 = vpack.c.b16 %v3223, %v3216
    %v3658 = vpack.c.b16 %v3224, %v3217
    %v3659 = vpack.c.b16 %v3225, %v3218
    %v3660 = vpack.c.b16 %v3226, %v3219
    %v3661 = vpack.c.b16 %v3227, %v3220
    %v3662 = vpack.c.b16 %v3228, %v3221
    %v3663 = vpack.c.b16 %v3236, %v3229
    %v3664 = vpack.c.b16 %v3237, %v3230
    %v3665 = vpack.c.b16 %v3238, %v3231
    %v3666 = vpack.c.b16 %v3239, %v3232
    %v3667 = vpack.c.b16 %v3240, %v3233
    %v3668 = vpack.c.b16 %v3241, %v3234
    %v3669 = vpack.c.b16 %v3242, %v3235
    %v3670 = vpack.c.b16 %v3250, %v3243
    %v3671 = vpack.c.b16 %v3251, %v3244
    %v3672 = vpack.c.b16 %v3252, %v3245
    %v3673 = vpack.c.b16 %v3253, %v3246
    %v3674 = vpack.c.b16 %v3254, %v3247
    %v3675 = vpack.c.b16 %v3255, %v3248
    %v3676 = vpack.c.b16 %v3256, %v3249
    %v3677 = vpack.c.b16 %v3264, %v3257
    %v3678 = vpack.c.b16 %v3265, %v3258
    %v3679 = vpack.c.b16 %v3266, %v3259
    %v3680 = vpack.c.b16 %v3267, %v3260
    %v3681 = vpack.c.b16 %v3268, %v3261
    %v3682 = vpack.c.b16 %v3269, %v3262
    %v3683 = vpack.c.b16 %v3270, %v3263
    %v3684 = vpack.c.b16 %v3278, %v3271
    %v3685 = vpack.c.b16 %v3279, %v3272
    %v3686 = vpack.c.b16 %v3280, %v3273
    %v3687 = vpack.c.b16 %v3281, %v3274
    %v3688 = vpack.c.b16 %v3282, %v3275
    %v3689 = vpack.c.b16 %v3283, %v3276
    %v3690 = vpack.c.b16 %v3284, %v3277
    %v3691 = vpack.c.b16 %v3292, %v3285
    %v3692 = vpack.c.b16 %v3293, %v3286
    %v3693 = vpack.c.b16 %v3294, %v3287
    %v3694 = vpack.c.b16 %v3295, %v3288
    %v3695 = vpack.c.b16 %v3296, %v3289
    %v3696 = vpack.c.b16 %v3297, %v3290
    %v3697 = vpack.c.b16 %v3298, %v3291
    %v3698 = vpack.c.b16 %v3306, %v3299
    %v3699 = vpack.c.b16 %v3307, %v3300
    %v3700 = vpack.c.b16 %v3308, %v3301
    %v3701 = vpack.c.b16 %v3309, %v3302
    %v3702 = vpack.c.b16 %v3310, %v3303
    %v3703 = vpack.c.b16 %v3311, %v3304
    %v3704 = vpack.c.b16 %v3312, %v3305
    %v3705 = vpack.c.b16 %v3320, %v3313
    %v3706 = vpack.c.b16 %v3321, %v3314
    %v3707 = vpack.c.b16 %v3322, %v3315
    %v3708 = vpack.c.b16 %v3323, %v3316
    %v3709 = vpack.c.b16 %v3324, %v3317
    %v3710 = vpack.c.b16 %v3325, %v3318
    %v3711 = vpack.c.b16 %v3326, %v3319
    %v3712 = vpack.c.b16 %v3334, %v3327
    %v3713 = vpack.c.b16 %v3335, %v3328
    %v3714 = vpack.c.b16 %v3336, %v3329
    %v3715 = vpack.c.b16 %v3337, %v3330
    %v3716 = vpack.c.b16 %v3338, %v3331
    %v3717 = vpack.c.b16 %v3339, %v3332
    %v3718 = vpack.c.b16 %v3340, %v3333
    %v3719 = vpack.c.b16 %v3348, %v3341
    %v3720 = vpack.c.b16 %v3349, %v3342
    %v3721 = vpack.c.b16 %v3350, %v3343
    %v3722 = vpack.c.b16 %v3351, %v3344
    %v3723 = vpack.c.b16 %v3352, %v3345
    %v3724 = vpack.c.b16 %v3353, %v3346
    %v3725 = vpack.c.b16 %v3354, %v3347
    %v3726 = vpack.c.b16 %v3362, %v3355
    %v3727 = vpack.c.b16 %v3363, %v3356
    %v3728 = vpack.c.b16 %v3364, %v3357
    %v3729 = vpack.c.b16 %v3365, %v3358
    %v3730 = vpack.c.b16 %v3366, %v3359
    %v3731 = vpack.c.b16 %v3367, %v3360
    %v3732 = vpack.c.b16 %v3368, %v3361
    %v3733 = vpack.c.b16 %v3376, %v3369
    %v3734 = vpack.c.b16 %v3377, %v3370
    %v3735 = vpack.c.b16 %v3378, %v3371
    %v3736 = vpack.c.b16 %v3379, %v3372
    %v3737 = vpack.c.b16 %v3380, %v3373
    %v3738 = vpack.c.b16 %v3381, %v3374
    %v3739 = vpack.c.b16 %v3382, %v3375
    %v3740 = vpack.c.b16 %v3390, %v3383
    %v3741 = vpack.c.b16 %v3391, %v3384
    %v3742 = vpack.c.b16 %v3392, %v3385
    %v3743 = vpack.c.b16 %v3393, %v3386
    %v3744 = vpack.c.b16 %v3394, %v3387
    %v3745 = vpack.c.b16 %v3395, %v3388
    %v3746 = vpack.c.b16 %v3396, %v3389
    %v3747 = vpack.c.b16 %v3404, %v3397
    %v3748 = vpack.c.b16 %v3405, %v3398
    %v3749 = vpack.c.b16 %v3406, %v3399
    %v3750 = vpack.c.b16 %v3407, %v3400
    %v3751 = vpack.c.b16 %v3408, %v3401
    %v3752 = vpack.c.b16 %v3409, %v3402
    %v3753 = vpack.c.b16 %v3410, %v3403
    %v3754 = vpack.c.b16 %v3418, %v3411
    %v3755 = vpack.c.b16 %v3419, %v3412
    %v3756 = vpack.c.b16 %v3420, %v3413
    %v3757 = vpack.c.b16 %v3421, %v3414
    %v3758 = vpack.c.b16 %v3422, %v3415
    %v3759 = vpack.c.b16 %v3423, %v3416
    %v3760 = vpack.c.b16 %v3424, %v3417
    %v3761 = vpack.c.b16 %v3432, %v3425
    %v3762 = vpack.c.b16 %v3433, %v3426
    %v3763 = vpack.c.b16 %v3434, %v3427
    %v3764 = vpack.c.b16 %v3435, %v3428
    %v3765 = vpack.c.b16 %v3436, %v3429
    %v3766 = vpack.c.b16 %v3437, %v3430
    %v3767 = vpack.c.b16 %v3438, %v3431
    %v3768 = vpack.c.b16 %v3446, %v3439
    %v3769 = vpack.c.b16 %v3447, %v3440
    %v3770 = vpack.c.b16 %v3448, %v3441
    %v3771 = vpack.c.b16 %v3449, %v3442
    %v3772 = vpack.c.b16 %v3450, %v3443
    %v3773 = vpack.c.b16 %v3451, %v3444
    %v3774 = vpack.c.b16 %v3452, %v3445
    %v3775 = vpack.c.b16 %v3460, %v3453
    %v3776 = vpack.c.b16 %v3461, %v3454
    %v3777 = vpack.c.b16 %v3462, %v3455
    %v3778 = vpack.c.b16 %v3463, %v3456
    %v3779 = vpack.c.b16 %v3464, %v3457
    %v3780 = vpack.c.b16 %v3465, %v3458
    %v3781 = vpack.c.b16 %v3466, %v3459
    %v3782 = vpack.c.b16 %v3474, %v3467
    %v3783 = vpack.c.b16 %v3475, %v3468
    %v3784 = vpack.c.b16 %v3476, %v3469
    %v3785 = vpack.c.b16 %v3477, %v3470
    %v3786 = vpack.c.b16 %v3478, %v3471
    %v3787 = vpack.c.b16 %v3479, %v3472
    %v3788 = vpack.c.b16 %v3480, %v3473
    %v3789 = vpack.c.b16 %v3488, %v3481
    %v3790 = vpack.c.b16 %v3489, %v3482
    %v3791 = vpack.c.b16 %v3490, %v3483
    %v3792 = vpack.c.b16 %v3491, %v3484
    %v3793 = vpack.c.b16 %v3492, %v3485
    %v3794 = vpack.c.b16 %v3493, %v3486
    %v3795 = vpack.c.b16 %v3494, %v3487
    %v3796 = vpack.c.b16 %v3502, %v3495
    %v3797 = vpack.c.b16 %v3503, %v3496
    %v3798 = vpack.c.b16 %v3504, %v3497
    %v3799 = vpack.c.b16 %v3505, %v3498
    %v3800 = vpack.c.b16 %v3506, %v3499
    %v3801 = vpack.c.b16 %v3507, %v3500
    %v3802 = vpack.c.b16 %v3508, %v3501
    %v3803 = vpack.c.b16 %v3516, %v3509
    %v3804 = vpack.c.b16 %v3517, %v3510
    %v3805 = vpack.c.b16 %v3518, %v3511
    %v3806 = vpack.c.b16 %v3519, %v3512
    %v3807 = vpack.c.b16 %v3520, %v3513
    %v3808 = vpack.c.b16 %v3521, %v3514
    %v3809 = vpack.c.b16 %v3522, %v3515
    %v3810 = vpack.c.b16 %v3530, %v3523
    %v3811 = vpack.c.b16 %v3531, %v3524
    %v3812 = vpack.c.b16 %v3532, %v3525
    %v3813 = vpack.c.b16 %v3533, %v3526
    %v3814 = vpack.c.b16 %v3534, %v3527
    %v3815 = vpack.c.b16 %v3535, %v3528
    %v3816 = vpack.c.b16 %v3536, %v3529
    %v3817 = vpack.c.b16 %v3544, %v3537
    %v3818 = vpack.c.b16 %v3545, %v3538
    %v3819 = vpack.c.b16 %v3546, %v3539
    %v3820 = vpack.c.b16 %v3547, %v3540
    %v3821 = vpack.c.b16 %v3548, %v3541
    %v3822 = vpack.c.b16 %v3549, %v3542
    %v3823 = vpack.c.b16 %v3550, %v3543
    %v3824 = vpack.c.b16 %v3558, %v3551
    %v3825 = vpack.c.b16 %v3559, %v3552
    %v3826 = vpack.c.b16 %v3560, %v3553
    %v3827 = vpack.c.b16 %v3561, %v3554
    %v3828 = vpack.c.b16 %v3562, %v3555
    %v3829 = vpack.c.b16 %v3563, %v3556
    %v3830 = vpack.c.b16 %v3564, %v3557
    %v3831 = vpack.c.b16 %v3572, %v3565
    %v3832 = vpack.c.b16 %v3573, %v3566
    %v3833 = vpack.c.b16 %v3574, %v3567
    %v3834 = vpack.c.b16 %v3575, %v3568
    %v3835 = vpack.c.b16 %v3576, %v3569
    %v3836 = vpack.c.b16 %v3577, %v3570
    %v3837 = vpack.c.b16 %v3578, %v3571
    %v3838 = vpack.c.b16 %v3586, %v3579
    %v3839 = vpack.c.b16 %v3587, %v3580
    %v3840 = vpack.c.b16 %v3588, %v3581
    %v3841 = vpack.c.b16 %v3589, %v3582
    %v3842 = vpack.c.b16 %v3590, %v3583
    %v3843 = vpack.c.b16 %v3591, %v3584
    %v3844 = vpack.c.b16 %v3592, %v3585
    %v3845 = vpack.c.b16 %v3600, %v3593
    %v3846 = vpack.c.b16 %v3601, %v3594
    %v3847 = vpack.c.b16 %v3602, %v3595
    %v3848 = vpack.c.b16 %v3603, %v3596
    %v3849 = vpack.c.b16 %v3604, %v3597
    %v3850 = vpack.c.b16 %v3605, %v3598
    %v3851 = vpack.c.b16 %v3606, %v3599
    %v3852 = vpack.c.b16 %v3614, %v3607
    %v3853 = vpack.c.b16 %v3615, %v3608
    %v3854 = vpack.c.b16 %v3616, %v3609
    %v3855 = vpack.c.b16 %v3617, %v3610
    %v3856 = vpack.c.b16 %v3618, %v3611
    %v3857 = vpack.c.b16 %v3619, %v3612
    %v3858 = vpack.c.b16 %v3620, %v3613
    %v3859 = vpack.c.b16 %v3628, %v3621
    %v3860 = vpack.c.b16 %v3629, %v3622
    %v3861 = vpack.c.b16 %v3630, %v3623
    %v3862 = vpack.c.b16 %v3631, %v3624
    %v3863 = vpack.c.b16 %v3632, %v3625
    %v3864 = vpack.c.b16 %v3633, %v3626
    %v3865 = vpack.c.b16 %v3634, %v3627
    %v3866 = vpack.c.b16 %v3642, %v3635
    %v3867 = vpack.c.b16 %v3643, %v3636
    %v3868 = vpack.c.b16 %v3644, %v3637
    %v3869 = vpack.c.b16 %v3645, %v3638
    %v3870 = vpack.c.b16 %v3646, %v3639
    %v3871 = vpack.c.b16 %v3647, %v3640
    %v3872 = vpack.c.b16 %v3648, %v3641
    %4097 = vmatprep.subr.bf16.mxu0 %v3650
    %4098 = vmatpush1.bf16.msra.mxu0 %v3649
    %4099 = vmatprep.subr.bf16.mxu0 %v3657
    %4100 = vmatpush1.bf16.msra.mxu0 %v3656
    %4101 = vmatprep.subr.bf16.mxu0 %v3664
    %4102 = vmatpush1.bf16.msra.mxu0 %v3663
    %4103 = vmatprep.subr.bf16.mxu0 %v3671
    %4104 = vmatpush1.bf16.msra.mxu0 %v3670
    %4105 = vmatprep.subr.bf16.mxu0 %v3678
    %4106 = vmatpush1.bf16.msra.mxu0 %v3677
    %4107 = vmatprep.subr.bf16.mxu0 %v3685
    %4108 = vmatpush1.bf16.msra.mxu0 %v3684
    %4109 = vmatprep.subr.bf16.mxu0 %v3692
    %4110 = vmatpush1.bf16.msra.mxu0 %v3691
    %4111 = vmatprep.subr.bf16.mxu0 %v3699
    %4112 = vmatpush1.bf16.msra.mxu0 %v3698
    %4113 = vmatprep.subr.bf16.mxu0 %v3706
    %4114 = vmatpush1.bf16.msra.mxu0 %v3705
    %4115 = vmatprep.subr.bf16.mxu0 %v3713
    %4116 = vmatpush1.bf16.msra.mxu0 %v3712
    %4117 = vmatprep.subr.bf16.mxu0 %v3720
    %4118 = vmatpush1.bf16.msra.mxu0 %v3719
    %4119 = vmatprep.subr.bf16.mxu0 %v3727
    %4120 = vmatpush1.bf16.msra.mxu0 %v3726
    %4121 = vmatprep.subr.bf16.mxu0 %v3734
    %4122 = vmatpush1.bf16.msra.mxu0 %v3733
    %4123 = vmatprep.subr.bf16.mxu0 %v3741
    %4124 = vmatpush1.bf16.msra.mxu0 %v3740
    %4125 = vmatprep.subr.bf16.mxu0 %v3748
    %4126 = vmatpush1.bf16.msra.mxu0 %v3747
    %4127 = vmatprep.subr.bf16.mxu0 %v3755
    %4128 = vmatpush1.bf16.msra.mxu0 %v3754
    %4129 = vmatprep.mubr.bf16.mxu0 %v2649
    %4130 = vmatmul.mubr.bf16.gmra.mrb[0].mxu0 %v2648
    %v4131 = vpop.f32.mrb[0].mxu0
    %v4132 = vadd.f32 %v2913, %v4131
    %v4133 = vpop.f32.mrb[0].mxu0
    %v4134 = vadd.f32 %v2917, %v4133
    %v4135 = vpop.f32.mrb[0].mxu0
    %v4136 = vadd.f32 %v2913, %v4135
    %v4137 = vpop.f32.mrb[0].mxu0
    %v4138 = vadd.f32 %v2917, %v4137
    %4139 = vdwg.mxu0
    %4140 = vmatprep.subr.bf16.mxu0 %v3762
    %4141 = vmatpush1.bf16.msra.mxu0 %v3761
    %4142 = vmatprep.subr.bf16.mxu0 %v3769
    %4143 = vmatpush1.bf16.msra.mxu0 %v3768
    %4144 = vmatprep.subr.bf16.mxu0 %v3776
    %4145 = vmatpush1.bf16.msra.mxu0 %v3775
    %4146 = vmatprep.subr.bf16.mxu0 %v3783
    %4147 = vmatpush1.bf16.msra.mxu0 %v3782
    %4148 = vmatprep.subr.bf16.mxu0 %v3790
    %4149 = vmatpush1.bf16.msra.mxu0 %v3789
    %4150 = vmatprep.subr.bf16.mxu0 %v3797
    %4151 = vmatpush1.bf16.msra.mxu0 %v3796
    %4152 = vmatprep.subr.bf16.mxu0 %v3804
    %4153 = vmatpush1.bf16.msra.mxu0 %v3803
    %4154 = vmatprep.subr.bf16.mxu0 %v3811
    %4155 = vmatpush1.bf16.msra.mxu0 %v3810
    %4156 = vmatprep.subr.bf16.mxu0 %v3818
    %4157 = vmatpush1.bf16.msra.mxu0 %v3817
    %4158 = vmatprep.subr.bf16.mxu0 %v3825
    %4159 = vmatpush1.bf16.msra.mxu0 %v3824
    %4160 = vmatprep.subr.bf16.mxu0 %v3832
    %4161 = vmatpush1.bf16.msra.mxu0 %v3831
    %4162 = vmatprep.subr.bf16.mxu0 %v3839
    %4163 = vmatpush1.bf16.msra.mxu0 %v3838
    %4164 = vmatprep.subr.bf16.mxu0 %v3846
    %4165 = vmatpush1.bf16.msra.mxu0 %v3845
    %4166 = vmatprep.subr.bf16.mxu0 %v3853
    %4167 = vmatpush1.bf16.msra.mxu0 %v3852
    %4168 = vmatprep.subr.bf16.mxu0 %v3860
    %4169 = vmatpush1.bf16.msra.mxu0 %v3859
    %4170 = vmatprep.subr.bf16.mxu0 %v3867
    %4171 = vmatpush1.bf16.msra.mxu0 %v3866
    %4172 = vmatprep.mubr.bf16.mxu0 %v2651
    %4173 = vmatmul.mubr.bf16.gmra.mrb[0].mxu0 %v2650
    %v4174 = vpop.f32.mrb[0].mxu0
    %v4175 = vadd.f32 %v4132, %v4174
    %v4176 = vpop.f32.mrb[0].mxu0
    %v4177 = vadd.f32 %v4134, %v4176
    %v4178 = vpop.f32.mrb[0].mxu0
    %v4179 = vadd.f32 %v4136, %v4178
    %v4180 = vpop.f32.mrb[0].mxu0
    %v4181 = vadd.f32 %v4138, %v4180
    %4182 = vdwg.mxu0
    %4183 = vmatprep.subr.bf16.mxu0 %v3652
    %4184 = vmatpush1.bf16.msra.mxu0 %v3651
    %4185 = vmatprep.subr.bf16.mxu0 %v3659
    %4186 = vmatpush1.bf16.msra.mxu0 %v3658
    %4187 = vmatprep.subr.bf16.mxu0 %v3666
    %4188 = vmatpush1.bf16.msra.mxu0 %v3665
    %4189 = vmatprep.subr.bf16.mxu0 %v3673
    %4190 = vmatpush1.bf16.msra.mxu0 %v3672
    %4191 = vmatprep.subr.bf16.mxu0 %v3680
    %4192 = vmatpush1.bf16.msra.mxu0 %v3679
    %4193 = vmatprep.subr.bf16.mxu0 %v3687
    %4194 = vmatpush1.bf16.msra.mxu0 %v3686
    %4195 = vmatprep.subr.bf16.mxu0 %v3694
    %4196 = vmatpush1.bf16.msra.mxu0 %v3693
    %4197 = vmatprep.subr.bf16.mxu0 %v3701
    %4198 = vmatpush1.bf16.msra.mxu0 %v3700
    %4199 = vmatprep.subr.bf16.mxu0 %v3708
    %4200 = vmatpush1.bf16.msra.mxu0 %v3707
    %4201 = vmatprep.subr.bf16.mxu0 %v3715
    %4202 = vmatpush1.bf16.msra.mxu0 %v3714
    %4203 = vmatprep.subr.bf16.mxu0 %v3722
    %4204 = vmatpush1.bf16.msra.mxu0 %v3721
    %4205 = vmatprep.subr.bf16.mxu0 %v3729
    %4206 = vmatpush1.bf16.msra.mxu0 %v3728
    %4207 = vmatprep.subr.bf16.mxu0 %v3736
    %4208 = vmatpush1.bf16.msra.mxu0 %v3735
    %4209 = vmatprep.subr.bf16.mxu0 %v3743
    %4210 = vmatpush1.bf16.msra.mxu0 %v3742
    %4211 = vmatprep.subr.bf16.mxu0 %v3750
    %4212 = vmatpush1.bf16.msra.mxu0 %v3749
    %4213 = vmatprep.subr.bf16.mxu0 %v3757
    %4214 = vmatpush1.bf16.msra.mxu0 %v3756
    %4215 = vmatprep.mubr.bf16.mxu0 %v2649
    %4216 = vmatmul.mubr.bf16.gmra.mrb[0].mxu0 %v2648
    %v4217 = vpop.f32.mrb[0].mxu0
    %v4218 = vadd.f32 %v2921, %v4217
    %v4219 = vpop.f32.mrb[0].mxu0
    %v4220 = vadd.f32 %v2925, %v4219
    %v4221 = vpop.f32.mrb[0].mxu0
    %v4222 = vadd.f32 %v2921, %v4221
    %v4223 = vpop.f32.mrb[0].mxu0
    %v4224 = vadd.f32 %v2925, %v4223
    %4225 = vdwg.mxu0
    %4226 = vmatprep.subr.bf16.mxu0 %v3764
    %4227 = vmatpush1.bf16.msra.mxu0 %v3763
    %4228 = vmatprep.subr.bf16.mxu0 %v3771
    %4229 = vmatpush1.bf16.msra.mxu0 %v3770
    %4230 = vmatprep.subr.bf16.mxu0 %v3778
    %4231 = vmatpush1.bf16.msra.mxu0 %v3777
    %4232 = vmatprep.subr.bf16.mxu0 %v3785
    %4233 = vmatpush1.bf16.msra.mxu0 %v3784
    %4234 = vmatprep.subr.bf16.mxu0 %v3792
    %4235 = vmatpush1.bf16.msra.mxu0 %v3791
    %4236 = vmatprep.subr.bf16.mxu0 %v3799
    %4237 = vmatpush1.bf16.msra.mxu0 %v3798
    %4238 = vmatprep.subr.bf16.mxu0 %v3806
    %4239 = vmatpush1.bf16.msra.mxu0 %v3805
    %4240 = vmatprep.subr.bf16.mxu0 %v3813
    %4241 = vmatpush1.bf16.msra.mxu0 %v3812
    %4242 = vmatprep.subr.bf16.mxu0 %v3820
    %4243 = vmatpush1.bf16.msra.mxu0 %v3819
    %4244 = vmatprep.subr.bf16.mxu0 %v3827
    %4245 = vmatpush1.bf16.msra.mxu0 %v3826
    %4246 = vmatprep.subr.bf16.mxu0 %v3834
    %4247 = vmatpush1.bf16.msra.mxu0 %v3833
    %4248 = vmatprep.subr.bf16.mxu0 %v3841
    %4249 = vmatpush1.bf16.msra.mxu0 %v3840
    %4250 = vmatprep.subr.bf16.mxu0 %v3848
    %4251 = vmatpush1.bf16.msra.mxu0 %v3847
    %4252 = vmatprep.subr.bf16.mxu0 %v3855
    %4253 = vmatpush1.bf16.msra.mxu0 %v3854
    %4254 = vmatprep.subr.bf16.mxu0 %v3862
    %4255 = vmatpush1.bf16.msra.mxu0 %v3861
    %4256 = vmatprep.subr.bf16.mxu0 %v3869
    %4257 = vmatpush1.bf16.msra.mxu0 %v3868
    %4258 = vmatprep.mubr.bf16.mxu0 %v2651
    %4259 = vmatmul.mubr.bf16.gmra.mrb[0].mxu0 %v2650
    %v4260 = vpop.f32.mrb[0].mxu0
    %v4261 = vadd.f32 %v4218, %v4260
    %v4262 = vpop.f32.mrb[0].mxu0
    %v4263 = vadd.f32 %v4220, %v4262
    %v4264 = vpop.f32.mrb[0].mxu0
    %v4265 = vadd.f32 %v4222, %v4264
    %v4266 = vpop.f32.mrb[0].mxu0
    %v4267 = vadd.f32 %v4224, %v4266
    %4268 = vdwg.mxu0
    %4269 = vmatprep.subr.bf16.mxu0 %v3654
    %4270 = vmatpush1.bf16.msra.mxu0 %v3653
    %4271 = vmatprep.subr.bf16.mxu0 %v3661
    %4272 = vmatpush1.bf16.msra.mxu0 %v3660
    %4273 = vmatprep.subr.bf16.mxu0 %v3668
    %4274 = vmatpush1.bf16.msra.mxu0 %v3667
    %4275 = vmatprep.subr.bf16.mxu0 %v3675
    %4276 = vmatpush1.bf16.msra.mxu0 %v3674
    %4277 = vmatprep.subr.bf16.mxu0 %v3682
    %4278 = vmatpush1.bf16.msra.mxu0 %v3681
    %4279 = vmatprep.subr.bf16.mxu0 %v3689
    %4280 = vmatpush1.bf16.msra.mxu0 %v3688
    %4281 = vmatprep.subr.bf16.mxu0 %v3696
    %4282 = vmatpush1.bf16.msra.mxu0 %v3695
    %4283 = vmatprep.subr.bf16.mxu0 %v3703
    %4284 = vmatpush1.bf16.msra.mxu0 %v3702
    %4285 = vmatprep.subr.bf16.mxu0 %v3710
    %4286 = vmatpush1.bf16.msra.mxu0 %v3709
    %4287 = vmatprep.subr.bf16.mxu0 %v3717
    %4288 = vmatpush1.bf16.msra.mxu0 %v3716
    %4289 = vmatprep.subr.bf16.mxu0 %v3724
    %4290 = vmatpush1.bf16.msra.mxu0 %v3723
    %4291 = vmatprep.subr.bf16.mxu0 %v3731
    %4292 = vmatpush1.bf16.msra.mxu0 %v3730
    %4293 = vmatprep.subr.bf16.mxu0 %v3738
    %4294 = vmatpush1.bf16.msra.mxu0 %v3737
    %4295 = vmatprep.subr.bf16.mxu0 %v3745
    %4296 = vmatpush1.bf16.msra.mxu0 %v3744
    %4297 = vmatprep.subr.bf16.mxu0 %v3752
    %4298 = vmatpush1.bf16.msra.mxu0 %v3751
    %4299 = vmatprep.subr.bf16.mxu0 %v3759
    %4300 = vmatpush1.bf16.msra.mxu0 %v3758
    %4301 = vmatprep.mubr.bf16.mxu0 %v2649
    %4302 = vmatmul.mubr.bf16.gmra.mrb[0].mxu0 %v2648
    %v4303 = vpop.f32.mrb[0].mxu0
    %v4304 = vadd.f32 %v2929, %v4303
    %v4305 = vpop.f32.mrb[0].mxu0
    %v4306 = vadd.f32 %v2933, %v4305
    %v4307 = vpop.f32.mrb[0].mxu0
    %v4308 = vadd.f32 %v2929, %v4307
    %v4309 = vpop.f32.mrb[0].mxu0
    %v4310 = vadd.f32 %v2933, %v4309
    %4311 = vdwg.mxu0
    %4312 = vmatprep.subr.bf16.mxu0 %v3766
    %4313 = vmatpush1.bf16.msra.mxu0 %v3765
    %4314 = vmatprep.subr.bf16.mxu0 %v3773
    %4315 = vmatpush1.bf16.msra.mxu0 %v3772
    %4316 = vmatprep.subr.bf16.mxu0 %v3780
    %4317 = vmatpush1.bf16.msra.mxu0 %v3779
    %4318 = vmatprep.subr.bf16.mxu0 %v3787
    %4319 = vmatpush1.bf16.msra.mxu0 %v3786
    %4320 = vmatprep.subr.bf16.mxu0 %v3794
    %4321 = vmatpush1.bf16.msra.mxu0 %v3793
    %4322 = vmatprep.subr.bf16.mxu0 %v3801
    %4323 = vmatpush1.bf16.msra.mxu0 %v3800
    %4324 = vmatprep.subr.bf16.mxu0 %v3808
    %4325 = vmatpush1.bf16.msra.mxu0 %v3807
    %4326 = vmatprep.subr.bf16.mxu0 %v3815
    %4327 = vmatpush1.bf16.msra.mxu0 %v3814
    %4328 = vmatprep.subr.bf16.mxu0 %v3822
    %4329 = vmatpush1.bf16.msra.mxu0 %v3821
    %4330 = vmatprep.subr.bf16.mxu0 %v3829
    %4331 = vmatpush1.bf16.msra.mxu0 %v3828
    %4332 = vmatprep.subr.bf16.mxu0 %v3836
    %4333 = vmatpush1.bf16.msra.mxu0 %v3835
    %4334 = vmatprep.subr.bf16.mxu0 %v3843
    %4335 = vmatpush1.bf16.msra.mxu0 %v3842
    %4336 = vmatprep.subr.bf16.mxu0 %v3850
    %4337 = vmatpush1.bf16.msra.mxu0 %v3849
    %4338 = vmatprep.subr.bf16.mxu0 %v3857
    %4339 = vmatpush1.bf16.msra.mxu0 %v3856
    %4340 = vmatprep.subr.bf16.mxu0 %v3864
    %4341 = vmatpush1.bf16.msra.mxu0 %v3863
    %4342 = vmatprep.subr.bf16.mxu0 %v3871
    %4343 = vmatpush1.bf16.msra.mxu0 %v3870
    %4344 = vmatprep.mubr.bf16.mxu0 %v2651
    %4345 = vmatmul.mubr.bf16.gmra.mrb[0].mxu0 %v2650
    %v4346 = vpop.f32.mrb[0].mxu0
    %v4347 = vadd.f32 %v4304, %v4346
    %v4348 = vpop.f32.mrb[0].mxu0
    %v4349 = vadd.f32 %v4306, %v4348
    %v4350 = vpop.f32.mrb[0].mxu0
    %v4351 = vadd.f32 %v4308, %v4350
    %v4352 = vpop.f32.mrb[0].mxu0
    %v4353 = vadd.f32 %v4310, %v4352
    %4354 = vdwg.mxu0
    %4355 = vmatprep.subr.bf16.mxu0 0
    %4356 = vmatpush1.bf16.msra.mxu0 %v3655
    %4357 = vmatprep.subr.bf16.mxu0 0
    %4358 = vmatpush1.bf16.msra.mxu0 %v3662
    %4359 = vmatprep.subr.bf16.mxu0 0
    %4360 = vmatpush1.bf16.msra.mxu0 %v3669
    %4361 = vmatprep.subr.bf16.mxu0 0
    %4362 = vmatpush1.bf16.msra.mxu0 %v3676
    %4363 = vmatprep.subr.bf16.mxu0 0
    %4364 = vmatpush1.bf16.msra.mxu0 %v3683
    %4365 = vmatprep.subr.bf16.mxu0 0
    %4366 = vmatpush1.bf16.msra.mxu0 %v3690
    %4367 = vmatprep.subr.bf16.mxu0 0
    %4368 = vmatpush1.bf16.msra.mxu0 %v3697
    %4369 = vmatprep.subr.bf16.mxu0 0
    %4370 = vmatpush1.bf16.msra.mxu0 %v3704
    %4371 = vmatprep.subr.bf16.mxu0 0
    %4372 = vmatpush1.bf16.msra.mxu0 %v3711
    %4373 = vmatprep.subr.bf16.mxu0 0
    %4374 = vmatpush1.bf16.msra.mxu0 %v3718
    %4375 = vmatprep.subr.bf16.mxu0 0
    %4376 = vmatpush1.bf16.msra.mxu0 %v3725
    %4377 = vmatprep.subr.bf16.mxu0 0
    %4378 = vmatpush1.bf16.msra.mxu0 %v3732
    %4379 = vmatprep.subr.bf16.mxu0 0
    %4380 = vmatpush1.bf16.msra.mxu0 %v3739
    %4381 = vmatprep.subr.bf16.mxu0 0
    %4382 = vmatpush1.bf16.msra.mxu0 %v3746
    %4383 = vmatprep.subr.bf16.mxu0 0
    %4384 = vmatpush1.bf16.msra.mxu0 %v3753
    %4385 = vmatprep.subr.bf16.mxu0 0
    %4386 = vmatpush1.bf16.msra.mxu0 %v3760
    %4387 = vmatprep.mubr.bf16.mxu0 %v2649
    %4388 = vmatmul.mubr.bf16.gmra.mrb[0].mxu0 %v2648
    %v4389 = vpop.f32.mrb[0].mxu0
    %v4390 = vadd.f32 %v2937, %v4389
    %v4391 = vpop.f32.mrb[0].mxu0
    %v4392 = vpop.f32.mrb[0].mxu0
    %v4393 = vadd.f32 %v2937, %v4392
    %v4394 = vpop.f32.mrb[0].mxu0
    %4395 = vdwg.mxu0
    %4396 = vmatprep.subr.bf16.mxu0 0
    %4397 = vmatpush1.bf16.msra.mxu0 %v3767
    %4398 = vmatprep.subr.bf16.mxu0 0
    %4399 = vmatpush1.bf16.msra.mxu0 %v3774
    %4400 = vmatprep.subr.bf16.mxu0 0
    %4401 = vmatpush1.bf16.msra.mxu0 %v3781
    %4402 = vmatprep.subr.bf16.mxu0 0
    %4403 = vmatpush1.bf16.msra.mxu0 %v3788
    %4404 = vmatprep.subr.bf16.mxu0 0
    %4405 = vmatpush1.bf16.msra.mxu0 %v3795
    %4406 = vmatprep.subr.bf16.mxu0 0
    %4407 = vmatpush1.bf16.msra.mxu0 %v3802
    %4408 = vmatprep.subr.bf16.mxu0 0
    %4409 = vmatpush1.bf16.msra.mxu0 %v3809
    %4410 = vmatprep.subr.bf16.mxu0 0
    %4411 = vmatpush1.bf16.msra.mxu0 %v3816
    %4412 = vmatprep.subr.bf16.mxu0 0
    %4413 = vmatpush1.bf16.msra.mxu0 %v3823
    %4414 = vmatprep.subr.bf16.mxu0 0
    %4415 = vmatpush1.bf16.msra.mxu0 %v3830
    %4416 = vmatprep.subr.bf16.mxu0 0
    %4417 = vmatpush1.bf16.msra.mxu0 %v3837
    %4418 = vmatprep.subr.bf16.mxu0 0
    %4419 = vmatpush1.bf16.msra.mxu0 %v3844
    %4420 = vmatprep.subr.bf16.mxu0 0
    %4421 = vmatpush1.bf16.msra.mxu0 %v3851
    %4422 = vmatprep.subr.bf16.mxu0 0
    %4423 = vmatpush1.bf16.msra.mxu0 %v3858
    %4424 = vmatprep.subr.bf16.mxu0 0
    %4425 = vmatpush1.bf16.msra.mxu0 %v3865
    %4426 = vmatprep.subr.bf16.mxu0 0
    %4427 = vmatpush1.bf16.msra.mxu0 %v3872
    %4428 = vmatprep.mubr.bf16.mxu0 %v2651
    %4429 = vmatmul.mubr.bf16.gmra.mrb[0].mxu0 %v2650
    %v4430 = vpop.f32.mrb[0].mxu0
    %v4431 = vadd.f32 %v4390, %v4430
    %v4432 = vpop.f32.mrb[0].mxu0
    %v4433 = vpop.f32.mrb[0].mxu0
    %v4434 = vadd.f32 %v4393, %v4433
    %v4435 = vpop.f32.mrb[0].mxu0
    %4436 = vdwg.mxu0
    %v4437 = vxor.u32 %v4175, 2147483648
    %v4438 = vxor.u32 %v4177, 2147483648
    %v4439 = vxor.u32 %v4261, 2147483648
    %v4440 = vxor.u32 %v4263, 2147483648
    %v4441 = vxor.u32 %v4347, 2147483648
    %v4442 = vxor.u32 %v4349, 2147483648
    %v4443 = vxor.u32 %v4431, 2147483648
    %v4444 = vxor.u32 %v4179, 2147483648
    %v4445 = vxor.u32 %v4181, 2147483648
    %v4446 = vxor.u32 %v4265, 2147483648
    %v4447 = vxor.u32 %v4267, 2147483648
    %v4448 = vxor.u32 %v4351, 2147483648
    %v4449 = vxor.u32 %v4353, 2147483648
    %v4450 = vxor.u32 %v4434, 2147483648
    %v4451 = vmul.f32 %v4437, 1.442695
    %v4452 = vpow.pop %v4451
    %v4453 = vmul.f32 %v4438, 1.442695
    %v4454 = vpow.pop %v4453
    %v4455 = vmul.f32 %v4439, 1.442695
    %v4456 = vpow.pop %v4455
    %v4457 = vmul.f32 %v4440, 1.442695
    %v4458 = vpow.pop %v4457
    %v4459 = vmul.f32 %v4441, 1.442695
    %v4460 = vpow.pop %v4459
    %v4461 = vmul.f32 %v4442, 1.442695
    %v4462 = vpow.pop %v4461
    %v4463 = vmul.f32 %v4443, 1.442695
    %v4464 = vpow.pop %v4463
    %v4465 = vmul.f32 %v4444, 1.442695
    %v4466 = vpow.pop %v4465
    %v4467 = vmul.f32 %v4445, 1.442695
    %v4468 = vpow.pop %v4467
    %v4469 = vmul.f32 %v4446, 1.442695
    %v4470 = vpow.pop %v4469
    %v4471 = vmul.f32 %v4447, 1.442695
    %v4472 = vpow.pop %v4471
    %v4473 = vmul.f32 %v4448, 1.442695
    %v4474 = vpow.pop %v4473
    %v4475 = vmul.f32 %v4449, 1.442695
    %v4476 = vpow.pop %v4475
    %v4477 = vmul.f32 %v4450, 1.442695
    %v4478 = vpow.pop %v4477
    %v4479 = vadd.f32 %v4452, 1.0
    %v4480 = vadd.f32 %v4454, 1.0
    %v4481 = vadd.f32 %v4456, 1.0
    %v4482 = vadd.f32 %v4458, 1.0
    %v4483 = vadd.f32 %v4460, 1.0
    %v4484 = vadd.f32 %v4462, 1.0
    %v4485 = vadd.f32 %v4464, 1.0
    %v4486 = vadd.f32 %v4466, 1.0
    %v4487 = vadd.f32 %v4468, 1.0
    %v4488 = vadd.f32 %v4470, 1.0
    %v4489 = vadd.f32 %v4472, 1.0
    %v4490 = vadd.f32 %v4474, 1.0
    %v4491 = vadd.f32 %v4476, 1.0
    %v4492 = vadd.f32 %v4478, 1.0
    %v4493 = vrcp.pop %v4479
    %v4494 = vmul.f32 1.0, %v4493
    %v4495 = vrcp.pop %v4480
    %v4496 = vmul.f32 1.0, %v4495
    %v4497 = vrcp.pop %v4481
    %v4498 = vmul.f32 1.0, %v4497
    %v4499 = vrcp.pop %v4482
    %v4500 = vmul.f32 1.0, %v4499
    %v4501 = vrcp.pop %v4483
    %v4502 = vmul.f32 1.0, %v4501
    %v4503 = vrcp.pop %v4484
    %v4504 = vmul.f32 1.0, %v4503
    %v4505 = vrcp.pop %v4485
    %v4506 = vmul.f32 1.0, %v4505
    %v4507 = vrcp.pop %v4486
    %v4508 = vmul.f32 1.0, %v4507
    %v4509 = vrcp.pop %v4487
    %v4510 = vmul.f32 1.0, %v4509
    %v4511 = vrcp.pop %v4488
    %v4512 = vmul.f32 1.0, %v4511
    %v4513 = vrcp.pop %v4489
    %v4514 = vmul.f32 1.0, %v4513
    %v4515 = vrcp.pop %v4490
    %v4516 = vmul.f32 1.0, %v4515
    %v4517 = vrcp.pop %v4491
    %v4518 = vmul.f32 1.0, %v4517
    %v4519 = vrcp.pop %v4492
    %v4520 = vmul.f32 1.0, %v4519
    %v4521 = vpack.c.bf16 %v4508, %v4494
    %v4522 = vpack.c.bf16 %v4510, %v4496
    %v4523 = vpack.c.bf16 %v4512, %v4498
    %v4524 = vpack.c.bf16 %v4514, %v4500
    %v4525 = vpack.c.bf16 %v4516, %v4502
    %v4526 = vpack.c.bf16 %v4518, %v4504
    %v4527 = vpack.c.bf16 %v4520, %v4506
    %v4535 = vunpack.c.l.b16 %v4521
    %v4536 = vunpack.c.l.b16 %v4522
    %v4537 = vunpack.c.l.b16 %v4523
    %v4538 = vunpack.c.l.b16 %v4524
    %v4539 = vunpack.c.l.b16 %v4525
    %v4540 = vunpack.c.l.b16 %v4526
    %v4541 = vunpack.c.l.b16 %v4527
    %v4542 = vunpack.c.h.b16 %v4521
    %v4543 = vunpack.c.h.b16 %v4522
    %v4544 = vunpack.c.h.b16 %v4523
    %v4545 = vunpack.c.h.b16 %v4524
    %v4546 = vunpack.c.h.b16 %v4525
    %v4547 = vunpack.c.h.b16 %v4526
    %v4548 = vunpack.c.h.b16 %v4527
    %v4549 = vpack.c.b16 %v4536, %v4535
    %v4550 = vpack.c.b16 %v4538, %v4537
    %v4551 = vpack.c.b16 %v4540, %v4539
    %v4552 = vpack.c.b16 %v4541, %v4541
    %v4553 = vpack.c.b16 %v4543, %v4542
    %v4554 = vpack.c.b16 %v4545, %v4544
    %v4555 = vpack.c.b16 %v4547, %v4546
    %v4556 = vpack.c.b16 %v4548, %v4548
    %4565 = vst [vmem:[%s10] sm:$0xff] %v4549
    %4566 = vst [vmem:[%s10 + $0x8] sm:$0xff] %v4550
    %4567 = vst [vmem:[%s10 + $0x10] sm:$0xff] %v4551
    %4568 = vst [vmem:[%s10 + $0x18] sm:$0xf] %v4552
    %4569 = vst [vmem:[%s10 + $0x1c] sm:$0xff] %v4553
    %4570 = vst [vmem:[%s10 + $0x24] sm:$0xff] %v4554
    %4571 = vst [vmem:[%s10 + $0x2c] sm:$0xff] %v4555
    %4572 = vst [vmem:[%s10 + $0x34] sm:$0xf] %v4556
    %4573 = vst [vmem:[%s11] sm:$0xff] %v2319
    %4574 = vst [vmem:[%s11 + $0x8] sm:$0xff] %v2321
    %4575 = vst [vmem:[%s11 + $0x10] sm:$0xff] %v2323
    %4576 = vst [vmem:[%s11 + $0x18] sm:$0xff] %v2325
    // Predicated region
    $region54: #{vae_forward.1} parent=1 // pred_check
      _
    $region55: #{vae_forward.1} parent=1 // pred_check_branch
      %4578 = sbr.rel (0) target = $region57
    $region56: #{vae_forward.1} parent=1 // pred_region
      _
    $region57: #{vae_forward.1} parent=1 // pred_fallthru
      _
    // Predicated region
    $region58: #{vae_forward.1} parent=1 // pred_check
      _
    $region59: #{vae_forward.1} parent=1 // pred_check_branch
      %4580 = sbr.rel (0) target = $region61
    $region60: #{vae_forward.1} parent=1 // pred_region
      _
    $region61: #{vae_forward.1} parent=1 // pred_fallthru
      _
    // Predicated region
    $region62: #{vae_forward.1} parent=1 // pred_check
      _
    $region63: #{vae_forward.1} parent=1 // pred_check_branch
      %4582 = sbr.rel (0) target = $region65
    $region64: #{vae_forward.1} parent=1 // pred_region
      _
    $region65: #{vae_forward.1} parent=1 // pred_fallthru
      _
    // Predicated region
    $region66: #{vae_forward.1} parent=1 // pred_check
      _
    $region67: #{vae_forward.1} parent=1 // pred_check_branch
      %4584 = sbr.rel (0) target = $region69
    $region68: #{vae_forward.1} parent=1 // pred_region
      _
    $region69: #{vae_forward.1} parent=1 // pred_fallthru
      _
    %4585 = vsyncpa [#allocation3], 1
    %4586 = vsyncpa [#allocation5], 1

</llo_original>
